<compile_context>
chip_gen: v5e
topology: v5e:2x2
jax: 0.10.0
libtpu: 0.0.40
codegen_flags: <defaults>
</compile_context>

<pallas_src>
import functools

import jax
import jax.numpy as jnp
from jax.experimental import pallas as pl
from jax.experimental.pallas import tpu as pltpu


def _pick_row_tile(h, w, target_rows=512):
    """Largest TH dividing H with TH*W <= target_rows and TH*W % 8 == 0."""
    for th in range(h, 0, -1):
        if h % th:
            continue
        tm = th * w
        if tm <= target_rows and (th == h or tm % 8 == 0):
            return th
    return h


def _pick_tile(total, target, multiple=8):
    """Largest divisor of `total` <= target that is a multiple of `multiple`
    (falls back to `total`, i.e. one full block)."""
    for cand in range(min(total, target), 0, -1):
        if total % cand == 0 and (cand % multiple == 0 or cand == total):
            return cand
    return total


# --------------------------------------------------------------------------
# Kernel 1: sub-pixel ConvTranspose(k=4, s=2, p=1) + fused BN partial stats.
# --------------------------------------------------------------------------
def _deconv_bnstats_kernel(x_ref, w_ref, y_ref, s_ref, *, th, w_sp, cin):
    # x_ref: (1, H+2, W+2, Cin) bf16  zero-padded NHWC input (whole image;
    #                                 block index is constant across row tiles
    #                                 so it is DMA'd once per batch element)
    # w_ref: (4, 4*Cin, Cout)   bf16  per-parity merged 2x2 taps
    # y_ref: (1, 4, TH*W, Cout) f32   deconv output rows for this row tile
    # s_ref: (1, 1, 2, Cout)    f32   per-tile [sum, sum-of-squares]
    t = pl.program_id(1)
    row0 = t * th
    tm = th * w_sp
    cout = y_ref.shape[-1]
    s0 = jnp.zeros((1, cout), jnp.float32)
    s1 = jnp.zeros((1, cout), jnp.float32)
    for p in range(4):                       # static unroll: 4 output parities
        ph, pw = p // 2, p % 2
        taps = []
        for dh in range(2):                  # static unroll: 2x2 kernel window
            for dw in range(2):
                # output pixel (2i+ph, 2j+pw) reads x_pad[i+ph+dh, j+pw+dw]
                v = x_ref[0, pl.ds(row0 + ph + dh, th), pl.ds(pw + dw, w_sp), :]
                taps.append(v)
        cols = jnp.concatenate(taps, axis=-1)          # (TH, W, 4*Cin)
        cols = cols.reshape(tm, 4 * cin)               # K-merged im2col tile
        acc = jnp.dot(cols, w_ref[p], preferred_element_type=jnp.float32)
        y_ref[0, p] = acc                              # (TM, Cout) f32
        s0 = s0 + jnp.sum(acc, axis=0, keepdims=True)
        s1 = s1 + jnp.sum(acc * acc, axis=0, keepdims=True)
    s_ref[0, 0] = jnp.concatenate([s0, s1], axis=0)    # (2, Cout)


# --------------------------------------------------------------------------
# Kernel 2: tiled elementwise BN apply (precomputed scale/shift) + ReLU.
# --------------------------------------------------------------------------
def _bn_apply_relu_kernel(y_ref, sc_ref, sh_ref, o_ref, *, negative_slope):
    z = y_ref[...] * sc_ref[...] + sh_ref[...]
    if negative_slope == 0.0:
        o_ref[...] = jnp.maximum(z, 0.0)
    else:
        o_ref[...] = jnp.where(z > 0, z, negative_slope * z)


def gen_block_forward(x_nchw, label, params, *, negative_slope=0.0, eps=1e-5):
    del label  # conditional_bn=False in this config -> label is unused
    # TODO(synk): spectral-norm / ConditionalBatchNorm2d / sync-BN branches of
    #             GenBlock are not exercised by this configuration.
    w_pt = params["deconv_w"].astype(jnp.float32)    # (Cin, Cout, 4, 4)
    gamma = params["bn_gamma"].astype(jnp.float32)   # (Cout,)
    beta = params["bn_beta"].astype(jnp.float32)     # (Cout,)
    # Note: the deconv bias is intentionally NOT applied.  Train-mode BN
    # subtracts the per-channel batch mean right after, so a per-channel
    # constant bias is mathematically a no-op (verified vs. the reference).

    n, cin, h, w = x_nchw.shape
    cout = w_pt.shape[1]
    ho, wo = 2 * h, 2 * w

    # --- glue: NCHW -> NHWC, 1-pixel zero halo, bf16 for the MXU. -----------
    x = jnp.transpose(x_nchw, (0, 2, 3, 1)).astype(jnp.float32)
    x_pad = jnp.pad(x, ((0, 0), (1, 1), (1, 1), (0, 0))).astype(jnp.bfloat16)

    # --- glue: sub-pixel weights.  Output pixel (2i+ph, 2j+pw) only sees taps
    #     kh = 3-ph-2*dh, kw = 3-pw-2*dw against x[i+ph+dh-1, j+pw+dw-1];
    #     merge the 2x2 taps into K = 4*Cin, one weight matrix per parity.
    w_khkw = jnp.transpose(w_pt, (2, 3, 0, 1))       # (kh, kw, Cin, Cout)
    sub = jnp.array([[3, 1], [2, 0]])                # [parity, d] -> kernel idx
    w_sub = w_khkw[sub[:, :, None, None], sub[None, None, :, :]]
    # (ph, dh, pw, dw, Cin, Cout) -> (parity, (dh, dw, Cin), Cout)
    w_sub = jnp.transpose(w_sub, (0, 2, 1, 3, 4, 5)).reshape(4, 4 * cin, cout)
    w_sub = w_sub.astype(jnp.bfloat16)

    th = _pick_row_tile(h, w)        # input-row tile (output rows = th * w)
    t_tiles = h // th
    tm = th * w

    # --- Pallas call 1: deconv (one K-merged matmul per parity) + partial BN
    #     stats.  Both grid axes are independent -> "parallel" (v7x megacore).
    y, stats = pl.pallas_call(
        functools.partial(_deconv_bnstats_kernel, th=th, w_sp=w, cin=cin),
        out_shape=(
            jax.ShapeDtypeStruct((n, 4, h * w, cout), jnp.float32),
            jax.ShapeDtypeStruct((n, t_tiles, 2, cout), jnp.float32),
        ),
        grid=(n, t_tiles),
        in_specs=[
            pl.BlockSpec((1, h + 2, w + 2, cin), lambda b, t: (b, 0, 0, 0)),
            pl.BlockSpec((4, 4 * cin, cout), lambda b, t: (0, 0, 0)),
        ],
        out_specs=(
            pl.BlockSpec((1, 4, tm, cout), lambda b, t: (b, 0, t, 0)),
            pl.BlockSpec((1, 1, 2, cout), lambda b, t: (b, t, 0, 0)),
        ),
        compiler_params=pltpu.CompilerParams(
            dimension_semantics=("parallel", "parallel")),
    )(x_pad, w_sub)

    # --- glue: tiny cross-tile reduction + BN coefficients (O(Cout) work).
    s = jnp.sum(stats, axis=(0, 1))                  # (2, Cout)
    count = float(n * ho * wo)
    mean = s[0] / count
    var = s[1] / count - mean * mean                 # biased, train-mode BN
    scale = gamma * jax.lax.rsqrt(var + eps)
    shift = beta - mean * scale

    # --- Pallas call 2: tiled normalize + ReLU (single read of y). ----------
    rows = n * 4 * h * w                             # == n * ho * wo
    tr = _pick_tile(rows, 1024)
    y2d = y.reshape(rows, cout)
    z2d = pl.pallas_call(
        functools.partial(_bn_apply_relu_kernel, negative_slope=negative_slope),
        out_shape=jax.ShapeDtypeStruct((rows, cout), jnp.float32),
        grid=(rows // tr,),
        in_specs=[
            pl.BlockSpec((tr, cout), lambda i: (i, 0)),
            pl.BlockSpec((1, cout), lambda i: (0, 0)),
            pl.BlockSpec((1, cout), lambda i: (0, 0)),
        ],
        out_specs=pl.BlockSpec((tr, cout), lambda i: (i, 0)),
        compiler_params=pltpu.CompilerParams(dimension_semantics=("parallel",)),
    )(y2d, scale.reshape(1, cout), shift.reshape(1, cout))

    # --- glue: sub-pixel (depth-to-space) + NHWC->NCHW in a single transpose.
    # TODO(synk): if the surrounding model is NHWC, return the channels-last
    #             result directly and drop the entry/exit transposes.
    z = z2d.reshape(n, 2, 2, h, w, cout)             # [n, ph, pw, i, j, c]
    out = jnp.transpose(z, (0, 5, 3, 1, 4, 2)).reshape(n, cout, ho, wo)
    return out


# --------------------------------------------------------------------------
# Pure-JAX reference (f32, includes the deconv bias) for correctness checks.
# --------------------------------------------------------------------------
def gen_block_reference(x_nchw, params, *, negative_slope=0.0, eps=1e-5):
    w_pt = params["deconv_w"]
    bias = params["deconv_b"]
    gamma = params["bn_gamma"]
    beta = params["bn_beta"]
    k = jnp.transpose(w_pt[:, :, ::-1, ::-1], (1, 0, 2, 3))  # OIHW, flipped
    y = jax.lax.conv_general_dilated(
        x_nchw.astype(jnp.float32), k.astype(jnp.float32),
        window_strides=(1, 1), padding=((2, 2), (2, 2)),
        lhs_dilation=(2, 2), dimension_numbers=("NCHW", "OIHW", "NCHW"))
    y = y + bias.reshape(1, -1, 1, 1)
    mean = jnp.mean(y, axis=(0, 2, 3), keepdims=True)
    var = jnp.mean((y - mean) ** 2, axis=(0, 2, 3), keepdims=True)
    z = (y - mean) * jax.lax.rsqrt(var + eps)
    z = z * gamma.reshape(1, -1, 1, 1) + beta.reshape(1, -1, 1, 1)
    return jnp.where(z > 0, z, negative_slope * z)


if __name__ == "__main__":
    key = jax.random.PRNGKey(0)
    k1, k2, k3, k4, k5, k6 = jax.random.split(key, 6)

    N, Cin, Cout, H, W = 2, 4, 8, 16, 16
    x = jax.random.normal(k1, (N, Cin, H, W), jnp.float32)
    label = jax.random.randint(k2, (N,), 0, 10)  # ignored (conditional_bn=False)

    params = {
        "deconv_w": 0.02 * jax.random.normal(k3, (Cin, Cout, 4, 4), jnp.float32),
        "deconv_b": 0.01 * jax.random.normal(k4, (Cout,), jnp.float32),
        "bn_gamma": 1.0 + 0.1 * jax.random.normal(k5, (Cout,), jnp.float32),
        "bn_beta": 0.1 * jax.random.normal(k6, (Cout,), jnp.float32),
    }

    out = jax.block_until_ready(gen_block_forward(x, label, params))
    ref = jax.block_until_ready(gen_block_reference(x, params))

    assert out.shape == (N, Cout, 2 * H, 2 * W), out.shape
    # bf16 MXU operands (f32 accumulation) vs. a pure-f32 reference: allow a
    # few 1e-2 of slack on the unit-variance BN output.
    if not jnp.allclose(out, ref, rtol=5e-2, atol=5e-2):
        raise AssertionError("Pallas output mismatch vs JAX reference")
    print("KERNEL_OK")
</pallas_src>

<mosaic_0001>
module attributes {stable_mosaic.version = 11 : i64} {
  func.func @_deconv_bnstats_kernel(%arg0: i32, %arg1: i32, %arg2: memref<1x18x18x4xbf16, #tpu.memory_space<vmem>>, %arg3: memref<4x16x8xbf16, #tpu.memory_space<vmem>>, %arg4: memref<1x4x256x8xf32, #tpu.memory_space<vmem>>, %arg5: memref<1x1x2x8xf32, #tpu.memory_space<vmem>>) attributes {dimension_semantics = [#tpu.dimension_semantics<parallel>, #tpu.dimension_semantics<parallel>], iteration_bounds = array<i64: 2, 1>, scalar_prefetch = 0 : i64, scratch_operands = 0 : i64, tpu.core_type = #tpu.core_type<tc>, window_params = [{transform_indices = @transform_0, window_bounds = array<i64: 1, 18, 18, 4>}, {pipeline_mode = #tpu.pipeline_mode<synchronous>, transform_indices = @transform_1, window_bounds = array<i64: 4, 16, 8>}, {transform_indices = @transform_2, window_bounds = array<i64: 1, 4, 256, 8>}, {transform_indices = @transform_3, window_bounds = array<i64: 1, 1, 2, 8>}]} {
    %c16_i32 = arith.constant 16 : i32
    %0 = arith.muli %arg1, %c16_i32 : i32
    %cst = arith.constant 0.000000e+00 : f32
    %1 = vector.broadcast %cst : f32 to vector<1x8xf32>
    %cst_0 = arith.constant 0.000000e+00 : f32
    %2 = vector.broadcast %cst_0 : f32 to vector<1x8xf32>
    %c0_i32 = arith.constant 0 : i32
    %3 = arith.addi %0, %c0_i32 : i32
    %c0_i32_1 = arith.constant 0 : i32
    %4 = arith.addi %3, %c0_i32_1 : i32
    %c0 = arith.constant 0 : index
    %5 = arith.index_cast %4 : i32 to index
    %c0_2 = arith.constant 0 : index
    %c0_3 = arith.constant 0 : index
    %6 = vector.load %arg2[%c0, %5, %c0_2, %c0_3] : memref<1x18x18x4xbf16, #tpu.memory_space<vmem>>, vector<1x16x16x4xbf16>
    %7 = vector.shape_cast %6 : vector<1x16x16x4xbf16> to vector<16x16x4xbf16>
    %c0_i32_4 = arith.constant 0 : i32
    %8 = arith.addi %0, %c0_i32_4 : i32
    %c0_i32_5 = arith.constant 0 : i32
    %9 = arith.addi %8, %c0_i32_5 : i32
    %c0_6 = arith.constant 0 : index
    %10 = arith.index_cast %9 : i32 to index
    %c1 = arith.constant 1 : index
    %c0_7 = arith.constant 0 : index
    %11 = vector.load %arg2[%c0_6, %10, %c1, %c0_7] : memref<1x18x18x4xbf16, #tpu.memory_space<vmem>>, vector<1x16x16x4xbf16>
    %12 = vector.shape_cast %11 : vector<1x16x16x4xbf16> to vector<16x16x4xbf16>
    %c0_i32_8 = arith.constant 0 : i32
    %13 = arith.addi %0, %c0_i32_8 : i32
    %c1_i32 = arith.constant 1 : i32
    %14 = arith.addi %13, %c1_i32 : i32
    %c0_9 = arith.constant 0 : index
    %15 = arith.index_cast %14 : i32 to index
    %c0_10 = arith.constant 0 : index
    %c0_11 = arith.constant 0 : index
    %16 = vector.load %arg2[%c0_9, %15, %c0_10, %c0_11] : memref<1x18x18x4xbf16, #tpu.memory_space<vmem>>, vector<1x16x16x4xbf16>
    %17 = vector.shape_cast %16 : vector<1x16x16x4xbf16> to vector<16x16x4xbf16>
    %c0_i32_12 = arith.constant 0 : i32
    %18 = arith.addi %0, %c0_i32_12 : i32
    %c1_i32_13 = arith.constant 1 : i32
    %19 = arith.addi %18, %c1_i32_13 : i32
    %c0_14 = arith.constant 0 : index
    %20 = arith.index_cast %19 : i32 to index
    %c1_15 = arith.constant 1 : index
    %c0_16 = arith.constant 0 : index
    %21 = vector.load %arg2[%c0_14, %20, %c1_15, %c0_16] : memref<1x18x18x4xbf16, #tpu.memory_space<vmem>>, vector<1x16x16x4xbf16>
    %22 = vector.shape_cast %21 : vector<1x16x16x4xbf16> to vector<16x16x4xbf16>
    %23 = tpu.concatenate %7, %12, %17, %22 in 2 : vector<16x16x4xbf16>, vector<16x16x4xbf16>, vector<16x16x4xbf16>, vector<16x16x4xbf16> -> vector<16x16x16xbf16>
    %24 = vector.shape_cast %23 : vector<16x16x16xbf16> to vector<256x16xbf16>
    %c0_17 = arith.constant 0 : index
    %c0_18 = arith.constant 0 : index
    %c0_19 = arith.constant 0 : index
    %25 = vector.load %arg3[%c0_17, %c0_18, %c0_19] : memref<4x16x8xbf16, #tpu.memory_space<vmem>>, vector<1x16x8xbf16>
    %26 = vector.shape_cast %25 : vector<1x16x8xbf16> to vector<16x8xbf16>
    %cst_20 = arith.constant dense<0.000000e+00> : vector<256x8xf32>
    %27 = tpu.matmul %24, %26, %cst_20 {dimension_numbers = #tpu.dot_dimension_numbers<[1], [0], [0], [1], [0, 0, 1, 1], [], []>} : vector<256x16xbf16>, vector<16x8xbf16>, vector<256x8xf32> -> vector<256x8xf32>
    %c0_21 = arith.constant 0 : index
    %c0_22 = arith.constant 0 : index
    %c0_23 = arith.constant 0 : index
    %c0_24 = arith.constant 0 : index
    %28 = vector.load %arg4[%c0_21, %c0_22, %c0_23, %c0_24] : memref<1x4x256x8xf32, #tpu.memory_space<vmem>>, vector<1x1x256x8xf32>
    %29 = vector.shape_cast %28 : vector<1x1x256x8xf32> to vector<256x8xf32>
    %30 = vector.shape_cast %27 : vector<256x8xf32> to vector<1x1x256x8xf32>
    tpu.vector_store %arg4[%c0_21, %c0_22, %c0_23, %c0_24], %30 {strides = array<i32>} : memref<1x4x256x8xf32, #tpu.memory_space<vmem>>, vector<1x1x256x8xf32>,
    %cst_25 = arith.constant dense<0.000000e+00> : vector<8xf32>
    %31 = vector.multi_reduction <add>, %27, %cst_25 [0] : vector<256x8xf32> to vector<8xf32>
    %32 = vector.shape_cast %31 : vector<8xf32> to vector<1x8xf32>
    %33 = arith.addf %1, %32 : vector<1x8xf32>
    %34 = arith.mulf %27, %27 : vector<256x8xf32>
    %cst_26 = arith.constant dense<0.000000e+00> : vector<8xf32>
    %35 = vector.multi_reduction <add>, %34, %cst_26 [0] : vector<256x8xf32> to vector<8xf32>
    %36 = vector.shape_cast %35 : vector<8xf32> to vector<1x8xf32>
    %37 = arith.addf %2, %36 : vector<1x8xf32>
    %c0_i32_27 = arith.constant 0 : i32
    %38 = arith.addi %0, %c0_i32_27 : i32
    %c0_i32_28 = arith.constant 0 : i32
    %39 = arith.addi %38, %c0_i32_28 : i32
    %c0_29 = arith.constant 0 : index
    %40 = arith.index_cast %39 : i32 to index
    %c1_30 = arith.constant 1 : index
    %c0_31 = arith.constant 0 : index
    %41 = vector.load %arg2[%c0_29, %40, %c1_30, %c0_31] : memref<1x18x18x4xbf16, #tpu.memory_space<vmem>>, vector<1x16x16x4xbf16>
    %42 = vector.shape_cast %41 : vector<1x16x16x4xbf16> to vector<16x16x4xbf16>
    %c0_i32_32 = arith.constant 0 : i32
    %43 = arith.addi %0, %c0_i32_32 : i32
    %c0_i32_33 = arith.constant 0 : i32
    %44 = arith.addi %43, %c0_i32_33 : i32
    %c0_34 = arith.constant 0 : index
    %45 = arith.index_cast %44 : i32 to index
    %c2 = arith.constant 2 : index
    %c0_35 = arith.constant 0 : index
    %46 = vector.load %arg2[%c0_34, %45, %c2, %c0_35] : memref<1x18x18x4xbf16, #tpu.memory_space<vmem>>, vector<1x16x16x4xbf16>
    %47 = vector.shape_cast %46 : vector<1x16x16x4xbf16> to vector<16x16x4xbf16>
    %c0_i32_36 = arith.constant 0 : i32
    %48 = arith.addi %0, %c0_i32_36 : i32
    %c1_i32_37 = arith.constant 1 : i32
    %49 = arith.addi %48, %c1_i32_37 : i32
    %c0_38 = arith.constant 0 : index
    %50 = arith.index_cast %49 : i32 to index
    %c1_39 = arith.constant 1 : index
    %c0_40 = arith.constant 0 : index
    %51 = vector.load %arg2[%c0_38, %50, %c1_39, %c0_40] : memref<1x18x18x4xbf16, #tpu.memory_space<vmem>>, vector<1x16x16x4xbf16>
    %52 = vector.shape_cast %51 : vector<1x16x16x4xbf16> to vector<16x16x4xbf16>
    %c0_i32_41 = arith.constant 0 : i32
    %53 = arith.addi %0, %c0_i32_41 : i32
    %c1_i32_42 = arith.constant 1 : i32
    %54 = arith.addi %53, %c1_i32_42 : i32
    %c0_43 = arith.constant 0 : index
    %55 = arith.index_cast %54 : i32 to index
    %c2_44 = arith.constant 2 : index
    %c0_45 = arith.constant 0 : index
    %56 = vector.load %arg2[%c0_43, %55, %c2_44, %c0_45] : memref<1x18x18x4xbf16, #tpu.memory_space<vmem>>, vector<1x16x16x4xbf16>
    %57 = vector.shape_cast %56 : vector<1x16x16x4xbf16> to vector<16x16x4xbf16>
    %58 = tpu.concatenate %42, %47, %52, %57 in 2 : vector<16x16x4xbf16>, vector<16x16x4xbf16>, vector<16x16x4xbf16>, vector<16x16x4xbf16> -> vector<16x16x16xbf16>
    %59 = vector.shape_cast %58 : vector<16x16x16xbf16> to vector<256x16xbf16>
    %c1_46 = arith.constant 1 : index
    %c0_47 = arith.constant 0 : index
    %c0_48 = arith.constant 0 : index
    %60 = vector.load %arg3[%c1_46, %c0_47, %c0_48] : memref<4x16x8xbf16, #tpu.memory_space<vmem>>, vector<1x16x8xbf16>
    %61 = vector.shape_cast %60 : vector<1x16x8xbf16> to vector<16x8xbf16>
    %cst_49 = arith.constant dense<0.000000e+00> : vector<256x8xf32>
    %62 = tpu.matmul %59, %61, %cst_49 {dimension_numbers = #tpu.dot_dimension_numbers<[1], [0], [0], [1], [0, 0, 1, 1], [], []>} : vector<256x16xbf16>, vector<16x8xbf16>, vector<256x8xf32> -> vector<256x8xf32>
    %c0_50 = arith.constant 0 : index
    %c1_51 = arith.constant 1 : index
    %c0_52 = arith.constant 0 : index
    %c0_53 = arith.constant 0 : index
    %63 = vector.load %arg4[%c0_50, %c1_51, %c0_52, %c0_53] : memref<1x4x256x8xf32, #tpu.memory_space<vmem>>, vector<1x1x256x8xf32>
    %64 = vector.shape_cast %63 : vector<1x1x256x8xf32> to vector<256x8xf32>
    %65 = vector.shape_cast %62 : vector<256x8xf32> to vector<1x1x256x8xf32>
    tpu.vector_store %arg4[%c0_50, %c1_51, %c0_52, %c0_53], %65 {strides = array<i32>} : memref<1x4x256x8xf32, #tpu.memory_space<vmem>>, vector<1x1x256x8xf32>,
    %cst_54 = arith.constant dense<0.000000e+00> : vector<8xf32>
    %66 = vector.multi_reduction <add>, %62, %cst_54 [0] : vector<256x8xf32> to vector<8xf32>
    %67 = vector.shape_cast %66 : vector<8xf32> to vector<1x8xf32>
    %68 = arith.addf %33, %67 : vector<1x8xf32>
    %69 = arith.mulf %62, %62 : vector<256x8xf32>
    %cst_55 = arith.constant dense<0.000000e+00> : vector<8xf32>
    %70 = vector.multi_reduction <add>, %69, %cst_55 [0] : vector<256x8xf32> to vector<8xf32>
    %71 = vector.shape_cast %70 : vector<8xf32> to vector<1x8xf32>
    %72 = arith.addf %37, %71 : vector<1x8xf32>
    %c1_i32_56 = arith.constant 1 : i32
    %73 = arith.addi %0, %c1_i32_56 : i32
    %c0_i32_57 = arith.constant 0 : i32
    %74 = arith.addi %73, %c0_i32_57 : i32
    %c0_58 = arith.constant 0 : index
    %75 = arith.index_cast %74 : i32 to index
    %c0_59 = arith.constant 0 : index
    %c0_60 = arith.constant 0 : index
    %76 = vector.load %arg2[%c0_58, %75, %c0_59, %c0_60] : memref<1x18x18x4xbf16, #tpu.memory_space<vmem>>, vector<1x16x16x4xbf16>
    %77 = vector.shape_cast %76 : vector<1x16x16x4xbf16> to vector<16x16x4xbf16>
    %c1_i32_61 = arith.constant 1 : i32
    %78 = arith.addi %0, %c1_i32_61 : i32
    %c0_i32_62 = arith.constant 0 : i32
    %79 = arith.addi %78, %c0_i32_62 : i32
    %c0_63 = arith.constant 0 : index
    %80 = arith.index_cast %79 : i32 to index
    %c1_64 = arith.constant 1 : index
    %c0_65 = arith.constant 0 : index
    %81 = vector.load %arg2[%c0_63, %80, %c1_64, %c0_65] : memref<1x18x18x4xbf16, #tpu.memory_space<vmem>>, vector<1x16x16x4xbf16>
    %82 = vector.shape_cast %81 : vector<1x16x16x4xbf16> to vector<16x16x4xbf16>
    %c1_i32_66 = arith.constant 1 : i32
    %83 = arith.addi %0, %c1_i32_66 : i32
    %c1_i32_67 = arith.constant 1 : i32
    %84 = arith.addi %83, %c1_i32_67 : i32
    %c0_68 = arith.constant 0 : index
    %85 = arith.index_cast %84 : i32 to index
    %c0_69 = arith.constant 0 : index
    %c0_70 = arith.constant 0 : index
    %86 = vector.load %arg2[%c0_68, %85, %c0_69, %c0_70] : memref<1x18x18x4xbf16, #tpu.memory_space<vmem>>, vector<1x16x16x4xbf16>
    %87 = vector.shape_cast %86 : vector<1x16x16x4xbf16> to vector<16x16x4xbf16>
    %c1_i32_71 = arith.constant 1 : i32
    %88 = arith.addi %0, %c1_i32_71 : i32
    %c1_i32_72 = arith.constant 1 : i32
    %89 = arith.addi %88, %c1_i32_72 : i32
    %c0_73 = arith.constant 0 : index
    %90 = arith.index_cast %89 : i32 to index
    %c1_74 = arith.constant 1 : index
    %c0_75 = arith.constant 0 : index
    %91 = vector.load %arg2[%c0_73, %90, %c1_74, %c0_75] : memref<1x18x18x4xbf16, #tpu.memory_space<vmem>>, vector<1x16x16x4xbf16>
    %92 = vector.shape_cast %91 : vector<1x16x16x4xbf16> to vector<16x16x4xbf16>
    %93 = tpu.concatenate %77, %82, %87, %92 in 2 : vector<16x16x4xbf16>, vector<16x16x4xbf16>, vector<16x16x4xbf16>, vector<16x16x4xbf16> -> vector<16x16x16xbf16>
    %94 = vector.shape_cast %93 : vector<16x16x16xbf16> to vector<256x16xbf16>
    %c2_76 = arith.constant 2 : index
    %c0_77 = arith.constant 0 : index
    %c0_78 = arith.constant 0 : index
    %95 = vector.load %arg3[%c2_76, %c0_77, %c0_78] : memref<4x16x8xbf16, #tpu.memory_space<vmem>>, vector<1x16x8xbf16>
    %96 = vector.shape_cast %95 : vector<1x16x8xbf16> to vector<16x8xbf16>
    %cst_79 = arith.constant dense<0.000000e+00> : vector<256x8xf32>
    %97 = tpu.matmul %94, %96, %cst_79 {dimension_numbers = #tpu.dot_dimension_numbers<[1], [0], [0], [1], [0, 0, 1, 1], [], []>} : vector<256x16xbf16>, vector<16x8xbf16>, vector<256x8xf32> -> vector<256x8xf32>
    %c0_80 = arith.constant 0 : index
    %c2_81 = arith.constant 2 : index
    %c0_82 = arith.constant 0 : index
    %c0_83 = arith.constant 0 : index
    %98 = vector.load %arg4[%c0_80, %c2_81, %c0_82, %c0_83] : memref<1x4x256x8xf32, #tpu.memory_space<vmem>>, vector<1x1x256x8xf32>
    %99 = vector.shape_cast %98 : vector<1x1x256x8xf32> to vector<256x8xf32>
    %100 = vector.shape_cast %97 : vector<256x8xf32> to vector<1x1x256x8xf32>
    tpu.vector_store %arg4[%c0_80, %c2_81, %c0_82, %c0_83], %100 {strides = array<i32>} : memref<1x4x256x8xf32, #tpu.memory_space<vmem>>, vector<1x1x256x8xf32>,
    %cst_84 = arith.constant dense<0.000000e+00> : vector<8xf32>
    %101 = vector.multi_reduction <add>, %97, %cst_84 [0] : vector<256x8xf32> to vector<8xf32>
    %102 = vector.shape_cast %101 : vector<8xf32> to vector<1x8xf32>
    %103 = arith.addf %68, %102 : vector<1x8xf32>
    %104 = arith.mulf %97, %97 : vector<256x8xf32>
    %cst_85 = arith.constant dense<0.000000e+00> : vector<8xf32>
    %105 = vector.multi_reduction <add>, %104, %cst_85 [0] : vector<256x8xf32> to vector<8xf32>
    %106 = vector.shape_cast %105 : vector<8xf32> to vector<1x8xf32>
    %107 = arith.addf %72, %106 : vector<1x8xf32>
    %c1_i32_86 = arith.constant 1 : i32
    %108 = arith.addi %0, %c1_i32_86 : i32
    %c0_i32_87 = arith.constant 0 : i32
    %109 = arith.addi %108, %c0_i32_87 : i32
    %c0_88 = arith.constant 0 : index
    %110 = arith.index_cast %109 : i32 to index
    %c1_89 = arith.constant 1 : index
    %c0_90 = arith.constant 0 : index
    %111 = vector.load %arg2[%c0_88, %110, %c1_89, %c0_90] : memref<1x18x18x4xbf16, #tpu.memory_space<vmem>>, vector<1x16x16x4xbf16>
    %112 = vector.shape_cast %111 : vector<1x16x16x4xbf16> to vector<16x16x4xbf16>
    %c1_i32_91 = arith.constant 1 : i32
    %113 = arith.addi %0, %c1_i32_91 : i32
    %c0_i32_92 = arith.constant 0 : i32
    %114 = arith.addi %113, %c0_i32_92 : i32
    %c0_93 = arith.constant 0 : index
    %115 = arith.index_cast %114 : i32 to index
    %c2_94 = arith.constant 2 : index
    %c0_95 = arith.constant 0 : index
    %116 = vector.load %arg2[%c0_93, %115, %c2_94, %c0_95] : memref<1x18x18x4xbf16, #tpu.memory_space<vmem>>, vector<1x16x16x4xbf16>
    %117 = vector.shape_cast %116 : vector<1x16x16x4xbf16> to vector<16x16x4xbf16>
    %c1_i32_96 = arith.constant 1 : i32
    %118 = arith.addi %0, %c1_i32_96 : i32
    %c1_i32_97 = arith.constant 1 : i32
    %119 = arith.addi %118, %c1_i32_97 : i32
    %c0_98 = arith.constant 0 : index
    %120 = arith.index_cast %119 : i32 to index
    %c1_99 = arith.constant 1 : index
    %c0_100 = arith.constant 0 : index
    %121 = vector.load %arg2[%c0_98, %120, %c1_99, %c0_100] : memref<1x18x18x4xbf16, #tpu.memory_space<vmem>>, vector<1x16x16x4xbf16>
    %122 = vector.shape_cast %121 : vector<1x16x16x4xbf16> to vector<16x16x4xbf16>
    %c1_i32_101 = arith.constant 1 : i32
    %123 = arith.addi %0, %c1_i32_101 : i32
    %c1_i32_102 = arith.constant 1 : i32
    %124 = arith.addi %123, %c1_i32_102 : i32
    %c0_103 = arith.constant 0 : index
    %125 = arith.index_cast %124 : i32 to index
    %c2_104 = arith.constant 2 : index
    %c0_105 = arith.constant 0 : index
    %126 = vector.load %arg2[%c0_103, %125, %c2_104, %c0_105] : memref<1x18x18x4xbf16, #tpu.memory_space<vmem>>, vector<1x16x16x4xbf16>
    %127 = vector.shape_cast %126 : vector<1x16x16x4xbf16> to vector<16x16x4xbf16>
    %128 = tpu.concatenate %112, %117, %122, %127 in 2 : vector<16x16x4xbf16>, vector<16x16x4xbf16>, vector<16x16x4xbf16>, vector<16x16x4xbf16> -> vector<16x16x16xbf16>
    %129 = vector.shape_cast %128 : vector<16x16x16xbf16> to vector<256x16xbf16>
    %c3 = arith.constant 3 : index
    %c0_106 = arith.constant 0 : index
    %c0_107 = arith.constant 0 : index
    %130 = vector.load %arg3[%c3, %c0_106, %c0_107] : memref<4x16x8xbf16, #tpu.memory_space<vmem>>, vector<1x16x8xbf16>
    %131 = vector.shape_cast %130 : vector<1x16x8xbf16> to vector<16x8xbf16>
    %cst_108 = arith.constant dense<0.000000e+00> : vector<256x8xf32>
    %132 = tpu.matmul %129, %131, %cst_108 {dimension_numbers = #tpu.dot_dimension_numbers<[1], [0], [0], [1], [0, 0, 1, 1], [], []>} : vector<256x16xbf16>, vector<16x8xbf16>, vector<256x8xf32> -> vector<256x8xf32>
    %c0_109 = arith.constant 0 : index
    %c3_110 = arith.constant 3 : index
    %c0_111 = arith.constant 0 : index
    %c0_112 = arith.constant 0 : index
    %133 = vector.load %arg4[%c0_109, %c3_110, %c0_111, %c0_112] : memref<1x4x256x8xf32, #tpu.memory_space<vmem>>, vector<1x1x256x8xf32>
    %134 = vector.shape_cast %133 : vector<1x1x256x8xf32> to vector<256x8xf32>
    %135 = vector.shape_cast %132 : vector<256x8xf32> to vector<1x1x256x8xf32>
    tpu.vector_store %arg4[%c0_109, %c3_110, %c0_111, %c0_112], %135 {strides = array<i32>} : memref<1x4x256x8xf32, #tpu.memory_space<vmem>>, vector<1x1x256x8xf32>,
    %cst_113 = arith.constant dense<0.000000e+00> : vector<8xf32>
    %136 = vector.multi_reduction <add>, %132, %cst_113 [0] : vector<256x8xf32> to vector<8xf32>
    %137 = vector.shape_cast %136 : vector<8xf32> to vector<1x8xf32>
    %138 = arith.addf %103, %137 : vector<1x8xf32>
    %139 = arith.mulf %132, %132 : vector<256x8xf32>
    %cst_114 = arith.constant dense<0.000000e+00> : vector<8xf32>
    %140 = vector.multi_reduction <add>, %139, %cst_114 [0] : vector<256x8xf32> to vector<8xf32>
    %141 = vector.shape_cast %140 : vector<8xf32> to vector<1x8xf32>
    %142 = arith.addf %107, %141 : vector<1x8xf32>
    %143 = tpu.concatenate %138, %142 in 0 : vector<1x8xf32>, vector<1x8xf32> -> vector<2x8xf32>
    %c0_115 = arith.constant 0 : index
    %c0_116 = arith.constant 0 : index
    %c0_117 = arith.constant 0 : index
    %c0_118 = arith.constant 0 : index
    %144 = vector.load %arg5[%c0_115, %c0_116, %c0_117, %c0_118] : memref<1x1x2x8xf32, #tpu.memory_space<vmem>>, vector<1x1x2x8xf32>
    %145 = vector.shape_cast %144 : vector<1x1x2x8xf32> to vector<2x8xf32>
    %146 = vector.shape_cast %143 : vector<2x8xf32> to vector<1x1x2x8xf32>
    tpu.vector_store %arg5[%c0_115, %c0_116, %c0_117, %c0_118], %146 {strides = array<i32>} : memref<1x1x2x8xf32, #tpu.memory_space<vmem>>, vector<1x1x2x8xf32>,
    return
  }
  func.func @transform_0(%arg0: i32, %arg1: i32) -> (i32, i32, i32, i32) {
    %c0_i32 = arith.constant 0 : i32
    %c0_i32_0 = arith.constant 0 : i32
    %c0_i32_1 = arith.constant 0 : i32
    %c0_i32_2 = arith.constant 0 : i32
    return %arg0, %c0_i32, %c0_i32_0, %c0_i32_1 : i32, i32, i32, i32
  }
  func.func @transform_1(%arg0: i32, %arg1: i32) -> (i32, i32, i32) {
    %c0_i32 = arith.constant 0 : i32
    %c0_i32_0 = arith.constant 0 : i32
    %c0_i32_1 = arith.constant 0 : i32
    %c0_i32_2 = arith.constant 0 : i32
    return %c0_i32, %c0_i32_0, %c0_i32_1 : i32, i32, i32
  }
  func.func @transform_2(%arg0: i32, %arg1: i32) -> (i32, i32, i32, i32) {
    %c0_i32 = arith.constant 0 : i32
    %c0_i32_0 = arith.constant 0 : i32
    %c0_i32_1 = arith.constant 0 : i32
    return %arg0, %c0_i32, %arg1, %c0_i32_0 : i32, i32, i32, i32
  }
  func.func @transform_3(%arg0: i32, %arg1: i32) -> (i32, i32, i32, i32) {
    %c0_i32 = arith.constant 0 : i32
    %c0_i32_0 = arith.constant 0 : i32
    %c0_i32_1 = arith.constant 0 : i32
    return %arg0, %arg1, %c0_i32, %c0_i32_0 : i32, i32, i32, i32
  }
}

</mosaic_0001>

<llo_original>
// kernel: tpu_custom_call.1
$region0: #{tpu_custom_call.1}
  #allocation0 [shape = 'u32[]', space=smem, size = 0x4, offset = 0x4, fixed_abs, tag = 'smem constant byte address 0x4 - core index']
  #allocation1 [shape = 'u32[72,128]{1,0:T(1,128)}', space=vmem, size = 0x9000, scoped, tag = 'internal scratch']
  %s0 = inlined_call_operand.vmem [shape: bf16[2,18,18,4], index: 0, kind: input, shape index: {}]
  %s1 = inlined_call_operand.vmem [shape: bf16[4,16,8], index: 1, kind: input, shape index: {}]
  %s2 = inlined_call_operand.vmem [shape: f32[2,4,256,8], index: 2, kind: output, shape index: {0}]
  %s3 = inlined_call_operand.hbm [shape: f32[2,1,2,8], index: 3, kind: output, shape index: {1}]
  %4 = xla_tuple %s2, %s3
  %s5 = sld [smem:[#allocation0]]
  $region49: #{tpu_custom_call.1} parent=0
    _
  %s7 = ssub.s32 1, %s5
  %s8 = scalar_select 0, %s7, %s5
  $region1: #{tpu_custom_call.1} parent=0
    #allocation2 [shape = 'u8[2048]{0}', space=vmem, size = 0x800, scoped, tag = 'output window, operand 1']
    #allocation3 [shape = 's32[2]{0}', space=sflag, size = 0x8, scoped, tag = 'scoped memory for tpu_custom_call.1']
    %9 = vsyncpa [#allocation3], 0
    %s10 = scalar_lea.sflag [#allocation3], 1
    %11 = vsyncpa %s10, 0
    loop: start=0, step=1, limit=4
    $region2: #{tpu_custom_call.1} parent=1 // loop_pre_header
      _
    $region3: #{tpu_custom_call.1} parent=1 // loop_header
      %s13 = sphi 0, %s17
      %p14 = scmp.ge.s32.totalorder %s13, 4
      %s20 = sphi 0, %s32
      %s21 = sphi 0, %s28
      %s22 = sphi 0, %s20
      %s23 = sphi 0, %s21
      %s24 = sphi 0, %s22
      %s25 = sphi 0, %s23
      %s35 = sphi 0, %s37
      %s38 = sphi 0, %s35
      %s39 = sphi 0, %s38
      %s55 = sphi 0, %s39
      %s59 = sphi 0, %s59
      %s61 = sphi 0, %s59
      %s62 = sphi 0, %s61
      %s76 = sphi 0, %s62
      %s84 = sphi 0, %s86
      %s87 = sphi 0, %s84
      %s88 = sphi 0, %s87
      %s104 = sphi 0, %s88
      %s112 = sphi 0, %s114
      %s115 = sphi 0, %s112
      %s116 = sphi 0, %s115
      %s132 = sphi 0, %s116
    $region4: #{tpu_custom_call.1} parent=1 // loop_header_branch
      %16 = sbr.rel (%p14) target = $region8
    $region5: #{tpu_custom_call.1} parent=1 // loop_body
      %s18 = ssub.s32 %s13, 1
      %s19 = ssub.s32 %s13, 2
      %s26 = sadd.s32 1, %s21
      %p27 = scmp.ge.s32.totalorder %s26, 1
      %s28 = scalar_select %p27, 0, %s26
      %s29 = sadd.s32 1, %s20
      %s30 = scalar_select %p27, %s29, %s20
      %p31 = scmp.ge.s32.totalorder %s30, 2
      %s32 = scalar_select %p31, 0, %s30
      %s33 = ssub.s32 %s20, %s32
      %p34 = scmp.eq.s32.totalorder %s33, 0
      %s36 = sadd.s32 %s35, 1
      %s37 = scalar_select %p34, %s35, %s36
      %p40 = pneg %p34
      %p41 = scmp.eq.s32.totalorder %s13, 1
      %p42 = por %p40, %p41
      %p43 = scmp.ne.s32.totalorder %s35, %s38
      %p44 = scmp.eq.s32.totalorder %s13, 0
      %p45 = por %p43, %p44
      %p46 = scmp.ne.s32.totalorder %s35, %s38
      %p47 = scmp.eq.s32.totalorder %s18, 1
      %p48 = por %p46, %p47
      %p49 = scmp.ne.s32.totalorder %s38, %s39
      %p50 = scmp.eq.s32.totalorder %s18, 0
      %p51 = por %p49, %p50
      %p52 = scmp.ne.s32.totalorder %s38, %s39
      %p53 = scmp.eq.s32.totalorder %s19, 1
      %p54 = por %p52, %p53
      %p56 = scmp.ne.s32.totalorder %s39, %s55
      %p57 = scmp.eq.s32.totalorder %s19, 0
      %p58 = por %p56, %p57
      %s60 = sadd.s32 %s59, 1
      %p63 = scmp.eq.s32.totalorder %s13, 1
      %p64 = scmp.ne.s32.totalorder %s59, %s61
      %p65 = scmp.eq.s32.totalorder %s13, 0
      %p66 = por %p64, %p65
      %p67 = scmp.ne.s32.totalorder %s59, %s61
      %p68 = scmp.eq.s32.totalorder %s18, 1
      %p69 = por %p67, %p68
      %p70 = scmp.ne.s32.totalorder %s61, %s62
      %p71 = scmp.eq.s32.totalorder %s18, 0
      %p72 = por %p70, %p71
      %p73 = scmp.ne.s32.totalorder %s61, %s62
      %p74 = scmp.eq.s32.totalorder %s19, 1
      %p75 = por %p73, %p74
      %p77 = scmp.ne.s32.totalorder %s62, %s76
      %p78 = scmp.eq.s32.totalorder %s19, 0
      %p79 = por %p77, %p78
      %s80 = ssub.s32 %s20, %s32
      %s81 = ssub.s32 %s21, %s28
      %s82 = sor.u32 %s80, %s81
      %p83 = scmp.eq.s32.totalorder %s82, 0
      %s85 = sadd.s32 %s84, 1
      %s86 = scalar_select %p83, %s84, %s85
      %p89 = pneg %p83
      %p90 = scmp.eq.s32.totalorder %s13, 1
      %p91 = por %p89, %p90
      %p92 = scmp.ne.s32.totalorder %s84, %s87
      %p93 = scmp.eq.s32.totalorder %s13, 0
      %p94 = por %p92, %p93
      %p95 = scmp.ne.s32.totalorder %s84, %s87
      %p96 = scmp.eq.s32.totalorder %s18, 1
      %p97 = por %p95, %p96
      %p98 = scmp.ne.s32.totalorder %s87, %s88
      %p99 = scmp.eq.s32.totalorder %s18, 0
      %p100 = por %p98, %p99
      %p101 = scmp.ne.s32.totalorder %s87, %s88
      %p102 = scmp.eq.s32.totalorder %s19, 1
      %p103 = por %p101, %p102
      %p105 = scmp.ne.s32.totalorder %s88, %s104
      %p106 = scmp.eq.s32.totalorder %s19, 0
      %p107 = por %p105, %p106
      %s108 = ssub.s32 %s20, %s32
      %s109 = ssub.s32 %s21, %s28
      %s110 = sor.u32 %s108, %s109
      %p111 = scmp.eq.s32.totalorder %s110, 0
      %s113 = sadd.s32 %s112, 1
      %s114 = scalar_select %p111, %s112, %s113
      %p117 = pneg %p111
      %p118 = scmp.eq.s32.totalorder %s13, 1
      %p119 = por %p117, %p118
      %p120 = scmp.ne.s32.totalorder %s112, %s115
      %p121 = scmp.eq.s32.totalorder %s13, 0
      %p122 = por %p120, %p121
      %p123 = scmp.ne.s32.totalorder %s112, %s115
      %p124 = scmp.eq.s32.totalorder %s18, 1
      %p125 = por %p123, %p124
      %p126 = scmp.ne.s32.totalorder %s115, %s116
      %p127 = scmp.eq.s32.totalorder %s18, 0
      %p128 = por %p126, %p127
      %p129 = scmp.ne.s32.totalorder %s115, %s116
      %p130 = scmp.eq.s32.totalorder %s19, 1
      %p131 = por %p129, %p130
      %p133 = scmp.ne.s32.totalorder %s116, %s132
      %p134 = scmp.eq.s32.totalorder %s19, 0
      %p135 = por %p133, %p134
      %p136 = scmp.le.s32.totalorder 1, %s13
      %p137 = scmp.lt.s32.totalorder %s13, 3
      %p138 = pnand %p136, %p137
      %p139 = pneg %p138
      // Predicated region
      $region9: #{tpu_custom_call.1} parent=5 // pred_check
        _
      $region10: #{tpu_custom_call.1} parent=5 // pred_check_branch
        %141 = sbr.rel (%p138) target = $region12
      $region11: #{tpu_custom_call.1} parent=5 // pred_region
        %s142 = ssub.s32 %s13, 1
        // Predicated region
        $region13: #{tpu_custom_call.1} parent=11 // pred_check
          %p143 = pneg %p72
        $region14: #{tpu_custom_call.1} parent=11 // pred_check_branch
          %145 = sbr.rel (%p143) target = $region16
        $region15: #{tpu_custom_call.1} parent=11 // pred_region
          _
        $region16: #{tpu_custom_call.1} parent=11 // pred_fallthru
          _
      $region12: #{tpu_custom_call.1} parent=5 // pred_fallthru
        _
      %p146 = scmp.lt.s32.totalorder %s13, 2
      // Predicated region
      $region17: #{tpu_custom_call.1} parent=5 // pred_check
        %p147 = pneg %p146
      $region18: #{tpu_custom_call.1} parent=5 // pred_check_branch
        %149 = sbr.rel (%p147) target = $region20
      $region19: #{tpu_custom_call.1} parent=5 // pred_region
        // Predicated region
        $region21: #{tpu_custom_call.1} parent=19 // pred_check
          %p150 = pneg %p45
        $region22: #{tpu_custom_call.1} parent=19 // pred_check_branch
          %152 = sbr.rel (%p150) target = $region24
        $region23: #{tpu_custom_call.1} parent=19 // pred_region
          %p153 = scmp.lt.s32.totalorder %s20, 1
          %s154 = scalar_select %p153, %s20, 1
          %s155 = smul.addr %s154, 54
          %s156 = smul.addr %s155, 4
          %s157 = scalar_lea.vmem %s0, %s156
        $region24: #{tpu_custom_call.1} parent=19 // pred_fallthru
          _
      $region20: #{tpu_custom_call.1} parent=5 // pred_fallthru
        _
      %p158 = scmp.le.s32.totalorder 1, %s13
      %p159 = scmp.lt.s32.totalorder %s13, 3
      %p160 = pnand %p158, %p159
      %p161 = pneg %p160
      // Predicated region
      $region25: #{tpu_custom_call.1} parent=5 // pred_check
        _
      $region26: #{tpu_custom_call.1} parent=5 // pred_check_branch
        %163 = sbr.rel (%p160) target = $region28
      $region27: #{tpu_custom_call.1} parent=5 // pred_region
        %s164 = ssub.s32 %s13, 1
        %p165 = scmp.lt.s32.totalorder %s22, 1
        %s166 = scalar_select %p165, %s22, 1
        %s167 = smul.addr %s166, 54
        %s168 = smul.addr %s167, 4
        %s169 = scalar_lea.vmem %s0, %s168
        %p170 = pneg %p51
        %p171 = pneg %p48
        %p172 = pneg %p72
        %p173 = pneg %p69
        %p174 = pneg %p100
        %p175 = pneg %p97
        %s176 = smul.u32 32, %s23
        %p177 = scmp.lt.s32.totalorder %s22, 1
        %s178 = scalar_select %p177, %s22, 1
        %p179 = scmp.lt.s32.totalorder %s176, 31
        %s180 = scalar_select %p179, %s176, 31
        %s181 = smul.addr %s178, 128
        %s182 = sadd.s32 %s180, %s181
        %s183 = smul.addr %s182, 8
        %s184 = scalar_lea.vmem %s2, %s183
        %p185 = pneg %p128
        %p186 = pneg %p125
        %s187 = sand.u32 %s115, 1
        %s188 = scalar_lea.sflag [#allocation3], %s187
        %s189 = sand.u32 %s115, 1
        %s190 = smul.addr %s189, 2
        %s191 = scalar_lea.vmem [#allocation2], %s190
        %p192 = scmp.lt.s32.totalorder %s22, 1
        %s193 = scalar_select %p192, %s22, 1
        %s194 = smul.addr %s193, 54
        %s195 = smul.addr %s194, 4
        %s196 = scalar_lea.vmem %s0, %s195
        %s197 = smul.u32 32, %s23
        %p198 = scmp.lt.s32.totalorder %s22, 1
        %s199 = scalar_select %p198, %s22, 1
        %p200 = scmp.lt.s32.totalorder %s197, 31
        %s201 = scalar_select %p200, %s197, 31
        %s202 = smul.addr %s199, 128
        %s203 = sadd.s32 %s201, %s202
        %s204 = smul.addr %s203, 8
        %s205 = scalar_lea.vmem %s2, %s204
        %s206 = smul.u32 32, %s23
        %s208 = smul.u32 %s23, 16
        %s209 = smul.u32 %s208, 3
        %s210 = smul.addr %s209, 4
        %s211 = scalar_lea.vmem %s196, %s210
        %v212 = vld [vmem:[%s211] sm:$0xf]
        %v213 = vld [vmem:[%s211 + $0x4] sm:$0xf]
        %v214 = vld [vmem:[%s211 + $0xc] sm:$0xf]
        %v215 = vld [vmem:[%s211 + $0x10] sm:$0xf]
        %v216 = vld [vmem:[%s211 + $0x18] sm:$0xf]
        %v217 = vld [vmem:[%s211 + $0x1c] sm:$0xf]
        %v218 = vld [vmem:[%s211 + $0x24] sm:$0xf]
        %v219 = vld [vmem:[%s211 + $0x28] sm:$0xf]
        %v220 = vld [vmem:[%s211 + $0x30] sm:$0xf]
        %v221 = vld [vmem:[%s211 + $0x34] sm:$0xf]
        %v222 = vld [vmem:[%s211 + $0x3c] sm:$0xf]
        %v223 = vld [vmem:[%s211 + $0x40] sm:$0xf]
        %v224 = vld [vmem:[%s211 + $0x48] sm:$0xf]
        %v225 = vld [vmem:[%s211 + $0x4c] sm:$0xf]
        %v226 = vld [vmem:[%s211 + $0x54] sm:$0xf]
        %v227 = vld [vmem:[%s211 + $0x58] sm:$0xf]
        %v228 = vld [vmem:[%s211 + $0x60] sm:$0xf]
        %v229 = vld [vmem:[%s211 + $0x64] sm:$0xf]
        %v230 = vld [vmem:[%s211 + $0x6c] sm:$0xf]
        %v231 = vld [vmem:[%s211 + $0x70] sm:$0xf]
        %v232 = vld [vmem:[%s211 + $0x78] sm:$0xf]
        %v233 = vld [vmem:[%s211 + $0x7c] sm:$0xf]
        %v234 = vld [vmem:[%s211 + $0x84] sm:$0xf]
        %v235 = vld [vmem:[%s211 + $0x88] sm:$0xf]
        %v236 = vld [vmem:[%s211 + $0x90] sm:$0xf]
        %v237 = vld [vmem:[%s211 + $0x94] sm:$0xf]
        %v238 = vld [vmem:[%s211 + $0x9c] sm:$0xf]
        %v239 = vld [vmem:[%s211 + $0xa0] sm:$0xf]
        %v240 = vld [vmem:[%s211 + $0xa8] sm:$0xf]
        %v241 = vld [vmem:[%s211 + $0xac] sm:$0xf]
        %v242 = vld [vmem:[%s211 + $0xb4] sm:$0xf]
        %v243 = vld [vmem:[%s211 + $0xb8] sm:$0xf]
        %v244 = vld [vmem:[%s211 + $0x8] sm:$0x1]
        %v245 = vld [vmem:[%s211 + $0x14] sm:$0x1]
        %v246 = vld [vmem:[%s211 + $0x20] sm:$0x1]
        %v247 = vld [vmem:[%s211 + $0x2c] sm:$0x1]
        %v248 = vld [vmem:[%s211 + $0x38] sm:$0x1]
        %v249 = vld [vmem:[%s211 + $0x44] sm:$0x1]
        %v250 = vld [vmem:[%s211 + $0x50] sm:$0x1]
        %v251 = vld [vmem:[%s211 + $0x5c] sm:$0x1]
        %v252 = vld [vmem:[%s211 + $0x68] sm:$0x1]
        %v253 = vld [vmem:[%s211 + $0x74] sm:$0x1]
        %v254 = vld [vmem:[%s211 + $0x80] sm:$0x1]
        %v255 = vld [vmem:[%s211 + $0x8c] sm:$0x1]
        %v256 = vld [vmem:[%s211 + $0x98] sm:$0x1]
        %v257 = vld [vmem:[%s211 + $0xa4] sm:$0x1]
        %v258 = vld [vmem:[%s211 + $0xb0] sm:$0x1]
        %v259 = vld [vmem:[%s211 + $0xbc] sm:$0x1]
        %s260 = sadd.s32 %s208, 1
        %s261 = smul.u32 %s260, 3
        %s262 = smul.addr %s261, 4
        %s263 = scalar_lea.vmem %s196, %s262
        %v264 = vld [vmem:[%s263] sm:$0xf]
        %v265 = vld [vmem:[%s263 + $0x4] sm:$0xf]
        %v266 = vld [vmem:[%s263 + $0xc] sm:$0xf]
        %v267 = vld [vmem:[%s263 + $0x10] sm:$0xf]
        %v268 = vld [vmem:[%s263 + $0x18] sm:$0xf]
        %v269 = vld [vmem:[%s263 + $0x1c] sm:$0xf]
        %v270 = vld [vmem:[%s263 + $0x24] sm:$0xf]
        %v271 = vld [vmem:[%s263 + $0x28] sm:$0xf]
        %v272 = vld [vmem:[%s263 + $0x30] sm:$0xf]
        %v273 = vld [vmem:[%s263 + $0x34] sm:$0xf]
        %v274 = vld [vmem:[%s263 + $0x3c] sm:$0xf]
        %v275 = vld [vmem:[%s263 + $0x40] sm:$0xf]
        %v276 = vld [vmem:[%s263 + $0x48] sm:$0xf]
        %v277 = vld [vmem:[%s263 + $0x4c] sm:$0xf]
        %v278 = vld [vmem:[%s263 + $0x54] sm:$0xf]
        %v279 = vld [vmem:[%s263 + $0x58] sm:$0xf]
        %v280 = vld [vmem:[%s263 + $0x60] sm:$0xf]
        %v281 = vld [vmem:[%s263 + $0x64] sm:$0xf]
        %v282 = vld [vmem:[%s263 + $0x6c] sm:$0xf]
        %v283 = vld [vmem:[%s263 + $0x70] sm:$0xf]
        %v284 = vld [vmem:[%s263 + $0x78] sm:$0xf]
        %v285 = vld [vmem:[%s263 + $0x7c] sm:$0xf]
        %v286 = vld [vmem:[%s263 + $0x84] sm:$0xf]
        %v287 = vld [vmem:[%s263 + $0x88] sm:$0xf]
        %v288 = vld [vmem:[%s263 + $0x90] sm:$0xf]
        %v289 = vld [vmem:[%s263 + $0x94] sm:$0xf]
        %v290 = vld [vmem:[%s263 + $0x9c] sm:$0xf]
        %v291 = vld [vmem:[%s263 + $0xa0] sm:$0xf]
        %v292 = vld [vmem:[%s263 + $0xa8] sm:$0xf]
        %v293 = vld [vmem:[%s263 + $0xac] sm:$0xf]
        %v294 = vld [vmem:[%s263 + $0xb4] sm:$0xf]
        %v295 = vld [vmem:[%s263 + $0xb8] sm:$0xf]
        %v296 = vld [vmem:[%s263 + $0x8] sm:$0x1]
        %v297 = vld [vmem:[%s263 + $0x14] sm:$0x1]
        %v298 = vld [vmem:[%s263 + $0x20] sm:$0x1]
        %v299 = vld [vmem:[%s263 + $0x2c] sm:$0x1]
        %v300 = vld [vmem:[%s263 + $0x38] sm:$0x1]
        %v301 = vld [vmem:[%s263 + $0x44] sm:$0x1]
        %v302 = vld [vmem:[%s263 + $0x50] sm:$0x1]
        %v303 = vld [vmem:[%s263 + $0x5c] sm:$0x1]
        %v304 = vld [vmem:[%s263 + $0x68] sm:$0x1]
        %v305 = vld [vmem:[%s263 + $0x74] sm:$0x1]
        %v306 = vld [vmem:[%s263 + $0x80] sm:$0x1]
        %v307 = vld [vmem:[%s263 + $0x8c] sm:$0x1]
        %v308 = vld [vmem:[%s263 + $0x98] sm:$0x1]
        %v309 = vld [vmem:[%s263 + $0xa4] sm:$0x1]
        %v310 = vld [vmem:[%s263 + $0xb0] sm:$0x1]
        %v311 = vld [vmem:[%s263 + $0xbc] sm:$0x1]
        %v344 = vunpack.c.l.b16 %v212
        %v345 = vunpack.c.l.b16 %v213
        %v346 = vunpack.c.l.b16 %v214
        %v347 = vunpack.c.l.b16 %v215
        %v348 = vunpack.c.l.b16 %v216
        %v349 = vunpack.c.l.b16 %v217
        %v350 = vunpack.c.l.b16 %v218
        %v351 = vunpack.c.l.b16 %v219
        %v352 = vunpack.c.l.b16 %v220
        %v353 = vunpack.c.l.b16 %v221
        %v354 = vunpack.c.l.b16 %v222
        %v355 = vunpack.c.l.b16 %v223
        %v356 = vunpack.c.l.b16 %v224
        %v357 = vunpack.c.l.b16 %v225
        %v358 = vunpack.c.l.b16 %v226
        %v359 = vunpack.c.l.b16 %v227
        %v360 = vunpack.c.l.b16 %v228
        %v361 = vunpack.c.l.b16 %v229
        %v362 = vunpack.c.l.b16 %v230
        %v363 = vunpack.c.l.b16 %v231
        %v364 = vunpack.c.l.b16 %v232
        %v365 = vunpack.c.l.b16 %v233
        %v366 = vunpack.c.l.b16 %v234
        %v367 = vunpack.c.l.b16 %v235
        %v368 = vunpack.c.l.b16 %v236
        %v369 = vunpack.c.l.b16 %v237
        %v370 = vunpack.c.l.b16 %v238
        %v371 = vunpack.c.l.b16 %v239
        %v372 = vunpack.c.l.b16 %v240
        %v373 = vunpack.c.l.b16 %v241
        %v374 = vunpack.c.l.b16 %v242
        %v375 = vunpack.c.l.b16 %v243
        %v376 = vpack.c.b16 %v345, %v344
        %v377 = vpack.c.b16 %v347, %v346
        %v378 = vpack.c.b16 %v349, %v348
        %v379 = vpack.c.b16 %v351, %v350
        %v380 = vpack.c.b16 %v353, %v352
        %v381 = vpack.c.b16 %v355, %v354
        %v382 = vpack.c.b16 %v357, %v356
        %v383 = vpack.c.b16 %v359, %v358
        %v384 = vpack.c.b16 %v361, %v360
        %v385 = vpack.c.b16 %v363, %v362
        %v386 = vpack.c.b16 %v365, %v364
        %v387 = vpack.c.b16 %v367, %v366
        %v388 = vpack.c.b16 %v369, %v368
        %v389 = vpack.c.b16 %v371, %v370
        %v390 = vpack.c.b16 %v373, %v372
        %v391 = vpack.c.b16 %v375, %v374
        %v408 = vunpack.c.l.b16 %v244
        %v409 = vunpack.c.l.b16 %v245
        %v410 = vunpack.c.l.b16 %v246
        %v411 = vunpack.c.l.b16 %v247
        %v412 = vunpack.c.l.b16 %v248
        %v413 = vunpack.c.l.b16 %v249
        %v414 = vunpack.c.l.b16 %v250
        %v415 = vunpack.c.l.b16 %v251
        %v416 = vunpack.c.l.b16 %v252
        %v417 = vunpack.c.l.b16 %v253
        %v418 = vunpack.c.l.b16 %v254
        %v419 = vunpack.c.l.b16 %v255
        %v420 = vunpack.c.l.b16 %v256
        %v421 = vunpack.c.l.b16 %v257
        %v422 = vunpack.c.l.b16 %v258
        %v423 = vunpack.c.l.b16 %v259
        %v424 = vpack.c.b16 %v408, %v408
        %v425 = vpack.c.b16 %v409, %v409
        %v426 = vpack.c.b16 %v410, %v410
        %v427 = vpack.c.b16 %v411, %v411
        %v428 = vpack.c.b16 %v412, %v412
        %v429 = vpack.c.b16 %v413, %v413
        %v430 = vpack.c.b16 %v414, %v414
        %v431 = vpack.c.b16 %v415, %v415
        %v432 = vpack.c.b16 %v416, %v416
        %v433 = vpack.c.b16 %v417, %v417
        %v434 = vpack.c.b16 %v418, %v418
        %v435 = vpack.c.b16 %v419, %v419
        %v436 = vpack.c.b16 %v420, %v420
        %v437 = vpack.c.b16 %v421, %v421
        %v438 = vpack.c.b16 %v422, %v422
        %v439 = vpack.c.b16 %v423, %v423
        %vm440 = vsmask.f32 7424
        %v442 = vshrl.u32 %v376, 16
        %v444 = vshll.u32 %v376, 16
        %v446 = vrot.slane %v444, 1
        %v447 = vor.u32 %v442, %v446
        %v449 = vshll.u32 %v424, 16
        %v451 = vrot.slane %v449, 1
        %v452 = vsel %vm440, %v447, %v451
        %v454 = vshrl.u32 %v377, 16
        %v456 = vshll.u32 %v377, 16
        %v458 = vrot.slane %v456, 1
        %v459 = vor.u32 %v454, %v458
        %v461 = vshll.u32 %v425, 16
        %v463 = vrot.slane %v461, 1
        %v464 = vsel %vm440, %v459, %v463
        %v466 = vshrl.u32 %v378, 16
        %v468 = vshll.u32 %v378, 16
        %v470 = vrot.slane %v468, 1
        %v471 = vor.u32 %v466, %v470
        %v473 = vshll.u32 %v426, 16
        %v475 = vrot.slane %v473, 1
        %v476 = vsel %vm440, %v471, %v475
        %v478 = vshrl.u32 %v379, 16
        %v480 = vshll.u32 %v379, 16
        %v482 = vrot.slane %v480, 1
        %v483 = vor.u32 %v478, %v482
        %v485 = vshll.u32 %v427, 16
        %v487 = vrot.slane %v485, 1
        %v488 = vsel %vm440, %v483, %v487
        %v490 = vshrl.u32 %v380, 16
        %v492 = vshll.u32 %v380, 16
        %v494 = vrot.slane %v492, 1
        %v495 = vor.u32 %v490, %v494
        %v497 = vshll.u32 %v428, 16
        %v499 = vrot.slane %v497, 1
        %v500 = vsel %vm440, %v495, %v499
        %v502 = vshrl.u32 %v381, 16
        %v504 = vshll.u32 %v381, 16
        %v506 = vrot.slane %v504, 1
        %v507 = vor.u32 %v502, %v506
        %v509 = vshll.u32 %v429, 16
        %v511 = vrot.slane %v509, 1
        %v512 = vsel %vm440, %v507, %v511
        %v514 = vshrl.u32 %v382, 16
        %v516 = vshll.u32 %v382, 16
        %v518 = vrot.slane %v516, 1
        %v519 = vor.u32 %v514, %v518
        %v521 = vshll.u32 %v430, 16
        %v523 = vrot.slane %v521, 1
        %v524 = vsel %vm440, %v519, %v523
        %v526 = vshrl.u32 %v383, 16
        %v528 = vshll.u32 %v383, 16
        %v530 = vrot.slane %v528, 1
        %v531 = vor.u32 %v526, %v530
        %v533 = vshll.u32 %v431, 16
        %v535 = vrot.slane %v533, 1
        %v536 = vsel %vm440, %v531, %v535
        %v538 = vshrl.u32 %v384, 16
        %v540 = vshll.u32 %v384, 16
        %v542 = vrot.slane %v540, 1
        %v543 = vor.u32 %v538, %v542
        %v545 = vshll.u32 %v432, 16
        %v547 = vrot.slane %v545, 1
        %v548 = vsel %vm440, %v543, %v547
        %v550 = vshrl.u32 %v385, 16
        %v552 = vshll.u32 %v385, 16
        %v554 = vrot.slane %v552, 1
        %v555 = vor.u32 %v550, %v554
        %v557 = vshll.u32 %v433, 16
        %v559 = vrot.slane %v557, 1
        %v560 = vsel %vm440, %v555, %v559
        %v562 = vshrl.u32 %v386, 16
        %v564 = vshll.u32 %v386, 16
        %v566 = vrot.slane %v564, 1
        %v567 = vor.u32 %v562, %v566
        %v569 = vshll.u32 %v434, 16
        %v571 = vrot.slane %v569, 1
        %v572 = vsel %vm440, %v567, %v571
        %v574 = vshrl.u32 %v387, 16
        %v576 = vshll.u32 %v387, 16
        %v578 = vrot.slane %v576, 1
        %v579 = vor.u32 %v574, %v578
        %v581 = vshll.u32 %v435, 16
        %v583 = vrot.slane %v581, 1
        %v584 = vsel %vm440, %v579, %v583
        %v586 = vshrl.u32 %v388, 16
        %v588 = vshll.u32 %v388, 16
        %v590 = vrot.slane %v588, 1
        %v591 = vor.u32 %v586, %v590
        %v593 = vshll.u32 %v436, 16
        %v595 = vrot.slane %v593, 1
        %v596 = vsel %vm440, %v591, %v595
        %v598 = vshrl.u32 %v389, 16
        %v600 = vshll.u32 %v389, 16
        %v602 = vrot.slane %v600, 1
        %v603 = vor.u32 %v598, %v602
        %v605 = vshll.u32 %v437, 16
        %v607 = vrot.slane %v605, 1
        %v608 = vsel %vm440, %v603, %v607
        %v610 = vshrl.u32 %v390, 16
        %v612 = vshll.u32 %v390, 16
        %v614 = vrot.slane %v612, 1
        %v615 = vor.u32 %v610, %v614
        %v617 = vshll.u32 %v438, 16
        %v619 = vrot.slane %v617, 1
        %v620 = vsel %vm440, %v615, %v619
        %v622 = vshrl.u32 %v391, 16
        %v624 = vshll.u32 %v391, 16
        %v626 = vrot.slane %v624, 1
        %v627 = vor.u32 %v622, %v626
        %v629 = vshll.u32 %v439, 16
        %v631 = vrot.slane %v629, 1
        %v632 = vsel %vm440, %v627, %v631
        %633 = vrot.lane.b32.xlu0 %v452, 4
        %v634 = vpop.permute.xlu0 %633
        %635 = vrot.lane.b32.xlu0 %v464, 4
        %v636 = vpop.permute.xlu0 %635
        %637 = vrot.lane.b32.xlu0 %v476, 4
        %v638 = vpop.permute.xlu0 %637
        %639 = vrot.lane.b32.xlu0 %v488, 4
        %v640 = vpop.permute.xlu0 %639
        %641 = vrot.lane.b32.xlu0 %v500, 4
        %v642 = vpop.permute.xlu0 %641
        %643 = vrot.lane.b32.xlu0 %v512, 4
        %v644 = vpop.permute.xlu0 %643
        %645 = vrot.lane.b32.xlu0 %v524, 4
        %v646 = vpop.permute.xlu0 %645
        %647 = vrot.lane.b32.xlu0 %v536, 4
        %v648 = vpop.permute.xlu0 %647
        %649 = vrot.lane.b32.xlu0 %v548, 4
        %v650 = vpop.permute.xlu0 %649
        %651 = vrot.lane.b32.xlu0 %v560, 4
        %v652 = vpop.permute.xlu0 %651
        %653 = vrot.lane.b32.xlu0 %v572, 4
        %v654 = vpop.permute.xlu0 %653
        %655 = vrot.lane.b32.xlu0 %v584, 4
        %v656 = vpop.permute.xlu0 %655
        %657 = vrot.lane.b32.xlu0 %v596, 4
        %v658 = vpop.permute.xlu0 %657
        %659 = vrot.lane.b32.xlu0 %v608, 4
        %v660 = vpop.permute.xlu0 %659
        %661 = vrot.lane.b32.xlu0 %v620, 4
        %v662 = vpop.permute.xlu0 %661
        %663 = vrot.lane.b32.xlu0 %v632, 4
        %v664 = vpop.permute.xlu0 %663
        %v697 = vunpack.c.l.b16 %v264
        %v698 = vunpack.c.l.b16 %v265
        %v699 = vunpack.c.l.b16 %v266
        %v700 = vunpack.c.l.b16 %v267
        %v701 = vunpack.c.l.b16 %v268
        %v702 = vunpack.c.l.b16 %v269
        %v703 = vunpack.c.l.b16 %v270
        %v704 = vunpack.c.l.b16 %v271
        %v705 = vunpack.c.l.b16 %v272
        %v706 = vunpack.c.l.b16 %v273
        %v707 = vunpack.c.l.b16 %v274
        %v708 = vunpack.c.l.b16 %v275
        %v709 = vunpack.c.l.b16 %v276
        %v710 = vunpack.c.l.b16 %v277
        %v711 = vunpack.c.l.b16 %v278
        %v712 = vunpack.c.l.b16 %v279
        %v713 = vunpack.c.l.b16 %v280
        %v714 = vunpack.c.l.b16 %v281
        %v715 = vunpack.c.l.b16 %v282
        %v716 = vunpack.c.l.b16 %v283
        %v717 = vunpack.c.l.b16 %v284
        %v718 = vunpack.c.l.b16 %v285
        %v719 = vunpack.c.l.b16 %v286
        %v720 = vunpack.c.l.b16 %v287
        %v721 = vunpack.c.l.b16 %v288
        %v722 = vunpack.c.l.b16 %v289
        %v723 = vunpack.c.l.b16 %v290
        %v724 = vunpack.c.l.b16 %v291
        %v725 = vunpack.c.l.b16 %v292
        %v726 = vunpack.c.l.b16 %v293
        %v727 = vunpack.c.l.b16 %v294
        %v728 = vunpack.c.l.b16 %v295
        %v729 = vpack.c.b16 %v698, %v697
        %v730 = vpack.c.b16 %v700, %v699
        %v731 = vpack.c.b16 %v702, %v701
        %v732 = vpack.c.b16 %v704, %v703
        %v733 = vpack.c.b16 %v706, %v705
        %v734 = vpack.c.b16 %v708, %v707
        %v735 = vpack.c.b16 %v710, %v709
        %v736 = vpack.c.b16 %v712, %v711
        %v737 = vpack.c.b16 %v714, %v713
        %v738 = vpack.c.b16 %v716, %v715
        %v739 = vpack.c.b16 %v718, %v717
        %v740 = vpack.c.b16 %v720, %v719
        %v741 = vpack.c.b16 %v722, %v721
        %v742 = vpack.c.b16 %v724, %v723
        %v743 = vpack.c.b16 %v726, %v725
        %v744 = vpack.c.b16 %v728, %v727
        %745 = vrot.lane.b32.xlu0 %v729, 8
        %v746 = vpop.permute.xlu0 %745
        %747 = vrot.lane.b32.xlu0 %v730, 8
        %v748 = vpop.permute.xlu0 %747
        %749 = vrot.lane.b32.xlu0 %v731, 8
        %v750 = vpop.permute.xlu0 %749
        %751 = vrot.lane.b32.xlu0 %v732, 8
        %v752 = vpop.permute.xlu0 %751
        %753 = vrot.lane.b32.xlu0 %v733, 8
        %v754 = vpop.permute.xlu0 %753
        %755 = vrot.lane.b32.xlu0 %v734, 8
        %v756 = vpop.permute.xlu0 %755
        %757 = vrot.lane.b32.xlu0 %v735, 8
        %v758 = vpop.permute.xlu0 %757
        %759 = vrot.lane.b32.xlu0 %v736, 8
        %v760 = vpop.permute.xlu0 %759
        %761 = vrot.lane.b32.xlu0 %v737, 8
        %v762 = vpop.permute.xlu0 %761
        %763 = vrot.lane.b32.xlu0 %v738, 8
        %v764 = vpop.permute.xlu0 %763
        %765 = vrot.lane.b32.xlu0 %v739, 8
        %v766 = vpop.permute.xlu0 %765
        %767 = vrot.lane.b32.xlu0 %v740, 8
        %v768 = vpop.permute.xlu0 %767
        %769 = vrot.lane.b32.xlu0 %v741, 8
        %v770 = vpop.permute.xlu0 %769
        %771 = vrot.lane.b32.xlu0 %v742, 8
        %v772 = vpop.permute.xlu0 %771
        %773 = vrot.lane.b32.xlu0 %v743, 8
        %v774 = vpop.permute.xlu0 %773
        %775 = vrot.lane.b32.xlu0 %v744, 8
        %v776 = vpop.permute.xlu0 %775
        %v793 = vunpack.c.l.b16 %v296
        %v794 = vunpack.c.l.b16 %v297
        %v795 = vunpack.c.l.b16 %v298
        %v796 = vunpack.c.l.b16 %v299
        %v797 = vunpack.c.l.b16 %v300
        %v798 = vunpack.c.l.b16 %v301
        %v799 = vunpack.c.l.b16 %v302
        %v800 = vunpack.c.l.b16 %v303
        %v801 = vunpack.c.l.b16 %v304
        %v802 = vunpack.c.l.b16 %v305
        %v803 = vunpack.c.l.b16 %v306
        %v804 = vunpack.c.l.b16 %v307
        %v805 = vunpack.c.l.b16 %v308
        %v806 = vunpack.c.l.b16 %v309
        %v807 = vunpack.c.l.b16 %v310
        %v808 = vunpack.c.l.b16 %v311
        %v809 = vpack.c.b16 %v793, %v793
        %v810 = vpack.c.b16 %v794, %v794
        %v811 = vpack.c.b16 %v795, %v795
        %v812 = vpack.c.b16 %v796, %v796
        %v813 = vpack.c.b16 %v797, %v797
        %v814 = vpack.c.b16 %v798, %v798
        %v815 = vpack.c.b16 %v799, %v799
        %v816 = vpack.c.b16 %v800, %v800
        %v817 = vpack.c.b16 %v801, %v801
        %v818 = vpack.c.b16 %v802, %v802
        %v819 = vpack.c.b16 %v803, %v803
        %v820 = vpack.c.b16 %v804, %v804
        %v821 = vpack.c.b16 %v805, %v805
        %v822 = vpack.c.b16 %v806, %v806
        %v823 = vpack.c.b16 %v807, %v807
        %v824 = vpack.c.b16 %v808, %v808
        %v826 = vshrl.u32 %v729, 16
        %v828 = vshll.u32 %v729, 16
        %v830 = vrot.slane %v828, 1
        %v831 = vor.u32 %v826, %v830
        %v833 = vshll.u32 %v809, 16
        %v835 = vrot.slane %v833, 1
        %v836 = vsel %vm440, %v831, %v835
        %v838 = vshrl.u32 %v730, 16
        %v840 = vshll.u32 %v730, 16
        %v842 = vrot.slane %v840, 1
        %v843 = vor.u32 %v838, %v842
        %v845 = vshll.u32 %v810, 16
        %v847 = vrot.slane %v845, 1
        %v848 = vsel %vm440, %v843, %v847
        %v850 = vshrl.u32 %v731, 16
        %v852 = vshll.u32 %v731, 16
        %v854 = vrot.slane %v852, 1
        %v855 = vor.u32 %v850, %v854
        %v857 = vshll.u32 %v811, 16
        %v859 = vrot.slane %v857, 1
        %v860 = vsel %vm440, %v855, %v859
        %v862 = vshrl.u32 %v732, 16
        %v864 = vshll.u32 %v732, 16
        %v866 = vrot.slane %v864, 1
        %v867 = vor.u32 %v862, %v866
        %v869 = vshll.u32 %v812, 16
        %v871 = vrot.slane %v869, 1
        %v872 = vsel %vm440, %v867, %v871
        %v874 = vshrl.u32 %v733, 16
        %v876 = vshll.u32 %v733, 16
        %v878 = vrot.slane %v876, 1
        %v879 = vor.u32 %v874, %v878
        %v881 = vshll.u32 %v813, 16
        %v883 = vrot.slane %v881, 1
        %v884 = vsel %vm440, %v879, %v883
        %v886 = vshrl.u32 %v734, 16
        %v888 = vshll.u32 %v734, 16
        %v890 = vrot.slane %v888, 1
        %v891 = vor.u32 %v886, %v890
        %v893 = vshll.u32 %v814, 16
        %v895 = vrot.slane %v893, 1
        %v896 = vsel %vm440, %v891, %v895
        %v898 = vshrl.u32 %v735, 16
        %v900 = vshll.u32 %v735, 16
        %v902 = vrot.slane %v900, 1
        %v903 = vor.u32 %v898, %v902
        %v905 = vshll.u32 %v815, 16
        %v907 = vrot.slane %v905, 1
        %v908 = vsel %vm440, %v903, %v907
        %v910 = vshrl.u32 %v736, 16
        %v912 = vshll.u32 %v736, 16
        %v914 = vrot.slane %v912, 1
        %v915 = vor.u32 %v910, %v914
        %v917 = vshll.u32 %v816, 16
        %v919 = vrot.slane %v917, 1
        %v920 = vsel %vm440, %v915, %v919
        %v922 = vshrl.u32 %v737, 16
        %v924 = vshll.u32 %v737, 16
        %v926 = vrot.slane %v924, 1
        %v927 = vor.u32 %v922, %v926
        %v929 = vshll.u32 %v817, 16
        %v931 = vrot.slane %v929, 1
        %v932 = vsel %vm440, %v927, %v931
        %v934 = vshrl.u32 %v738, 16
        %v936 = vshll.u32 %v738, 16
        %v938 = vrot.slane %v936, 1
        %v939 = vor.u32 %v934, %v938
        %v941 = vshll.u32 %v818, 16
        %v943 = vrot.slane %v941, 1
        %v944 = vsel %vm440, %v939, %v943
        %v946 = vshrl.u32 %v739, 16
        %v948 = vshll.u32 %v739, 16
        %v950 = vrot.slane %v948, 1
        %v951 = vor.u32 %v946, %v950
        %v953 = vshll.u32 %v819, 16
        %v955 = vrot.slane %v953, 1
        %v956 = vsel %vm440, %v951, %v955
        %v958 = vshrl.u32 %v740, 16
        %v960 = vshll.u32 %v740, 16
        %v962 = vrot.slane %v960, 1
        %v963 = vor.u32 %v958, %v962
        %v965 = vshll.u32 %v820, 16
        %v967 = vrot.slane %v965, 1
        %v968 = vsel %vm440, %v963, %v967
        %v970 = vshrl.u32 %v741, 16
        %v972 = vshll.u32 %v741, 16
        %v974 = vrot.slane %v972, 1
        %v975 = vor.u32 %v970, %v974
        %v977 = vshll.u32 %v821, 16
        %v979 = vrot.slane %v977, 1
        %v980 = vsel %vm440, %v975, %v979
        %v982 = vshrl.u32 %v742, 16
        %v984 = vshll.u32 %v742, 16
        %v986 = vrot.slane %v984, 1
        %v987 = vor.u32 %v982, %v986
        %v989 = vshll.u32 %v822, 16
        %v991 = vrot.slane %v989, 1
        %v992 = vsel %vm440, %v987, %v991
        %v994 = vshrl.u32 %v743, 16
        %v996 = vshll.u32 %v743, 16
        %v998 = vrot.slane %v996, 1
        %v999 = vor.u32 %v994, %v998
        %v1001 = vshll.u32 %v823, 16
        %v1003 = vrot.slane %v1001, 1
        %v1004 = vsel %vm440, %v999, %v1003
        %v1006 = vshrl.u32 %v744, 16
        %v1008 = vshll.u32 %v744, 16
        %v1010 = vrot.slane %v1008, 1
        %v1011 = vor.u32 %v1006, %v1010
        %v1013 = vshll.u32 %v824, 16
        %v1015 = vrot.slane %v1013, 1
        %v1016 = vsel %vm440, %v1011, %v1015
        %1017 = vrot.lane.b32.xlu0 %v836, 12
        %v1018 = vpop.permute.xlu0 %1017
        %1019 = vrot.lane.b32.xlu0 %v848, 12
        %v1020 = vpop.permute.xlu0 %1019
        %1021 = vrot.lane.b32.xlu0 %v860, 12
        %v1022 = vpop.permute.xlu0 %1021
        %1023 = vrot.lane.b32.xlu0 %v872, 12
        %v1024 = vpop.permute.xlu0 %1023
        %1025 = vrot.lane.b32.xlu0 %v884, 12
        %v1026 = vpop.permute.xlu0 %1025
        %1027 = vrot.lane.b32.xlu0 %v896, 12
        %v1028 = vpop.permute.xlu0 %1027
        %1029 = vrot.lane.b32.xlu0 %v908, 12
        %v1030 = vpop.permute.xlu0 %1029
        %1031 = vrot.lane.b32.xlu0 %v920, 12
        %v1032 = vpop.permute.xlu0 %1031
        %1033 = vrot.lane.b32.xlu0 %v932, 12
        %v1034 = vpop.permute.xlu0 %1033
        %1035 = vrot.lane.b32.xlu0 %v944, 12
        %v1036 = vpop.permute.xlu0 %1035
        %1037 = vrot.lane.b32.xlu0 %v956, 12
        %v1038 = vpop.permute.xlu0 %1037
        %1039 = vrot.lane.b32.xlu0 %v968, 12
        %v1040 = vpop.permute.xlu0 %1039
        %1041 = vrot.lane.b32.xlu0 %v980, 12
        %v1042 = vpop.permute.xlu0 %1041
        %1043 = vrot.lane.b32.xlu0 %v992, 12
        %v1044 = vpop.permute.xlu0 %1043
        %1045 = vrot.lane.b32.xlu0 %v1004, 12
        %v1046 = vpop.permute.xlu0 %1045
        %1047 = vrot.lane.b32.xlu0 %v1016, 12
        %v1048 = vpop.permute.xlu0 %1047
        %vm1049 = vcmask 31744
        %v1051 = vsel %vm1049, %v376, %v634
        %v1053 = vsel %vm1049, %v377, %v636
        %v1055 = vsel %vm1049, %v378, %v638
        %v1057 = vsel %vm1049, %v379, %v640
        %v1059 = vsel %vm1049, %v380, %v642
        %v1061 = vsel %vm1049, %v381, %v644
        %v1063 = vsel %vm1049, %v382, %v646
        %v1065 = vsel %vm1049, %v383, %v648
        %v1067 = vsel %vm1049, %v384, %v650
        %v1069 = vsel %vm1049, %v385, %v652
        %v1071 = vsel %vm1049, %v386, %v654
        %v1073 = vsel %vm1049, %v387, %v656
        %v1075 = vsel %vm1049, %v388, %v658
        %v1077 = vsel %vm1049, %v389, %v660
        %v1079 = vsel %vm1049, %v390, %v662
        %v1081 = vsel %vm1049, %v391, %v664
        %vm1082 = vcmask 64512
        %v1084 = vsel %vm1082, %v1051, %v746
        %v1086 = vsel %vm1082, %v1053, %v748
        %v1088 = vsel %vm1082, %v1055, %v750
        %v1090 = vsel %vm1082, %v1057, %v752
        %v1092 = vsel %vm1082, %v1059, %v754
        %v1094 = vsel %vm1082, %v1061, %v756
        %v1096 = vsel %vm1082, %v1063, %v758
        %v1098 = vsel %vm1082, %v1065, %v760
        %v1100 = vsel %vm1082, %v1067, %v762
        %v1102 = vsel %vm1082, %v1069, %v764
        %v1104 = vsel %vm1082, %v1071, %v766
        %v1106 = vsel %vm1082, %v1073, %v768
        %v1108 = vsel %vm1082, %v1075, %v770
        %v1110 = vsel %vm1082, %v1077, %v772
        %v1112 = vsel %vm1082, %v1079, %v774
        %v1114 = vsel %vm1082, %v1081, %v776
        %vm1115 = vcmask 97280
        %v1117 = vsel %vm1115, %v1084, %v1018
        %v1119 = vsel %vm1115, %v1086, %v1020
        %v1121 = vsel %vm1115, %v1088, %v1022
        %v1123 = vsel %vm1115, %v1090, %v1024
        %v1125 = vsel %vm1115, %v1092, %v1026
        %v1127 = vsel %vm1115, %v1094, %v1028
        %v1129 = vsel %vm1115, %v1096, %v1030
        %v1131 = vsel %vm1115, %v1098, %v1032
        %v1133 = vsel %vm1115, %v1100, %v1034
        %v1135 = vsel %vm1115, %v1102, %v1036
        %v1137 = vsel %vm1115, %v1104, %v1038
        %v1139 = vsel %vm1115, %v1106, %v1040
        %v1141 = vsel %vm1115, %v1108, %v1042
        %v1143 = vsel %vm1115, %v1110, %v1044
        %v1145 = vsel %vm1115, %v1112, %v1046
        %v1147 = vsel %vm1115, %v1114, %v1048
        %v1148 = vld [vmem:[%s1] sm:$0xf]
        %v1149 = vld [vmem:[%s1 + $0x4] sm:$0xf]
        %v1152 = vunpack.c.l.b16 %v1148
        %v1153 = vunpack.c.l.b16 %v1149
        %v1154 = vpack.c.b16 %v1153, %v1152
        %vm1156 = vcmask 130048
        %v1157 = vsel %vm1156, %v1117, 0
        %v1159 = vsel %vm1156, %v1119, 0
        %v1161 = vsel %vm1156, %v1121, 0
        %v1163 = vsel %vm1156, %v1123, 0
        %v1165 = vsel %vm1156, %v1125, 0
        %v1167 = vsel %vm1156, %v1127, 0
        %v1169 = vsel %vm1156, %v1129, 0
        %v1171 = vsel %vm1156, %v1131, 0
        %v1173 = vsel %vm1156, %v1133, 0
        %v1175 = vsel %vm1156, %v1135, 0
        %v1177 = vsel %vm1156, %v1137, 0
        %v1179 = vsel %vm1156, %v1139, 0
        %v1181 = vsel %vm1156, %v1141, 0
        %v1183 = vsel %vm1156, %v1143, 0
        %v1185 = vsel %vm1156, %v1145, 0
        %v1187 = vsel %vm1156, %v1147, 0
        %1189 = vmatpush.bf16.msra.mxu0 0
        %1190 = vmatpush.bf16.msra.mxu0 0
        %1191 = vmatpush.bf16.msra.mxu0 0
        %1192 = vmatpush.bf16.msra.mxu0 0
        %1193 = vmatpush.bf16.msra.mxu0 0
        %1194 = vmatpush.bf16.msra.mxu0 0
        %1195 = vmatpush.bf16.msra.mxu0 0
        %1196 = vmatpush.bf16.msra.mxu0 %v1154
        %1197 = vmatmul.bf16.gmra.mxu0 %v1157
        %v1198 = vpop.f32.mrf.mxu0
        %v1199 = vadd.f32 0.0, %v1198
        %v1200 = vpop.f32.mrf.mxu0
        %v1201 = vadd.f32 0.0, %v1200
        %1202 = vmatmul.bf16.gmra.mxu0 %v1159
        %v1203 = vpop.f32.mrf.mxu0
        %v1204 = vadd.f32 0.0, %v1203
        %v1205 = vpop.f32.mrf.mxu0
        %v1206 = vadd.f32 0.0, %v1205
        %1207 = vmatmul.bf16.gmra.mxu0 %v1161
        %v1208 = vpop.f32.mrf.mxu0
        %v1209 = vadd.f32 0.0, %v1208
        %v1210 = vpop.f32.mrf.mxu0
        %v1211 = vadd.f32 0.0, %v1210
        %1212 = vmatmul.bf16.gmra.mxu0 %v1163
        %v1213 = vpop.f32.mrf.mxu0
        %v1214 = vadd.f32 0.0, %v1213
        %v1215 = vpop.f32.mrf.mxu0
        %v1216 = vadd.f32 0.0, %v1215
        %1217 = vmatmul.bf16.gmra.mxu0 %v1165
        %v1218 = vpop.f32.mrf.mxu0
        %v1219 = vadd.f32 0.0, %v1218
        %v1220 = vpop.f32.mrf.mxu0
        %v1221 = vadd.f32 0.0, %v1220
        %1222 = vmatmul.bf16.gmra.mxu0 %v1167
        %v1223 = vpop.f32.mrf.mxu0
        %v1224 = vadd.f32 0.0, %v1223
        %v1225 = vpop.f32.mrf.mxu0
        %v1226 = vadd.f32 0.0, %v1225
        %1227 = vmatmul.bf16.gmra.mxu0 %v1169
        %v1228 = vpop.f32.mrf.mxu0
        %v1229 = vadd.f32 0.0, %v1228
        %v1230 = vpop.f32.mrf.mxu0
        %v1231 = vadd.f32 0.0, %v1230
        %1232 = vmatmul.bf16.gmra.mxu0 %v1171
        %v1233 = vpop.f32.mrf.mxu0
        %v1234 = vadd.f32 0.0, %v1233
        %v1235 = vpop.f32.mrf.mxu0
        %v1236 = vadd.f32 0.0, %v1235
        %1237 = vmatmul.bf16.gmra.mxu0 %v1173
        %v1238 = vpop.f32.mrf.mxu0
        %v1239 = vadd.f32 0.0, %v1238
        %v1240 = vpop.f32.mrf.mxu0
        %v1241 = vadd.f32 0.0, %v1240
        %1242 = vmatmul.bf16.gmra.mxu0 %v1175
        %v1243 = vpop.f32.mrf.mxu0
        %v1244 = vadd.f32 0.0, %v1243
        %v1245 = vpop.f32.mrf.mxu0
        %v1246 = vadd.f32 0.0, %v1245
        %1247 = vmatmul.bf16.gmra.mxu0 %v1177
        %v1248 = vpop.f32.mrf.mxu0
        %v1249 = vadd.f32 0.0, %v1248
        %v1250 = vpop.f32.mrf.mxu0
        %v1251 = vadd.f32 0.0, %v1250
        %1252 = vmatmul.bf16.gmra.mxu0 %v1179
        %v1253 = vpop.f32.mrf.mxu0
        %v1254 = vadd.f32 0.0, %v1253
        %v1255 = vpop.f32.mrf.mxu0
        %v1256 = vadd.f32 0.0, %v1255
        %1257 = vmatmul.bf16.gmra.mxu0 %v1181
        %v1258 = vpop.f32.mrf.mxu0
        %v1259 = vadd.f32 0.0, %v1258
        %v1260 = vpop.f32.mrf.mxu0
        %v1261 = vadd.f32 0.0, %v1260
        %1262 = vmatmul.bf16.gmra.mxu0 %v1183
        %v1263 = vpop.f32.mrf.mxu0
        %v1264 = vadd.f32 0.0, %v1263
        %v1265 = vpop.f32.mrf.mxu0
        %v1266 = vadd.f32 0.0, %v1265
        %1267 = vmatmul.bf16.gmra.mxu0 %v1185
        %v1268 = vpop.f32.mrf.mxu0
        %v1269 = vadd.f32 0.0, %v1268
        %v1270 = vpop.f32.mrf.mxu0
        %v1271 = vadd.f32 0.0, %v1270
        %1272 = vmatmul.bf16.gmra.mxu0 %v1187
        %v1273 = vpop.f32.mrf.mxu0
        %v1274 = vadd.f32 0.0, %v1273
        %v1275 = vpop.f32.mrf.mxu0
        %v1276 = vadd.f32 0.0, %v1275
        %1277 = vdwg.mxu0
        %1278 = vst.msk [vmem:[%s205] sm:$0xff] %vm1082, %v1199
        %1279 = vst.msk [vmem:[%s205 + $0x8] sm:$0xff] %vm1082, %v1201
        %1280 = vst.msk [vmem:[%s205 + $0x10] sm:$0xff] %vm1082, %v1204
        %1281 = vst.msk [vmem:[%s205 + $0x18] sm:$0xff] %vm1082, %v1206
        %1282 = vst.msk [vmem:[%s205 + $0x20] sm:$0xff] %vm1082, %v1209
        %1283 = vst.msk [vmem:[%s205 + $0x28] sm:$0xff] %vm1082, %v1211
        %1284 = vst.msk [vmem:[%s205 + $0x30] sm:$0xff] %vm1082, %v1214
        %1285 = vst.msk [vmem:[%s205 + $0x38] sm:$0xff] %vm1082, %v1216
        %1286 = vst.msk [vmem:[%s205 + $0x40] sm:$0xff] %vm1082, %v1219
        %1287 = vst.msk [vmem:[%s205 + $0x48] sm:$0xff] %vm1082, %v1221
        %1288 = vst.msk [vmem:[%s205 + $0x50] sm:$0xff] %vm1082, %v1224
        %1289 = vst.msk [vmem:[%s205 + $0x58] sm:$0xff] %vm1082, %v1226
        %1290 = vst.msk [vmem:[%s205 + $0x60] sm:$0xff] %vm1082, %v1229
        %1291 = vst.msk [vmem:[%s205 + $0x68] sm:$0xff] %vm1082, %v1231
        %1292 = vst.msk [vmem:[%s205 + $0x70] sm:$0xff] %vm1082, %v1234
        %1293 = vst.msk [vmem:[%s205 + $0x78] sm:$0xff] %vm1082, %v1236
        %1294 = vst.msk [vmem:[%s205 + $0x80] sm:$0xff] %vm1082, %v1239
        %1295 = vst.msk [vmem:[%s205 + $0x88] sm:$0xff] %vm1082, %v1241
        %1296 = vst.msk [vmem:[%s205 + $0x90] sm:$0xff] %vm1082, %v1244
        %1297 = vst.msk [vmem:[%s205 + $0x98] sm:$0xff] %vm1082, %v1246
        %1298 = vst.msk [vmem:[%s205 + $0xa0] sm:$0xff] %vm1082, %v1249
        %1299 = vst.msk [vmem:[%s205 + $0xa8] sm:$0xff] %vm1082, %v1251
        %1300 = vst.msk [vmem:[%s205 + $0xb0] sm:$0xff] %vm1082, %v1254
        %1301 = vst.msk [vmem:[%s205 + $0xb8] sm:$0xff] %vm1082, %v1256
        %1302 = vst.msk [vmem:[%s205 + $0xc0] sm:$0xff] %vm1082, %v1259
        %1303 = vst.msk [vmem:[%s205 + $0xc8] sm:$0xff] %vm1082, %v1261
        %1304 = vst.msk [vmem:[%s205 + $0xd0] sm:$0xff] %vm1082, %v1264
        %1305 = vst.msk [vmem:[%s205 + $0xd8] sm:$0xff] %vm1082, %v1266
        %1306 = vst.msk [vmem:[%s205 + $0xe0] sm:$0xff] %vm1082, %v1269
        %1307 = vst.msk [vmem:[%s205 + $0xe8] sm:$0xff] %vm1082, %v1271
        %1308 = vst.msk [vmem:[%s205 + $0xf0] sm:$0xff] %vm1082, %v1274
        %1309 = vst.msk [vmem:[%s205 + $0xf8] sm:$0xff] %vm1082, %v1276
        %v1310 = vsel %vm1082, %v1199, 0.0
        %v1311 = vsel %vm1082, %v1201, 0.0
        %v1312 = vadd.f32 %v1310, %v1311
        %v1313 = vsel %vm1082, %v1204, 0.0
        %v1314 = vadd.f32 %v1312, %v1313
        %v1315 = vsel %vm1082, %v1206, 0.0
        %v1316 = vadd.f32 %v1314, %v1315
        %v1317 = vsel %vm1082, %v1209, 0.0
        %v1318 = vadd.f32 %v1316, %v1317
        %v1319 = vsel %vm1082, %v1211, 0.0
        %v1320 = vadd.f32 %v1318, %v1319
        %v1321 = vsel %vm1082, %v1214, 0.0
        %v1322 = vadd.f32 %v1320, %v1321
        %v1323 = vsel %vm1082, %v1216, 0.0
        %v1324 = vadd.f32 %v1322, %v1323
        %v1325 = vsel %vm1082, %v1219, 0.0
        %v1326 = vadd.f32 %v1324, %v1325
        %v1327 = vsel %vm1082, %v1221, 0.0
        %v1328 = vadd.f32 %v1326, %v1327
        %v1329 = vsel %vm1082, %v1224, 0.0
        %v1330 = vadd.f32 %v1328, %v1329
        %v1331 = vsel %vm1082, %v1226, 0.0
        %v1332 = vadd.f32 %v1330, %v1331
        %v1333 = vsel %vm1082, %v1229, 0.0
        %v1334 = vadd.f32 %v1332, %v1333
        %v1335 = vsel %vm1082, %v1231, 0.0
        %v1336 = vadd.f32 %v1334, %v1335
        %v1337 = vsel %vm1082, %v1234, 0.0
        %v1338 = vadd.f32 %v1336, %v1337
        %v1339 = vsel %vm1082, %v1236, 0.0
        %v1340 = vadd.f32 %v1338, %v1339
        %v1341 = vsel %vm1082, %v1239, 0.0
        %v1342 = vadd.f32 %v1340, %v1341
        %v1343 = vsel %vm1082, %v1241, 0.0
        %v1344 = vadd.f32 %v1342, %v1343
        %v1345 = vsel %vm1082, %v1244, 0.0
        %v1346 = vadd.f32 %v1344, %v1345
        %v1347 = vsel %vm1082, %v1246, 0.0
        %v1348 = vadd.f32 %v1346, %v1347
        %v1349 = vsel %vm1082, %v1249, 0.0
        %v1350 = vadd.f32 %v1348, %v1349
        %v1351 = vsel %vm1082, %v1251, 0.0
        %v1352 = vadd.f32 %v1350, %v1351
        %v1353 = vsel %vm1082, %v1254, 0.0
        %v1354 = vadd.f32 %v1352, %v1353
        %v1355 = vsel %vm1082, %v1256, 0.0
        %v1356 = vadd.f32 %v1354, %v1355
        %v1357 = vsel %vm1082, %v1259, 0.0
        %v1358 = vadd.f32 %v1356, %v1357
        %v1359 = vsel %vm1082, %v1261, 0.0
        %v1360 = vadd.f32 %v1358, %v1359
        %v1361 = vsel %vm1082, %v1264, 0.0
        %v1362 = vadd.f32 %v1360, %v1361
        %v1363 = vsel %vm1082, %v1266, 0.0
        %v1364 = vadd.f32 %v1362, %v1363
        %v1365 = vsel %vm1082, %v1269, 0.0
        %v1366 = vadd.f32 %v1364, %v1365
        %v1367 = vsel %vm1082, %v1271, 0.0
        %v1368 = vadd.f32 %v1366, %v1367
        %v1369 = vsel %vm1082, %v1274, 0.0
        %v1370 = vadd.f32 %v1368, %v1369
        %v1371 = vsel %vm1082, %v1276, 0.0
        %v1372 = vadd.f32 %v1370, %v1371
        %v1373 = vrot.slane %v1372, 4
        %v1374 = vadd.f32 %v1372, %v1373
        %v1375 = vrot.slane %v1374, 2
        %v1376 = vadd.f32 %v1374, %v1375
        %v1377 = vrot.slane %v1376, 1
        %v1378 = vadd.f32 %v1376, %v1377
        %v1379 = vadd.f32 %v1378, 0.0
        %v1380 = vmul.f32 %v1199, %v1199
        %v1381 = vmul.f32 %v1201, %v1201
        %v1382 = vmul.f32 %v1204, %v1204
        %v1383 = vmul.f32 %v1206, %v1206
        %v1384 = vmul.f32 %v1209, %v1209
        %v1385 = vmul.f32 %v1211, %v1211
        %v1386 = vmul.f32 %v1214, %v1214
        %v1387 = vmul.f32 %v1216, %v1216
        %v1388 = vmul.f32 %v1219, %v1219
        %v1389 = vmul.f32 %v1221, %v1221
        %v1390 = vmul.f32 %v1224, %v1224
        %v1391 = vmul.f32 %v1226, %v1226
        %v1392 = vmul.f32 %v1229, %v1229
        %v1393 = vmul.f32 %v1231, %v1231
        %v1394 = vmul.f32 %v1234, %v1234
        %v1395 = vmul.f32 %v1236, %v1236
        %v1396 = vmul.f32 %v1239, %v1239
        %v1397 = vmul.f32 %v1241, %v1241
        %v1398 = vmul.f32 %v1244, %v1244
        %v1399 = vmul.f32 %v1246, %v1246
        %v1400 = vmul.f32 %v1249, %v1249
        %v1401 = vmul.f32 %v1251, %v1251
        %v1402 = vmul.f32 %v1254, %v1254
        %v1403 = vmul.f32 %v1256, %v1256
        %v1404 = vmul.f32 %v1259, %v1259
        %v1405 = vmul.f32 %v1261, %v1261
        %v1406 = vmul.f32 %v1264, %v1264
        %v1407 = vmul.f32 %v1266, %v1266
        %v1408 = vmul.f32 %v1269, %v1269
        %v1409 = vmul.f32 %v1271, %v1271
        %v1410 = vmul.f32 %v1274, %v1274
        %v1411 = vmul.f32 %v1276, %v1276
        %v1412 = vsel %vm1082, %v1380, 0.0
        %v1413 = vsel %vm1082, %v1381, 0.0
        %v1414 = vadd.f32 %v1412, %v1413
        %v1415 = vsel %vm1082, %v1382, 0.0
        %v1416 = vadd.f32 %v1414, %v1415
        %v1417 = vsel %vm1082, %v1383, 0.0
        %v1418 = vadd.f32 %v1416, %v1417
        %v1419 = vsel %vm1082, %v1384, 0.0
        %v1420 = vadd.f32 %v1418, %v1419
        %v1421 = vsel %vm1082, %v1385, 0.0
        %v1422 = vadd.f32 %v1420, %v1421
        %v1423 = vsel %vm1082, %v1386, 0.0
        %v1424 = vadd.f32 %v1422, %v1423
        %v1425 = vsel %vm1082, %v1387, 0.0
        %v1426 = vadd.f32 %v1424, %v1425
        %v1427 = vsel %vm1082, %v1388, 0.0
        %v1428 = vadd.f32 %v1426, %v1427
        %v1429 = vsel %vm1082, %v1389, 0.0
        %v1430 = vadd.f32 %v1428, %v1429
        %v1431 = vsel %vm1082, %v1390, 0.0
        %v1432 = vadd.f32 %v1430, %v1431
        %v1433 = vsel %vm1082, %v1391, 0.0
        %v1434 = vadd.f32 %v1432, %v1433
        %v1435 = vsel %vm1082, %v1392, 0.0
        %v1436 = vadd.f32 %v1434, %v1435
        %v1437 = vsel %vm1082, %v1393, 0.0
        %v1438 = vadd.f32 %v1436, %v1437
        %v1439 = vsel %vm1082, %v1394, 0.0
        %v1440 = vadd.f32 %v1438, %v1439
        %v1441 = vsel %vm1082, %v1395, 0.0
        %v1442 = vadd.f32 %v1440, %v1441
        %v1443 = vsel %vm1082, %v1396, 0.0
        %v1444 = vadd.f32 %v1442, %v1443
        %v1445 = vsel %vm1082, %v1397, 0.0
        %v1446 = vadd.f32 %v1444, %v1445
        %v1447 = vsel %vm1082, %v1398, 0.0
        %v1448 = vadd.f32 %v1446, %v1447
        %v1449 = vsel %vm1082, %v1399, 0.0
        %v1450 = vadd.f32 %v1448, %v1449
        %v1451 = vsel %vm1082, %v1400, 0.0
        %v1452 = vadd.f32 %v1450, %v1451
        %v1453 = vsel %vm1082, %v1401, 0.0
        %v1454 = vadd.f32 %v1452, %v1453
        %v1455 = vsel %vm1082, %v1402, 0.0
        %v1456 = vadd.f32 %v1454, %v1455
        %v1457 = vsel %vm1082, %v1403, 0.0
        %v1458 = vadd.f32 %v1456, %v1457
        %v1459 = vsel %vm1082, %v1404, 0.0
        %v1460 = vadd.f32 %v1458, %v1459
        %v1461 = vsel %vm1082, %v1405, 0.0
        %v1462 = vadd.f32 %v1460, %v1461
        %v1463 = vsel %vm1082, %v1406, 0.0
        %v1464 = vadd.f32 %v1462, %v1463
        %v1465 = vsel %vm1082, %v1407, 0.0
        %v1466 = vadd.f32 %v1464, %v1465
        %v1467 = vsel %vm1082, %v1408, 0.0
        %v1468 = vadd.f32 %v1466, %v1467
        %v1469 = vsel %vm1082, %v1409, 0.0
        %v1470 = vadd.f32 %v1468, %v1469
        %v1471 = vsel %vm1082, %v1410, 0.0
        %v1472 = vadd.f32 %v1470, %v1471
        %v1473 = vsel %vm1082, %v1411, 0.0
        %v1474 = vadd.f32 %v1472, %v1473
        %v1475 = vrot.slane %v1474, 4
        %v1476 = vadd.f32 %v1474, %v1475
        %v1477 = vrot.slane %v1476, 2
        %v1478 = vadd.f32 %v1476, %v1477
        %v1479 = vrot.slane %v1478, 1
        %v1480 = vadd.f32 %v1478, %v1479
        %v1481 = vadd.f32 %v1480, 0.0
        %v1482 = vld [vmem:[%s211] sm:$0xf]
        %v1483 = vld [vmem:[%s211 + $0x4] sm:$0xf]
        %v1484 = vld [vmem:[%s211 + $0x8] sm:$0x1]
        %v1485 = vld [vmem:[%s211 + $0xc] sm:$0xf]
        %v1486 = vld [vmem:[%s211 + $0x10] sm:$0xf]
        %v1487 = vld [vmem:[%s211 + $0x14] sm:$0x1]
        %v1488 = vld [vmem:[%s211 + $0x18] sm:$0xf]
        %v1489 = vld [vmem:[%s211 + $0x1c] sm:$0xf]
        %v1490 = vld [vmem:[%s211 + $0x20] sm:$0x1]
        %v1491 = vld [vmem:[%s211 + $0x24] sm:$0xf]
        %v1492 = vld [vmem:[%s211 + $0x28] sm:$0xf]
        %v1493 = vld [vmem:[%s211 + $0x2c] sm:$0x1]
        %v1494 = vld [vmem:[%s211 + $0x30] sm:$0xf]
        %v1495 = vld [vmem:[%s211 + $0x34] sm:$0xf]
        %v1496 = vld [vmem:[%s211 + $0x38] sm:$0x1]
        %v1497 = vld [vmem:[%s211 + $0x3c] sm:$0xf]
        %v1498 = vld [vmem:[%s211 + $0x40] sm:$0xf]
        %v1499 = vld [vmem:[%s211 + $0x44] sm:$0x1]
        %v1500 = vld [vmem:[%s211 + $0x48] sm:$0xf]
        %v1501 = vld [vmem:[%s211 + $0x4c] sm:$0xf]
        %v1502 = vld [vmem:[%s211 + $0x50] sm:$0x1]
        %v1503 = vld [vmem:[%s211 + $0x54] sm:$0xf]
        %v1504 = vld [vmem:[%s211 + $0x58] sm:$0xf]
        %v1505 = vld [vmem:[%s211 + $0x5c] sm:$0x1]
        %v1506 = vld [vmem:[%s211 + $0x60] sm:$0xf]
        %v1507 = vld [vmem:[%s211 + $0x64] sm:$0xf]
        %v1508 = vld [vmem:[%s211 + $0x68] sm:$0x1]
        %v1509 = vld [vmem:[%s211 + $0x6c] sm:$0xf]
        %v1510 = vld [vmem:[%s211 + $0x70] sm:$0xf]
        %v1511 = vld [vmem:[%s211 + $0x74] sm:$0x1]
        %v1512 = vld [vmem:[%s211 + $0x78] sm:$0xf]
        %v1513 = vld [vmem:[%s211 + $0x7c] sm:$0xf]
        %v1514 = vld [vmem:[%s211 + $0x80] sm:$0x1]
        %v1515 = vld [vmem:[%s211 + $0x84] sm:$0xf]
        %v1516 = vld [vmem:[%s211 + $0x88] sm:$0xf]
        %v1517 = vld [vmem:[%s211 + $0x8c] sm:$0x1]
        %v1518 = vld [vmem:[%s211 + $0x90] sm:$0xf]
        %v1519 = vld [vmem:[%s211 + $0x94] sm:$0xf]
        %v1520 = vld [vmem:[%s211 + $0x98] sm:$0x1]
        %v1521 = vld [vmem:[%s211 + $0x9c] sm:$0xf]
        %v1522 = vld [vmem:[%s211 + $0xa0] sm:$0xf]
        %v1523 = vld [vmem:[%s211 + $0xa4] sm:$0x1]
        %v1524 = vld [vmem:[%s211 + $0xa8] sm:$0xf]
        %v1525 = vld [vmem:[%s211 + $0xac] sm:$0xf]
        %v1526 = vld [vmem:[%s211 + $0xb0] sm:$0x1]
        %v1527 = vld [vmem:[%s211 + $0xb4] sm:$0xf]
        %v1528 = vld [vmem:[%s211 + $0xb8] sm:$0xf]
        %v1529 = vld [vmem:[%s211 + $0xbc] sm:$0x1]
        %v1530 = vld [vmem:[%s211] sm:$0xe]
        %v1531 = vld [vmem:[%s211 + $0xc] sm:$0xe]
        %v1532 = vld [vmem:[%s211 + $0x18] sm:$0xe]
        %v1533 = vld [vmem:[%s211 + $0x24] sm:$0xe]
        %v1534 = vld [vmem:[%s211 + $0x30] sm:$0xe]
        %v1535 = vld [vmem:[%s211 + $0x3c] sm:$0xe]
        %v1536 = vld [vmem:[%s211 + $0x48] sm:$0xe]
        %v1537 = vld [vmem:[%s211 + $0x54] sm:$0xe]
        %v1538 = vld [vmem:[%s211 + $0x60] sm:$0xe]
        %v1539 = vld [vmem:[%s211 + $0x6c] sm:$0xe]
        %v1540 = vld [vmem:[%s211 + $0x78] sm:$0xe]
        %v1541 = vld [vmem:[%s211 + $0x84] sm:$0xe]
        %v1542 = vld [vmem:[%s211 + $0x90] sm:$0xe]
        %v1543 = vld [vmem:[%s211 + $0x9c] sm:$0xe]
        %v1544 = vld [vmem:[%s211 + $0xa8] sm:$0xe]
        %v1545 = vld [vmem:[%s211 + $0xb4] sm:$0xe]
        %v1546 = vld [vmem:[%s263] sm:$0xf]
        %v1547 = vld [vmem:[%s263 + $0x4] sm:$0xf]
        %v1548 = vld [vmem:[%s263 + $0x8] sm:$0x1]
        %v1549 = vld [vmem:[%s263 + $0xc] sm:$0xf]
        %v1550 = vld [vmem:[%s263 + $0x10] sm:$0xf]
        %v1551 = vld [vmem:[%s263 + $0x14] sm:$0x1]
        %v1552 = vld [vmem:[%s263 + $0x18] sm:$0xf]
        %v1553 = vld [vmem:[%s263 + $0x1c] sm:$0xf]
        %v1554 = vld [vmem:[%s263 + $0x20] sm:$0x1]
        %v1555 = vld [vmem:[%s263 + $0x24] sm:$0xf]
        %v1556 = vld [vmem:[%s263 + $0x28] sm:$0xf]
        %v1557 = vld [vmem:[%s263 + $0x2c] sm:$0x1]
        %v1558 = vld [vmem:[%s263 + $0x30] sm:$0xf]
        %v1559 = vld [vmem:[%s263 + $0x34] sm:$0xf]
        %v1560 = vld [vmem:[%s263 + $0x38] sm:$0x1]
        %v1561 = vld [vmem:[%s263 + $0x3c] sm:$0xf]
        %v1562 = vld [vmem:[%s263 + $0x40] sm:$0xf]
        %v1563 = vld [vmem:[%s263 + $0x44] sm:$0x1]
        %v1564 = vld [vmem:[%s263 + $0x48] sm:$0xf]
        %v1565 = vld [vmem:[%s263 + $0x4c] sm:$0xf]
        %v1566 = vld [vmem:[%s263 + $0x50] sm:$0x1]
        %v1567 = vld [vmem:[%s263 + $0x54] sm:$0xf]
        %v1568 = vld [vmem:[%s263 + $0x58] sm:$0xf]
        %v1569 = vld [vmem:[%s263 + $0x5c] sm:$0x1]
        %v1570 = vld [vmem:[%s263 + $0x60] sm:$0xf]
        %v1571 = vld [vmem:[%s263 + $0x64] sm:$0xf]
        %v1572 = vld [vmem:[%s263 + $0x68] sm:$0x1]
        %v1573 = vld [vmem:[%s263 + $0x6c] sm:$0xf]
        %v1574 = vld [vmem:[%s263 + $0x70] sm:$0xf]
        %v1575 = vld [vmem:[%s263 + $0x74] sm:$0x1]
        %v1576 = vld [vmem:[%s263 + $0x78] sm:$0xf]
        %v1577 = vld [vmem:[%s263 + $0x7c] sm:$0xf]
        %v1578 = vld [vmem:[%s263 + $0x80] sm:$0x1]
        %v1579 = vld [vmem:[%s263 + $0x84] sm:$0xf]
        %v1580 = vld [vmem:[%s263 + $0x88] sm:$0xf]
        %v1581 = vld [vmem:[%s263 + $0x8c] sm:$0x1]
        %v1582 = vld [vmem:[%s263 + $0x90] sm:$0xf]
        %v1583 = vld [vmem:[%s263 + $0x94] sm:$0xf]
        %v1584 = vld [vmem:[%s263 + $0x98] sm:$0x1]
        %v1585 = vld [vmem:[%s263 + $0x9c] sm:$0xf]
        %v1586 = vld [vmem:[%s263 + $0xa0] sm:$0xf]
        %v1587 = vld [vmem:[%s263 + $0xa4] sm:$0x1]
        %v1588 = vld [vmem:[%s263 + $0xa8] sm:$0xf]
        %v1589 = vld [vmem:[%s263 + $0xac] sm:$0xf]
        %v1590 = vld [vmem:[%s263 + $0xb0] sm:$0x1]
        %v1591 = vld [vmem:[%s263 + $0xb4] sm:$0xf]
        %v1592 = vld [vmem:[%s263 + $0xb8] sm:$0xf]
        %v1593 = vld [vmem:[%s263 + $0xbc] sm:$0x1]
        %v1594 = vld [vmem:[%s263] sm:$0xe]
        %v1595 = vld [vmem:[%s263 + $0xc] sm:$0xe]
        %v1596 = vld [vmem:[%s263 + $0x18] sm:$0xe]
        %v1597 = vld [vmem:[%s263 + $0x24] sm:$0xe]
        %v1598 = vld [vmem:[%s263 + $0x30] sm:$0xe]
        %v1599 = vld [vmem:[%s263 + $0x3c] sm:$0xe]
        %v1600 = vld [vmem:[%s263 + $0x48] sm:$0xe]
        %v1601 = vld [vmem:[%s263 + $0x54] sm:$0xe]
        %v1602 = vld [vmem:[%s263 + $0x60] sm:$0xe]
        %v1603 = vld [vmem:[%s263 + $0x6c] sm:$0xe]
        %v1604 = vld [vmem:[%s263 + $0x78] sm:$0xe]
        %v1605 = vld [vmem:[%s263 + $0x84] sm:$0xe]
        %v1606 = vld [vmem:[%s263 + $0x90] sm:$0xe]
        %v1607 = vld [vmem:[%s263 + $0x9c] sm:$0xe]
        %v1608 = vld [vmem:[%s263 + $0xa8] sm:$0xe]
        %v1609 = vld [vmem:[%s263 + $0xb4] sm:$0xe]
        %v1658 = vunpack.c.l.b16 %v1482
        %v1659 = vunpack.c.l.b16 %v1483
        %v1660 = vunpack.c.l.b16 %v1484
        %v1661 = vunpack.c.l.b16 %v1485
        %v1662 = vunpack.c.l.b16 %v1486
        %v1663 = vunpack.c.l.b16 %v1487
        %v1664 = vunpack.c.l.b16 %v1488
        %v1665 = vunpack.c.l.b16 %v1489
        %v1666 = vunpack.c.l.b16 %v1490
        %v1667 = vunpack.c.l.b16 %v1491
        %v1668 = vunpack.c.l.b16 %v1492
        %v1669 = vunpack.c.l.b16 %v1493
        %v1670 = vunpack.c.l.b16 %v1494
        %v1671 = vunpack.c.l.b16 %v1495
        %v1672 = vunpack.c.l.b16 %v1496
        %v1673 = vunpack.c.l.b16 %v1497
        %v1674 = vunpack.c.l.b16 %v1498
        %v1675 = vunpack.c.l.b16 %v1499
        %v1676 = vunpack.c.l.b16 %v1500
        %v1677 = vunpack.c.l.b16 %v1501
        %v1678 = vunpack.c.l.b16 %v1502
        %v1679 = vunpack.c.l.b16 %v1503
        %v1680 = vunpack.c.l.b16 %v1504
        %v1681 = vunpack.c.l.b16 %v1505
        %v1682 = vunpack.c.l.b16 %v1506
        %v1683 = vunpack.c.l.b16 %v1507
        %v1684 = vunpack.c.l.b16 %v1508
        %v1685 = vunpack.c.l.b16 %v1509
        %v1686 = vunpack.c.l.b16 %v1510
        %v1687 = vunpack.c.l.b16 %v1511
        %v1688 = vunpack.c.l.b16 %v1512
        %v1689 = vunpack.c.l.b16 %v1513
        %v1690 = vunpack.c.l.b16 %v1514
        %v1691 = vunpack.c.l.b16 %v1515
        %v1692 = vunpack.c.l.b16 %v1516
        %v1693 = vunpack.c.l.b16 %v1517
        %v1694 = vunpack.c.l.b16 %v1518
        %v1695 = vunpack.c.l.b16 %v1519
        %v1696 = vunpack.c.l.b16 %v1520
        %v1697 = vunpack.c.l.b16 %v1521
        %v1698 = vunpack.c.l.b16 %v1522
        %v1699 = vunpack.c.l.b16 %v1523
        %v1700 = vunpack.c.l.b16 %v1524
        %v1701 = vunpack.c.l.b16 %v1525
        %v1702 = vunpack.c.l.b16 %v1526
        %v1703 = vunpack.c.l.b16 %v1527
        %v1704 = vunpack.c.l.b16 %v1528
        %v1705 = vunpack.c.l.b16 %v1529
        %v1706 = vpack.c.b16 %v1659, %v1658
        %v1707 = vpack.c.b16 %v1660, %v1660
        %v1708 = vpack.c.b16 %v1662, %v1661
        %v1709 = vpack.c.b16 %v1663, %v1663
        %v1710 = vpack.c.b16 %v1665, %v1664
        %v1711 = vpack.c.b16 %v1666, %v1666
        %v1712 = vpack.c.b16 %v1668, %v1667
        %v1713 = vpack.c.b16 %v1669, %v1669
        %v1714 = vpack.c.b16 %v1671, %v1670
        %v1715 = vpack.c.b16 %v1672, %v1672
        %v1716 = vpack.c.b16 %v1674, %v1673
        %v1717 = vpack.c.b16 %v1675, %v1675
        %v1718 = vpack.c.b16 %v1677, %v1676
        %v1719 = vpack.c.b16 %v1678, %v1678
        %v1720 = vpack.c.b16 %v1680, %v1679
        %v1721 = vpack.c.b16 %v1681, %v1681
        %v1722 = vpack.c.b16 %v1683, %v1682
        %v1723 = vpack.c.b16 %v1684, %v1684
        %v1724 = vpack.c.b16 %v1686, %v1685
        %v1725 = vpack.c.b16 %v1687, %v1687
        %v1726 = vpack.c.b16 %v1689, %v1688
        %v1727 = vpack.c.b16 %v1690, %v1690
        %v1728 = vpack.c.b16 %v1692, %v1691
        %v1729 = vpack.c.b16 %v1693, %v1693
        %v1730 = vpack.c.b16 %v1695, %v1694
        %v1731 = vpack.c.b16 %v1696, %v1696
        %v1732 = vpack.c.b16 %v1698, %v1697
        %v1733 = vpack.c.b16 %v1699, %v1699
        %v1734 = vpack.c.b16 %v1701, %v1700
        %v1735 = vpack.c.b16 %v1702, %v1702
        %v1736 = vpack.c.b16 %v1704, %v1703
        %v1737 = vpack.c.b16 %v1705, %v1705
        %v1754 = vunpack.c.l.b16 %v1530
        %v1755 = vunpack.c.l.b16 %v1531
        %v1756 = vunpack.c.l.b16 %v1532
        %v1757 = vunpack.c.l.b16 %v1533
        %v1758 = vunpack.c.l.b16 %v1534
        %v1759 = vunpack.c.l.b16 %v1535
        %v1760 = vunpack.c.l.b16 %v1536
        %v1761 = vunpack.c.l.b16 %v1537
        %v1762 = vunpack.c.l.b16 %v1538
        %v1763 = vunpack.c.l.b16 %v1539
        %v1764 = vunpack.c.l.b16 %v1540
        %v1765 = vunpack.c.l.b16 %v1541
        %v1766 = vunpack.c.l.b16 %v1542
        %v1767 = vunpack.c.l.b16 %v1543
        %v1768 = vunpack.c.l.b16 %v1544
        %v1769 = vunpack.c.l.b16 %v1545
        %v1770 = vpack.c.b16 %v1659, %v1754
        %v1771 = vpack.c.b16 %v1662, %v1755
        %v1772 = vpack.c.b16 %v1665, %v1756
        %v1773 = vpack.c.b16 %v1668, %v1757
        %v1774 = vpack.c.b16 %v1671, %v1758
        %v1775 = vpack.c.b16 %v1674, %v1759
        %v1776 = vpack.c.b16 %v1677, %v1760
        %v1777 = vpack.c.b16 %v1680, %v1761
        %v1778 = vpack.c.b16 %v1683, %v1762
        %v1779 = vpack.c.b16 %v1686, %v1763
        %v1780 = vpack.c.b16 %v1689, %v1764
        %v1781 = vpack.c.b16 %v1692, %v1765
        %v1782 = vpack.c.b16 %v1695, %v1766
        %v1783 = vpack.c.b16 %v1698, %v1767
        %v1784 = vpack.c.b16 %v1701, %v1768
        %v1785 = vpack.c.b16 %v1704, %v1769
        %v1787 = vshrl.u32 %v1770, 16
        %v1789 = vshll.u32 %v1770, 16
        %v1791 = vrot.slane %v1789, 1
        %v1792 = vor.u32 %v1787, %v1791
        %v1794 = vshll.u32 %v1707, 16
        %v1796 = vrot.slane %v1794, 1
        %v1797 = vsel %vm440, %v1792, %v1796
        %v1798 = vshrl.u32 %v1707, 16
        %v1801 = vshrl.u32 %v1771, 16
        %v1803 = vshll.u32 %v1771, 16
        %v1805 = vrot.slane %v1803, 1
        %v1806 = vor.u32 %v1801, %v1805
        %v1808 = vshll.u32 %v1709, 16
        %v1810 = vrot.slane %v1808, 1
        %v1811 = vsel %vm440, %v1806, %v1810
        %v1812 = vshrl.u32 %v1709, 16
        %v1815 = vshrl.u32 %v1772, 16
        %v1817 = vshll.u32 %v1772, 16
        %v1819 = vrot.slane %v1817, 1
        %v1820 = vor.u32 %v1815, %v1819
        %v1822 = vshll.u32 %v1711, 16
        %v1824 = vrot.slane %v1822, 1
        %v1825 = vsel %vm440, %v1820, %v1824
        %v1826 = vshrl.u32 %v1711, 16
        %v1829 = vshrl.u32 %v1773, 16
        %v1831 = vshll.u32 %v1773, 16
        %v1833 = vrot.slane %v1831, 1
        %v1834 = vor.u32 %v1829, %v1833
        %v1836 = vshll.u32 %v1713, 16
        %v1838 = vrot.slane %v1836, 1
        %v1839 = vsel %vm440, %v1834, %v1838
        %v1840 = vshrl.u32 %v1713, 16
        %v1843 = vshrl.u32 %v1774, 16
        %v1845 = vshll.u32 %v1774, 16
        %v1847 = vrot.slane %v1845, 1
        %v1848 = vor.u32 %v1843, %v1847
        %v1850 = vshll.u32 %v1715, 16
        %v1852 = vrot.slane %v1850, 1
        %v1853 = vsel %vm440, %v1848, %v1852
        %v1854 = vshrl.u32 %v1715, 16
        %v1857 = vshrl.u32 %v1775, 16
        %v1859 = vshll.u32 %v1775, 16
        %v1861 = vrot.slane %v1859, 1
        %v1862 = vor.u32 %v1857, %v1861
        %v1864 = vshll.u32 %v1717, 16
        %v1866 = vrot.slane %v1864, 1
        %v1867 = vsel %vm440, %v1862, %v1866
        %v1868 = vshrl.u32 %v1717, 16
        %v1871 = vshrl.u32 %v1776, 16
        %v1873 = vshll.u32 %v1776, 16
        %v1875 = vrot.slane %v1873, 1
        %v1876 = vor.u32 %v1871, %v1875
        %v1878 = vshll.u32 %v1719, 16
        %v1880 = vrot.slane %v1878, 1
        %v1881 = vsel %vm440, %v1876, %v1880
        %v1882 = vshrl.u32 %v1719, 16
        %v1885 = vshrl.u32 %v1777, 16
        %v1887 = vshll.u32 %v1777, 16
        %v1889 = vrot.slane %v1887, 1
        %v1890 = vor.u32 %v1885, %v1889
        %v1892 = vshll.u32 %v1721, 16
        %v1894 = vrot.slane %v1892, 1
        %v1895 = vsel %vm440, %v1890, %v1894
        %v1896 = vshrl.u32 %v1721, 16
        %v1899 = vshrl.u32 %v1778, 16
        %v1901 = vshll.u32 %v1778, 16
        %v1903 = vrot.slane %v1901, 1
        %v1904 = vor.u32 %v1899, %v1903
        %v1906 = vshll.u32 %v1723, 16
        %v1908 = vrot.slane %v1906, 1
        %v1909 = vsel %vm440, %v1904, %v1908
        %v1910 = vshrl.u32 %v1723, 16
        %v1913 = vshrl.u32 %v1779, 16
        %v1915 = vshll.u32 %v1779, 16
        %v1917 = vrot.slane %v1915, 1
        %v1918 = vor.u32 %v1913, %v1917
        %v1920 = vshll.u32 %v1725, 16
        %v1922 = vrot.slane %v1920, 1
        %v1923 = vsel %vm440, %v1918, %v1922
        %v1924 = vshrl.u32 %v1725, 16
        %v1927 = vshrl.u32 %v1780, 16
        %v1929 = vshll.u32 %v1780, 16
        %v1931 = vrot.slane %v1929, 1
        %v1932 = vor.u32 %v1927, %v1931
        %v1934 = vshll.u32 %v1727, 16
        %v1936 = vrot.slane %v1934, 1
        %v1937 = vsel %vm440, %v1932, %v1936
        %v1938 = vshrl.u32 %v1727, 16
        %v1941 = vshrl.u32 %v1781, 16
        %v1943 = vshll.u32 %v1781, 16
        %v1945 = vrot.slane %v1943, 1
        %v1946 = vor.u32 %v1941, %v1945
        %v1948 = vshll.u32 %v1729, 16
        %v1950 = vrot.slane %v1948, 1
        %v1951 = vsel %vm440, %v1946, %v1950
        %v1952 = vshrl.u32 %v1729, 16
        %v1955 = vshrl.u32 %v1782, 16
        %v1957 = vshll.u32 %v1782, 16
        %v1959 = vrot.slane %v1957, 1
        %v1960 = vor.u32 %v1955, %v1959
        %v1962 = vshll.u32 %v1731, 16
        %v1964 = vrot.slane %v1962, 1
        %v1965 = vsel %vm440, %v1960, %v1964
        %v1966 = vshrl.u32 %v1731, 16
        %v1969 = vshrl.u32 %v1783, 16
        %v1971 = vshll.u32 %v1783, 16
        %v1973 = vrot.slane %v1971, 1
        %v1974 = vor.u32 %v1969, %v1973
        %v1976 = vshll.u32 %v1733, 16
        %v1978 = vrot.slane %v1976, 1
        %v1979 = vsel %vm440, %v1974, %v1978
        %v1980 = vshrl.u32 %v1733, 16
        %v1983 = vshrl.u32 %v1784, 16
        %v1985 = vshll.u32 %v1784, 16
        %v1987 = vrot.slane %v1985, 1
        %v1988 = vor.u32 %v1983, %v1987
        %v1990 = vshll.u32 %v1735, 16
        %v1992 = vrot.slane %v1990, 1
        %v1993 = vsel %vm440, %v1988, %v1992
        %v1994 = vshrl.u32 %v1735, 16
        %v1997 = vshrl.u32 %v1785, 16
        %v1999 = vshll.u32 %v1785, 16
        %v2001 = vrot.slane %v1999, 1
        %v2002 = vor.u32 %v1997, %v2001
        %v2004 = vshll.u32 %v1737, 16
        %v2006 = vrot.slane %v2004, 1
        %v2007 = vsel %vm440, %v2002, %v2006
        %v2008 = vshrl.u32 %v1737, 16
        %2010 = vrot.lane.b32.xlu0 %v1797, 4
        %v2011 = vpop.permute.xlu0 %2010
        %2012 = vrot.lane.b32.xlu0 %v1798, 4
        %v2013 = vpop.permute.xlu0 %2012
        %2014 = vrot.lane.b32.xlu0 %v1811, 4
        %v2015 = vpop.permute.xlu0 %2014
        %2016 = vrot.lane.b32.xlu0 %v1812, 4
        %v2017 = vpop.permute.xlu0 %2016
        %2018 = vrot.lane.b32.xlu0 %v1825, 4
        %v2019 = vpop.permute.xlu0 %2018
        %2020 = vrot.lane.b32.xlu0 %v1826, 4
        %v2021 = vpop.permute.xlu0 %2020
        %2022 = vrot.lane.b32.xlu0 %v1839, 4
        %v2023 = vpop.permute.xlu0 %2022
        %2024 = vrot.lane.b32.xlu0 %v1840, 4
        %v2025 = vpop.permute.xlu0 %2024
        %2026 = vrot.lane.b32.xlu0 %v1853, 4
        %v2027 = vpop.permute.xlu0 %2026
        %2028 = vrot.lane.b32.xlu0 %v1854, 4
        %v2029 = vpop.permute.xlu0 %2028
        %2030 = vrot.lane.b32.xlu0 %v1867, 4
        %v2031 = vpop.permute.xlu0 %2030
        %2032 = vrot.lane.b32.xlu0 %v1868, 4
        %v2033 = vpop.permute.xlu0 %2032
        %2034 = vrot.lane.b32.xlu0 %v1881, 4
        %v2035 = vpop.permute.xlu0 %2034
        %2036 = vrot.lane.b32.xlu0 %v1882, 4
        %v2037 = vpop.permute.xlu0 %2036
        %2038 = vrot.lane.b32.xlu0 %v1895, 4
        %v2039 = vpop.permute.xlu0 %2038
        %2040 = vrot.lane.b32.xlu0 %v1896, 4
        %v2041 = vpop.permute.xlu0 %2040
        %2042 = vrot.lane.b32.xlu0 %v1909, 4
        %v2043 = vpop.permute.xlu0 %2042
        %2044 = vrot.lane.b32.xlu0 %v1910, 4
        %v2045 = vpop.permute.xlu0 %2044
        %2046 = vrot.lane.b32.xlu0 %v1923, 4
        %v2047 = vpop.permute.xlu0 %2046
        %2048 = vrot.lane.b32.xlu0 %v1924, 4
        %v2049 = vpop.permute.xlu0 %2048
        %2050 = vrot.lane.b32.xlu0 %v1937, 4
        %v2051 = vpop.permute.xlu0 %2050
        %2052 = vrot.lane.b32.xlu0 %v1938, 4
        %v2053 = vpop.permute.xlu0 %2052
        %2054 = vrot.lane.b32.xlu0 %v1951, 4
        %v2055 = vpop.permute.xlu0 %2054
        %2056 = vrot.lane.b32.xlu0 %v1952, 4
        %v2057 = vpop.permute.xlu0 %2056
        %2058 = vrot.lane.b32.xlu0 %v1965, 4
        %v2059 = vpop.permute.xlu0 %2058
        %2060 = vrot.lane.b32.xlu0 %v1966, 4
        %v2061 = vpop.permute.xlu0 %2060
        %2062 = vrot.lane.b32.xlu0 %v1979, 4
        %v2063 = vpop.permute.xlu0 %2062
        %2064 = vrot.lane.b32.xlu0 %v1980, 4
        %v2065 = vpop.permute.xlu0 %2064
        %2066 = vrot.lane.b32.xlu0 %v1993, 4
        %v2067 = vpop.permute.xlu0 %2066
        %2068 = vrot.lane.b32.xlu0 %v1994, 4
        %v2069 = vpop.permute.xlu0 %2068
        %2070 = vrot.lane.b32.xlu0 %v2007, 4
        %v2071 = vpop.permute.xlu0 %2070
        %2072 = vrot.lane.b32.xlu0 %v2008, 4
        %v2073 = vpop.permute.xlu0 %2072
        %v2122 = vunpack.c.l.b16 %v1546
        %v2123 = vunpack.c.l.b16 %v1547
        %v2124 = vunpack.c.l.b16 %v1548
        %v2125 = vunpack.c.l.b16 %v1549
        %v2126 = vunpack.c.l.b16 %v1550
        %v2127 = vunpack.c.l.b16 %v1551
        %v2128 = vunpack.c.l.b16 %v1552
        %v2129 = vunpack.c.l.b16 %v1553
        %v2130 = vunpack.c.l.b16 %v1554
        %v2131 = vunpack.c.l.b16 %v1555
        %v2132 = vunpack.c.l.b16 %v1556
        %v2133 = vunpack.c.l.b16 %v1557
        %v2134 = vunpack.c.l.b16 %v1558
        %v2135 = vunpack.c.l.b16 %v1559
        %v2136 = vunpack.c.l.b16 %v1560
        %v2137 = vunpack.c.l.b16 %v1561
        %v2138 = vunpack.c.l.b16 %v1562
        %v2139 = vunpack.c.l.b16 %v1563
        %v2140 = vunpack.c.l.b16 %v1564
        %v2141 = vunpack.c.l.b16 %v1565
        %v2142 = vunpack.c.l.b16 %v1566
        %v2143 = vunpack.c.l.b16 %v1567
        %v2144 = vunpack.c.l.b16 %v1568
        %v2145 = vunpack.c.l.b16 %v1569
        %v2146 = vunpack.c.l.b16 %v1570
        %v2147 = vunpack.c.l.b16 %v1571
        %v2148 = vunpack.c.l.b16 %v1572
        %v2149 = vunpack.c.l.b16 %v1573
        %v2150 = vunpack.c.l.b16 %v1574
        %v2151 = vunpack.c.l.b16 %v1575
        %v2152 = vunpack.c.l.b16 %v1576
        %v2153 = vunpack.c.l.b16 %v1577
        %v2154 = vunpack.c.l.b16 %v1578
        %v2155 = vunpack.c.l.b16 %v1579
        %v2156 = vunpack.c.l.b16 %v1580
        %v2157 = vunpack.c.l.b16 %v1581
        %v2158 = vunpack.c.l.b16 %v1582
        %v2159 = vunpack.c.l.b16 %v1583
        %v2160 = vunpack.c.l.b16 %v1584
        %v2161 = vunpack.c.l.b16 %v1585
        %v2162 = vunpack.c.l.b16 %v1586
        %v2163 = vunpack.c.l.b16 %v1587
        %v2164 = vunpack.c.l.b16 %v1588
        %v2165 = vunpack.c.l.b16 %v1589
        %v2166 = vunpack.c.l.b16 %v1590
        %v2167 = vunpack.c.l.b16 %v1591
        %v2168 = vunpack.c.l.b16 %v1592
        %v2169 = vunpack.c.l.b16 %v1593
        %v2170 = vpack.c.b16 %v2123, %v2122
        %v2171 = vpack.c.b16 %v2124, %v2124
        %v2172 = vpack.c.b16 %v2126, %v2125
        %v2173 = vpack.c.b16 %v2127, %v2127
        %v2174 = vpack.c.b16 %v2129, %v2128
        %v2175 = vpack.c.b16 %v2130, %v2130
        %v2176 = vpack.c.b16 %v2132, %v2131
        %v2177 = vpack.c.b16 %v2133, %v2133
        %v2178 = vpack.c.b16 %v2135, %v2134
        %v2179 = vpack.c.b16 %v2136, %v2136
        %v2180 = vpack.c.b16 %v2138, %v2137
        %v2181 = vpack.c.b16 %v2139, %v2139
        %v2182 = vpack.c.b16 %v2141, %v2140
        %v2183 = vpack.c.b16 %v2142, %v2142
        %v2184 = vpack.c.b16 %v2144, %v2143
        %v2185 = vpack.c.b16 %v2145, %v2145
        %v2186 = vpack.c.b16 %v2147, %v2146
        %v2187 = vpack.c.b16 %v2148, %v2148
        %v2188 = vpack.c.b16 %v2150, %v2149
        %v2189 = vpack.c.b16 %v2151, %v2151
        %v2190 = vpack.c.b16 %v2153, %v2152
        %v2191 = vpack.c.b16 %v2154, %v2154
        %v2192 = vpack.c.b16 %v2156, %v2155
        %v2193 = vpack.c.b16 %v2157, %v2157
        %v2194 = vpack.c.b16 %v2159, %v2158
        %v2195 = vpack.c.b16 %v2160, %v2160
        %v2196 = vpack.c.b16 %v2162, %v2161
        %v2197 = vpack.c.b16 %v2163, %v2163
        %v2198 = vpack.c.b16 %v2165, %v2164
        %v2199 = vpack.c.b16 %v2166, %v2166
        %v2200 = vpack.c.b16 %v2168, %v2167
        %v2201 = vpack.c.b16 %v2169, %v2169
        %2202 = vrot.lane.b32.xlu0 %v2170, 8
        %v2203 = vpop.permute.xlu0 %2202
        %2204 = vrot.lane.b32.xlu0 %v2171, 8
        %v2205 = vpop.permute.xlu0 %2204
        %2206 = vrot.lane.b32.xlu0 %v2172, 8
        %v2207 = vpop.permute.xlu0 %2206
        %2208 = vrot.lane.b32.xlu0 %v2173, 8
        %v2209 = vpop.permute.xlu0 %2208
        %2210 = vrot.lane.b32.xlu0 %v2174, 8
        %v2211 = vpop.permute.xlu0 %2210
        %2212 = vrot.lane.b32.xlu0 %v2175, 8
        %v2213 = vpop.permute.xlu0 %2212
        %2214 = vrot.lane.b32.xlu0 %v2176, 8
        %v2215 = vpop.permute.xlu0 %2214
        %2216 = vrot.lane.b32.xlu0 %v2177, 8
        %v2217 = vpop.permute.xlu0 %2216
        %2218 = vrot.lane.b32.xlu0 %v2178, 8
        %v2219 = vpop.permute.xlu0 %2218
        %2220 = vrot.lane.b32.xlu0 %v2179, 8
        %v2221 = vpop.permute.xlu0 %2220
        %2222 = vrot.lane.b32.xlu0 %v2180, 8
        %v2223 = vpop.permute.xlu0 %2222
        %2224 = vrot.lane.b32.xlu0 %v2181, 8
        %v2225 = vpop.permute.xlu0 %2224
        %2226 = vrot.lane.b32.xlu0 %v2182, 8
        %v2227 = vpop.permute.xlu0 %2226
        %2228 = vrot.lane.b32.xlu0 %v2183, 8
        %v2229 = vpop.permute.xlu0 %2228
        %2230 = vrot.lane.b32.xlu0 %v2184, 8
        %v2231 = vpop.permute.xlu0 %2230
        %2232 = vrot.lane.b32.xlu0 %v2185, 8
        %v2233 = vpop.permute.xlu0 %2232
        %2234 = vrot.lane.b32.xlu0 %v2186, 8
        %v2235 = vpop.permute.xlu0 %2234
        %2236 = vrot.lane.b32.xlu0 %v2187, 8
        %v2237 = vpop.permute.xlu0 %2236
        %2238 = vrot.lane.b32.xlu0 %v2188, 8
        %v2239 = vpop.permute.xlu0 %2238
        %2240 = vrot.lane.b32.xlu0 %v2189, 8
        %v2241 = vpop.permute.xlu0 %2240
        %2242 = vrot.lane.b32.xlu0 %v2190, 8
        %v2243 = vpop.permute.xlu0 %2242
        %2244 = vrot.lane.b32.xlu0 %v2191, 8
        %v2245 = vpop.permute.xlu0 %2244
        %2246 = vrot.lane.b32.xlu0 %v2192, 8
        %v2247 = vpop.permute.xlu0 %2246
        %2248 = vrot.lane.b32.xlu0 %v2193, 8
        %v2249 = vpop.permute.xlu0 %2248
        %2250 = vrot.lane.b32.xlu0 %v2194, 8
        %v2251 = vpop.permute.xlu0 %2250
        %2252 = vrot.lane.b32.xlu0 %v2195, 8
        %v2253 = vpop.permute.xlu0 %2252
        %2254 = vrot.lane.b32.xlu0 %v2196, 8
        %v2255 = vpop.permute.xlu0 %2254
        %2256 = vrot.lane.b32.xlu0 %v2197, 8
        %v2257 = vpop.permute.xlu0 %2256
        %2258 = vrot.lane.b32.xlu0 %v2198, 8
        %v2259 = vpop.permute.xlu0 %2258
        %2260 = vrot.lane.b32.xlu0 %v2199, 8
        %v2261 = vpop.permute.xlu0 %2260
        %2262 = vrot.lane.b32.xlu0 %v2200, 8
        %v2263 = vpop.permute.xlu0 %2262
        %2264 = vrot.lane.b32.xlu0 %v2201, 8
        %v2265 = vpop.permute.xlu0 %2264
        %v2282 = vunpack.c.l.b16 %v1594
        %v2283 = vunpack.c.l.b16 %v1595
        %v2284 = vunpack.c.l.b16 %v1596
        %v2285 = vunpack.c.l.b16 %v1597
        %v2286 = vunpack.c.l.b16 %v1598
        %v2287 = vunpack.c.l.b16 %v1599
        %v2288 = vunpack.c.l.b16 %v1600
        %v2289 = vunpack.c.l.b16 %v1601
        %v2290 = vunpack.c.l.b16 %v1602
        %v2291 = vunpack.c.l.b16 %v1603
        %v2292 = vunpack.c.l.b16 %v1604
        %v2293 = vunpack.c.l.b16 %v1605
        %v2294 = vunpack.c.l.b16 %v1606
        %v2295 = vunpack.c.l.b16 %v1607
        %v2296 = vunpack.c.l.b16 %v1608
        %v2297 = vunpack.c.l.b16 %v1609
        %v2298 = vpack.c.b16 %v2123, %v2282
        %v2299 = vpack.c.b16 %v2126, %v2283
        %v2300 = vpack.c.b16 %v2129, %v2284
        %v2301 = vpack.c.b16 %v2132, %v2285
        %v2302 = vpack.c.b16 %v2135, %v2286
        %v2303 = vpack.c.b16 %v2138, %v2287
        %v2304 = vpack.c.b16 %v2141, %v2288
        %v2305 = vpack.c.b16 %v2144, %v2289
        %v2306 = vpack.c.b16 %v2147, %v2290
        %v2307 = vpack.c.b16 %v2150, %v2291
        %v2308 = vpack.c.b16 %v2153, %v2292
        %v2309 = vpack.c.b16 %v2156, %v2293
        %v2310 = vpack.c.b16 %v2159, %v2294
        %v2311 = vpack.c.b16 %v2162, %v2295
        %v2312 = vpack.c.b16 %v2165, %v2296
        %v2313 = vpack.c.b16 %v2168, %v2297
        %v2315 = vshrl.u32 %v2298, 16
        %v2317 = vshll.u32 %v2298, 16
        %v2319 = vrot.slane %v2317, 1
        %v2320 = vor.u32 %v2315, %v2319
        %v2322 = vshll.u32 %v2171, 16
        %v2324 = vrot.slane %v2322, 1
        %v2325 = vsel %vm440, %v2320, %v2324
        %v2326 = vshrl.u32 %v2171, 16
        %v2329 = vshrl.u32 %v2299, 16
        %v2331 = vshll.u32 %v2299, 16
        %v2333 = vrot.slane %v2331, 1
        %v2334 = vor.u32 %v2329, %v2333
        %v2336 = vshll.u32 %v2173, 16
        %v2338 = vrot.slane %v2336, 1
        %v2339 = vsel %vm440, %v2334, %v2338
        %v2340 = vshrl.u32 %v2173, 16
        %v2343 = vshrl.u32 %v2300, 16
        %v2345 = vshll.u32 %v2300, 16
        %v2347 = vrot.slane %v2345, 1
        %v2348 = vor.u32 %v2343, %v2347
        %v2350 = vshll.u32 %v2175, 16
        %v2352 = vrot.slane %v2350, 1
        %v2353 = vsel %vm440, %v2348, %v2352
        %v2354 = vshrl.u32 %v2175, 16
        %v2357 = vshrl.u32 %v2301, 16
        %v2359 = vshll.u32 %v2301, 16
        %v2361 = vrot.slane %v2359, 1
        %v2362 = vor.u32 %v2357, %v2361
        %v2364 = vshll.u32 %v2177, 16
        %v2366 = vrot.slane %v2364, 1
        %v2367 = vsel %vm440, %v2362, %v2366
        %v2368 = vshrl.u32 %v2177, 16
        %v2371 = vshrl.u32 %v2302, 16
        %v2373 = vshll.u32 %v2302, 16
        %v2375 = vrot.slane %v2373, 1
        %v2376 = vor.u32 %v2371, %v2375
        %v2378 = vshll.u32 %v2179, 16
        %v2380 = vrot.slane %v2378, 1
        %v2381 = vsel %vm440, %v2376, %v2380
        %v2382 = vshrl.u32 %v2179, 16
        %v2385 = vshrl.u32 %v2303, 16
        %v2387 = vshll.u32 %v2303, 16
        %v2389 = vrot.slane %v2387, 1
        %v2390 = vor.u32 %v2385, %v2389
        %v2392 = vshll.u32 %v2181, 16
        %v2394 = vrot.slane %v2392, 1
        %v2395 = vsel %vm440, %v2390, %v2394
        %v2396 = vshrl.u32 %v2181, 16
        %v2399 = vshrl.u32 %v2304, 16
        %v2401 = vshll.u32 %v2304, 16
        %v2403 = vrot.slane %v2401, 1
        %v2404 = vor.u32 %v2399, %v2403
        %v2406 = vshll.u32 %v2183, 16
        %v2408 = vrot.slane %v2406, 1
        %v2409 = vsel %vm440, %v2404, %v2408
        %v2410 = vshrl.u32 %v2183, 16
        %v2413 = vshrl.u32 %v2305, 16
        %v2415 = vshll.u32 %v2305, 16
        %v2417 = vrot.slane %v2415, 1
        %v2418 = vor.u32 %v2413, %v2417
        %v2420 = vshll.u32 %v2185, 16
        %v2422 = vrot.slane %v2420, 1
        %v2423 = vsel %vm440, %v2418, %v2422
        %v2424 = vshrl.u32 %v2185, 16
        %v2427 = vshrl.u32 %v2306, 16
        %v2429 = vshll.u32 %v2306, 16
        %v2431 = vrot.slane %v2429, 1
        %v2432 = vor.u32 %v2427, %v2431
        %v2434 = vshll.u32 %v2187, 16
        %v2436 = vrot.slane %v2434, 1
        %v2437 = vsel %vm440, %v2432, %v2436
        %v2438 = vshrl.u32 %v2187, 16
        %v2441 = vshrl.u32 %v2307, 16
        %v2443 = vshll.u32 %v2307, 16
        %v2445 = vrot.slane %v2443, 1
        %v2446 = vor.u32 %v2441, %v2445
        %v2448 = vshll.u32 %v2189, 16
        %v2450 = vrot.slane %v2448, 1
        %v2451 = vsel %vm440, %v2446, %v2450
        %v2452 = vshrl.u32 %v2189, 16
        %v2455 = vshrl.u32 %v2308, 16
        %v2457 = vshll.u32 %v2308, 16
        %v2459 = vrot.slane %v2457, 1
        %v2460 = vor.u32 %v2455, %v2459
        %v2462 = vshll.u32 %v2191, 16
        %v2464 = vrot.slane %v2462, 1
        %v2465 = vsel %vm440, %v2460, %v2464
        %v2466 = vshrl.u32 %v2191, 16
        %v2469 = vshrl.u32 %v2309, 16
        %v2471 = vshll.u32 %v2309, 16
        %v2473 = vrot.slane %v2471, 1
        %v2474 = vor.u32 %v2469, %v2473
        %v2476 = vshll.u32 %v2193, 16
        %v2478 = vrot.slane %v2476, 1
        %v2479 = vsel %vm440, %v2474, %v2478
        %v2480 = vshrl.u32 %v2193, 16
        %v2483 = vshrl.u32 %v2310, 16
        %v2485 = vshll.u32 %v2310, 16
        %v2487 = vrot.slane %v2485, 1
        %v2488 = vor.u32 %v2483, %v2487
        %v2490 = vshll.u32 %v2195, 16
        %v2492 = vrot.slane %v2490, 1
        %v2493 = vsel %vm440, %v2488, %v2492
        %v2494 = vshrl.u32 %v2195, 16
        %v2497 = vshrl.u32 %v2311, 16
        %v2499 = vshll.u32 %v2311, 16
        %v2501 = vrot.slane %v2499, 1
        %v2502 = vor.u32 %v2497, %v2501
        %v2504 = vshll.u32 %v2197, 16
        %v2506 = vrot.slane %v2504, 1
        %v2507 = vsel %vm440, %v2502, %v2506
        %v2508 = vshrl.u32 %v2197, 16
        %v2511 = vshrl.u32 %v2312, 16
        %v2513 = vshll.u32 %v2312, 16
        %v2515 = vrot.slane %v2513, 1
        %v2516 = vor.u32 %v2511, %v2515
        %v2518 = vshll.u32 %v2199, 16
        %v2520 = vrot.slane %v2518, 1
        %v2521 = vsel %vm440, %v2516, %v2520
        %v2522 = vshrl.u32 %v2199, 16
        %v2525 = vshrl.u32 %v2313, 16
        %v2527 = vshll.u32 %v2313, 16
        %v2529 = vrot.slane %v2527, 1
        %v2530 = vor.u32 %v2525, %v2529
        %v2532 = vshll.u32 %v2201, 16
        %v2534 = vrot.slane %v2532, 1
        %v2535 = vsel %vm440, %v2530, %v2534
        %v2536 = vshrl.u32 %v2201, 16
        %2538 = vrot.lane.b32.xlu0 %v2325, 12
        %v2539 = vpop.permute.xlu0 %2538
        %2540 = vrot.lane.b32.xlu0 %v2326, 12
        %v2541 = vpop.permute.xlu0 %2540
        %2542 = vrot.lane.b32.xlu0 %v2339, 12
        %v2543 = vpop.permute.xlu0 %2542
        %2544 = vrot.lane.b32.xlu0 %v2340, 12
        %v2545 = vpop.permute.xlu0 %2544
        %2546 = vrot.lane.b32.xlu0 %v2353, 12
        %v2547 = vpop.permute.xlu0 %2546
        %2548 = vrot.lane.b32.xlu0 %v2354, 12
        %v2549 = vpop.permute.xlu0 %2548
        %2550 = vrot.lane.b32.xlu0 %v2367, 12
        %v2551 = vpop.permute.xlu0 %2550
        %2552 = vrot.lane.b32.xlu0 %v2368, 12
        %v2553 = vpop.permute.xlu0 %2552
        %2554 = vrot.lane.b32.xlu0 %v2381, 12
        %v2555 = vpop.permute.xlu0 %2554
        %2556 = vrot.lane.b32.xlu0 %v2382, 12
        %v2557 = vpop.permute.xlu0 %2556
        %2558 = vrot.lane.b32.xlu0 %v2395, 12
        %v2559 = vpop.permute.xlu0 %2558
        %2560 = vrot.lane.b32.xlu0 %v2396, 12
        %v2561 = vpop.permute.xlu0 %2560
        %2562 = vrot.lane.b32.xlu0 %v2409, 12
        %v2563 = vpop.permute.xlu0 %2562
        %2564 = vrot.lane.b32.xlu0 %v2410, 12
        %v2565 = vpop.permute.xlu0 %2564
        %2566 = vrot.lane.b32.xlu0 %v2423, 12
        %v2567 = vpop.permute.xlu0 %2566
        %2568 = vrot.lane.b32.xlu0 %v2424, 12
        %v2569 = vpop.permute.xlu0 %2568
        %2570 = vrot.lane.b32.xlu0 %v2437, 12
        %v2571 = vpop.permute.xlu0 %2570
        %2572 = vrot.lane.b32.xlu0 %v2438, 12
        %v2573 = vpop.permute.xlu0 %2572
        %2574 = vrot.lane.b32.xlu0 %v2451, 12
        %v2575 = vpop.permute.xlu0 %2574
        %2576 = vrot.lane.b32.xlu0 %v2452, 12
        %v2577 = vpop.permute.xlu0 %2576
        %2578 = vrot.lane.b32.xlu0 %v2465, 12
        %v2579 = vpop.permute.xlu0 %2578
        %2580 = vrot.lane.b32.xlu0 %v2466, 12
        %v2581 = vpop.permute.xlu0 %2580
        %2582 = vrot.lane.b32.xlu0 %v2479, 12
        %v2583 = vpop.permute.xlu0 %2582
        %2584 = vrot.lane.b32.xlu0 %v2480, 12
        %v2585 = vpop.permute.xlu0 %2584
        %2586 = vrot.lane.b32.xlu0 %v2493, 12
        %v2587 = vpop.permute.xlu0 %2586
        %2588 = vrot.lane.b32.xlu0 %v2494, 12
        %v2589 = vpop.permute.xlu0 %2588
        %2590 = vrot.lane.b32.xlu0 %v2507, 12
        %v2591 = vpop.permute.xlu0 %2590
        %2592 = vrot.lane.b32.xlu0 %v2508, 12
        %v2593 = vpop.permute.xlu0 %2592
        %2594 = vrot.lane.b32.xlu0 %v2521, 12
        %v2595 = vpop.permute.xlu0 %2594
        %2596 = vrot.lane.b32.xlu0 %v2522, 12
        %v2597 = vpop.permute.xlu0 %2596
        %2598 = vrot.lane.b32.xlu0 %v2535, 12
        %v2599 = vpop.permute.xlu0 %2598
        %2600 = vrot.lane.b32.xlu0 %v2536, 12
        %v2601 = vpop.permute.xlu0 %2600
        %v2604 = vsel %vm1049, %v1706, %v2011
        %v2606 = vsel %vm1049, %v1707, %v2013
        %v2609 = vsel %vm1049, %v1708, %v2015
        %v2611 = vsel %vm1049, %v1709, %v2017
        %v2614 = vsel %vm1049, %v1710, %v2019
        %v2616 = vsel %vm1049, %v1711, %v2021
        %v2619 = vsel %vm1049, %v1712, %v2023
        %v2621 = vsel %vm1049, %v1713, %v2025
        %v2624 = vsel %vm1049, %v1714, %v2027
        %v2626 = vsel %vm1049, %v1715, %v2029
        %v2629 = vsel %vm1049, %v1716, %v2031
        %v2631 = vsel %vm1049, %v1717, %v2033
        %v2634 = vsel %vm1049, %v1718, %v2035
        %v2636 = vsel %vm1049, %v1719, %v2037
        %v2639 = vsel %vm1049, %v1720, %v2039
        %v2641 = vsel %vm1049, %v1721, %v2041
        %v2644 = vsel %vm1049, %v1722, %v2043
        %v2646 = vsel %vm1049, %v1723, %v2045
        %v2649 = vsel %vm1049, %v1724, %v2047
        %v2651 = vsel %vm1049, %v1725, %v2049
        %v2654 = vsel %vm1049, %v1726, %v2051
        %v2656 = vsel %vm1049, %v1727, %v2053
        %v2659 = vsel %vm1049, %v1728, %v2055
        %v2661 = vsel %vm1049, %v1729, %v2057
        %v2664 = vsel %vm1049, %v1730, %v2059
        %v2666 = vsel %vm1049, %v1731, %v2061
        %v2669 = vsel %vm1049, %v1732, %v2063
        %v2671 = vsel %vm1049, %v1733, %v2065
        %v2674 = vsel %vm1049, %v1734, %v2067
        %v2676 = vsel %vm1049, %v1735, %v2069
        %v2679 = vsel %vm1049, %v1736, %v2071
        %v2681 = vsel %vm1049, %v1737, %v2073
        %v2683 = vsel %vm1082, %v2604, %v2203
        %v2685 = vsel %vm1082, %v2606, %v2205
        %v2687 = vsel %vm1082, %v2609, %v2207
        %v2689 = vsel %vm1082, %v2611, %v2209
        %v2691 = vsel %vm1082, %v2614, %v2211
        %v2693 = vsel %vm1082, %v2616, %v2213
        %v2695 = vsel %vm1082, %v2619, %v2215
        %v2697 = vsel %vm1082, %v2621, %v2217
        %v2699 = vsel %vm1082, %v2624, %v2219
        %v2701 = vsel %vm1082, %v2626, %v2221
        %v2703 = vsel %vm1082, %v2629, %v2223
        %v2705 = vsel %vm1082, %v2631, %v2225
        %v2707 = vsel %vm1082, %v2634, %v2227
        %v2709 = vsel %vm1082, %v2636, %v2229
        %v2711 = vsel %vm1082, %v2639, %v2231
        %v2713 = vsel %vm1082, %v2641, %v2233
        %v2715 = vsel %vm1082, %v2644, %v2235
        %v2717 = vsel %vm1082, %v2646, %v2237
        %v2719 = vsel %vm1082, %v2649, %v2239
        %v2721 = vsel %vm1082, %v2651, %v2241
        %v2723 = vsel %vm1082, %v2654, %v2243
        %v2725 = vsel %vm1082, %v2656, %v2245
        %v2727 = vsel %vm1082, %v2659, %v2247
        %v2729 = vsel %vm1082, %v2661, %v2249
        %v2731 = vsel %vm1082, %v2664, %v2251
        %v2733 = vsel %vm1082, %v2666, %v2253
        %v2735 = vsel %vm1082, %v2669, %v2255
        %v2737 = vsel %vm1082, %v2671, %v2257
        %v2739 = vsel %vm1082, %v2674, %v2259
        %v2741 = vsel %vm1082, %v2676, %v2261
        %v2743 = vsel %vm1082, %v2679, %v2263
        %v2745 = vsel %vm1082, %v2681, %v2265
        %v2747 = vsel %vm1115, %v2683, %v2539
        %v2749 = vsel %vm1115, %v2685, %v2541
        %v2751 = vsel %vm1115, %v2687, %v2543
        %v2753 = vsel %vm1115, %v2689, %v2545
        %v2755 = vsel %vm1115, %v2691, %v2547
        %v2757 = vsel %vm1115, %v2693, %v2549
        %v2759 = vsel %vm1115, %v2695, %v2551
        %v2761 = vsel %vm1115, %v2697, %v2553
        %v2763 = vsel %vm1115, %v2699, %v2555
        %v2765 = vsel %vm1115, %v2701, %v2557
        %v2767 = vsel %vm1115, %v2703, %v2559
        %v2769 = vsel %vm1115, %v2705, %v2561
        %v2771 = vsel %vm1115, %v2707, %v2563
        %v2773 = vsel %vm1115, %v2709, %v2565
        %v2775 = vsel %vm1115, %v2711, %v2567
        %v2777 = vsel %vm1115, %v2713, %v2569
        %v2779 = vsel %vm1115, %v2715, %v2571
        %v2781 = vsel %vm1115, %v2717, %v2573
        %v2783 = vsel %vm1115, %v2719, %v2575
        %v2785 = vsel %vm1115, %v2721, %v2577
        %v2787 = vsel %vm1115, %v2723, %v2579
        %v2789 = vsel %vm1115, %v2725, %v2581
        %v2791 = vsel %vm1115, %v2727, %v2583
        %v2793 = vsel %vm1115, %v2729, %v2585
        %v2795 = vsel %vm1115, %v2731, %v2587
        %v2797 = vsel %vm1115, %v2733, %v2589
        %v2799 = vsel %vm1115, %v2735, %v2591
        %v2801 = vsel %vm1115, %v2737, %v2593
        %v2803 = vsel %vm1115, %v2739, %v2595
        %v2805 = vsel %vm1115, %v2741, %v2597
        %v2807 = vsel %vm1115, %v2743, %v2599
        %v2809 = vsel %vm1115, %v2745, %v2601
        %v2810 = vshrl.u32 %v2747, 16
        %v2812 = vshll.u32 %v2747, 16
        %v2814 = vrot.slane %v2812, 1
        %v2815 = vor.u32 %v2810, %v2814
        %v2816 = vshll.u32 %v2749, 16
        %v2818 = vrot.slane %v2816, 1
        %v2819 = vsel %vm440, %v2815, %v2818
        %v2820 = vshrl.u32 %v2751, 16
        %v2822 = vshll.u32 %v2751, 16
        %v2824 = vrot.slane %v2822, 1
        %v2825 = vor.u32 %v2820, %v2824
        %v2826 = vshll.u32 %v2753, 16
        %v2828 = vrot.slane %v2826, 1
        %v2829 = vsel %vm440, %v2825, %v2828
        %v2830 = vshrl.u32 %v2755, 16
        %v2832 = vshll.u32 %v2755, 16
        %v2834 = vrot.slane %v2832, 1
        %v2835 = vor.u32 %v2830, %v2834
        %v2836 = vshll.u32 %v2757, 16
        %v2838 = vrot.slane %v2836, 1
        %v2839 = vsel %vm440, %v2835, %v2838
        %v2840 = vshrl.u32 %v2759, 16
        %v2842 = vshll.u32 %v2759, 16
        %v2844 = vrot.slane %v2842, 1
        %v2845 = vor.u32 %v2840, %v2844
        %v2846 = vshll.u32 %v2761, 16
        %v2848 = vrot.slane %v2846, 1
        %v2849 = vsel %vm440, %v2845, %v2848
        %v2850 = vshrl.u32 %v2763, 16
        %v2852 = vshll.u32 %v2763, 16
        %v2854 = vrot.slane %v2852, 1
        %v2855 = vor.u32 %v2850, %v2854
        %v2856 = vshll.u32 %v2765, 16
        %v2858 = vrot.slane %v2856, 1
        %v2859 = vsel %vm440, %v2855, %v2858
        %v2860 = vshrl.u32 %v2767, 16
        %v2862 = vshll.u32 %v2767, 16
        %v2864 = vrot.slane %v2862, 1
        %v2865 = vor.u32 %v2860, %v2864
        %v2866 = vshll.u32 %v2769, 16
        %v2868 = vrot.slane %v2866, 1
        %v2869 = vsel %vm440, %v2865, %v2868
        %v2870 = vshrl.u32 %v2771, 16
        %v2872 = vshll.u32 %v2771, 16
        %v2874 = vrot.slane %v2872, 1
        %v2875 = vor.u32 %v2870, %v2874
        %v2876 = vshll.u32 %v2773, 16
        %v2878 = vrot.slane %v2876, 1
        %v2879 = vsel %vm440, %v2875, %v2878
        %v2880 = vshrl.u32 %v2775, 16
        %v2882 = vshll.u32 %v2775, 16
        %v2884 = vrot.slane %v2882, 1
        %v2885 = vor.u32 %v2880, %v2884
        %v2886 = vshll.u32 %v2777, 16
        %v2888 = vrot.slane %v2886, 1
        %v2889 = vsel %vm440, %v2885, %v2888
        %v2890 = vshrl.u32 %v2779, 16
        %v2892 = vshll.u32 %v2779, 16
        %v2894 = vrot.slane %v2892, 1
        %v2895 = vor.u32 %v2890, %v2894
        %v2896 = vshll.u32 %v2781, 16
        %v2898 = vrot.slane %v2896, 1
        %v2899 = vsel %vm440, %v2895, %v2898
        %v2900 = vshrl.u32 %v2783, 16
        %v2902 = vshll.u32 %v2783, 16
        %v2904 = vrot.slane %v2902, 1
        %v2905 = vor.u32 %v2900, %v2904
        %v2906 = vshll.u32 %v2785, 16
        %v2908 = vrot.slane %v2906, 1
        %v2909 = vsel %vm440, %v2905, %v2908
        %v2910 = vshrl.u32 %v2787, 16
        %v2912 = vshll.u32 %v2787, 16
        %v2914 = vrot.slane %v2912, 1
        %v2915 = vor.u32 %v2910, %v2914
        %v2916 = vshll.u32 %v2789, 16
        %v2918 = vrot.slane %v2916, 1
        %v2919 = vsel %vm440, %v2915, %v2918
        %v2920 = vshrl.u32 %v2791, 16
        %v2922 = vshll.u32 %v2791, 16
        %v2924 = vrot.slane %v2922, 1
        %v2925 = vor.u32 %v2920, %v2924
        %v2926 = vshll.u32 %v2793, 16
        %v2928 = vrot.slane %v2926, 1
        %v2929 = vsel %vm440, %v2925, %v2928
        %v2930 = vshrl.u32 %v2795, 16
        %v2932 = vshll.u32 %v2795, 16
        %v2934 = vrot.slane %v2932, 1
        %v2935 = vor.u32 %v2930, %v2934
        %v2936 = vshll.u32 %v2797, 16
        %v2938 = vrot.slane %v2936, 1
        %v2939 = vsel %vm440, %v2935, %v2938
        %v2940 = vshrl.u32 %v2799, 16
        %v2942 = vshll.u32 %v2799, 16
        %v2944 = vrot.slane %v2942, 1
        %v2945 = vor.u32 %v2940, %v2944
        %v2946 = vshll.u32 %v2801, 16
        %v2948 = vrot.slane %v2946, 1
        %v2949 = vsel %vm440, %v2945, %v2948
        %v2950 = vshrl.u32 %v2803, 16
        %v2952 = vshll.u32 %v2803, 16
        %v2954 = vrot.slane %v2952, 1
        %v2955 = vor.u32 %v2950, %v2954
        %v2956 = vshll.u32 %v2805, 16
        %v2958 = vrot.slane %v2956, 1
        %v2959 = vsel %vm440, %v2955, %v2958
        %v2960 = vshrl.u32 %v2807, 16
        %v2962 = vshll.u32 %v2807, 16
        %v2964 = vrot.slane %v2962, 1
        %v2965 = vor.u32 %v2960, %v2964
        %v2966 = vshll.u32 %v2809, 16
        %v2968 = vrot.slane %v2966, 1
        %v2969 = vsel %vm440, %v2965, %v2968
        %s2970 = scalar_lea.vmem %s1, 8
        %v2971 = vld [vmem:[%s2970] sm:$0xf]
        %v2972 = vld [vmem:[%s2970 + $0x4] sm:$0xf]
        %v2975 = vunpack.c.l.b16 %v2971
        %v2976 = vunpack.c.l.b16 %v2972
        %v2977 = vpack.c.b16 %v2976, %v2975
        %v2980 = vsel %vm1156, %v2819, 0
        %v2983 = vsel %vm1156, %v2829, 0
        %v2986 = vsel %vm1156, %v2839, 0
        %v2989 = vsel %vm1156, %v2849, 0
        %v2992 = vsel %vm1156, %v2859, 0
        %v2995 = vsel %vm1156, %v2869, 0
        %v2998 = vsel %vm1156, %v2879, 0
        %v3001 = vsel %vm1156, %v2889, 0
        %v3004 = vsel %vm1156, %v2899, 0
        %v3007 = vsel %vm1156, %v2909, 0
        %v3010 = vsel %vm1156, %v2919, 0
        %v3013 = vsel %vm1156, %v2929, 0
        %v3016 = vsel %vm1156, %v2939, 0
        %v3019 = vsel %vm1156, %v2949, 0
        %v3022 = vsel %vm1156, %v2959, 0
        %v3025 = vsel %vm1156, %v2969, 0
        %3027 = vmatpush.bf16.msra.mxu0 0
        %3028 = vmatpush.bf16.msra.mxu0 0
        %3029 = vmatpush.bf16.msra.mxu0 0
        %3030 = vmatpush.bf16.msra.mxu0 0
        %3031 = vmatpush.bf16.msra.mxu0 0
        %3032 = vmatpush.bf16.msra.mxu0 0
        %3033 = vmatpush.bf16.msra.mxu0 0
        %3034 = vmatpush.bf16.msra.mxu0 %v2977
        %3035 = vmatmul.bf16.gmra.mxu0 %v2980
        %v3036 = vpop.f32.mrf.mxu0
        %v3037 = vadd.f32 0.0, %v3036
        %v3038 = vpop.f32.mrf.mxu0
        %v3039 = vadd.f32 0.0, %v3038
        %3040 = vmatmul.bf16.gmra.mxu0 %v2983
        %v3041 = vpop.f32.mrf.mxu0
        %v3042 = vadd.f32 0.0, %v3041
        %v3043 = vpop.f32.mrf.mxu0
        %v3044 = vadd.f32 0.0, %v3043
        %3045 = vmatmul.bf16.gmra.mxu0 %v2986
        %v3046 = vpop.f32.mrf.mxu0
        %v3047 = vadd.f32 0.0, %v3046
        %v3048 = vpop.f32.mrf.mxu0
        %v3049 = vadd.f32 0.0, %v3048
        %3050 = vmatmul.bf16.gmra.mxu0 %v2989
        %v3051 = vpop.f32.mrf.mxu0
        %v3052 = vadd.f32 0.0, %v3051
        %v3053 = vpop.f32.mrf.mxu0
        %v3054 = vadd.f32 0.0, %v3053
        %3055 = vmatmul.bf16.gmra.mxu0 %v2992
        %v3056 = vpop.f32.mrf.mxu0
        %v3057 = vadd.f32 0.0, %v3056
        %v3058 = vpop.f32.mrf.mxu0
        %v3059 = vadd.f32 0.0, %v3058
        %3060 = vmatmul.bf16.gmra.mxu0 %v2995
        %v3061 = vpop.f32.mrf.mxu0
        %v3062 = vadd.f32 0.0, %v3061
        %v3063 = vpop.f32.mrf.mxu0
        %v3064 = vadd.f32 0.0, %v3063
        %3065 = vmatmul.bf16.gmra.mxu0 %v2998
        %v3066 = vpop.f32.mrf.mxu0
        %v3067 = vadd.f32 0.0, %v3066
        %v3068 = vpop.f32.mrf.mxu0
        %v3069 = vadd.f32 0.0, %v3068
        %3070 = vmatmul.bf16.gmra.mxu0 %v3001
        %v3071 = vpop.f32.mrf.mxu0
        %v3072 = vadd.f32 0.0, %v3071
        %v3073 = vpop.f32.mrf.mxu0
        %v3074 = vadd.f32 0.0, %v3073
        %3075 = vmatmul.bf16.gmra.mxu0 %v3004
        %v3076 = vpop.f32.mrf.mxu0
        %v3077 = vadd.f32 0.0, %v3076
        %v3078 = vpop.f32.mrf.mxu0
        %v3079 = vadd.f32 0.0, %v3078
        %3080 = vmatmul.bf16.gmra.mxu0 %v3007
        %v3081 = vpop.f32.mrf.mxu0
        %v3082 = vadd.f32 0.0, %v3081
        %v3083 = vpop.f32.mrf.mxu0
        %v3084 = vadd.f32 0.0, %v3083
        %3085 = vmatmul.bf16.gmra.mxu0 %v3010
        %v3086 = vpop.f32.mrf.mxu0
        %v3087 = vadd.f32 0.0, %v3086
        %v3088 = vpop.f32.mrf.mxu0
        %v3089 = vadd.f32 0.0, %v3088
        %3090 = vmatmul.bf16.gmra.mxu0 %v3013
        %v3091 = vpop.f32.mrf.mxu0
        %v3092 = vadd.f32 0.0, %v3091
        %v3093 = vpop.f32.mrf.mxu0
        %v3094 = vadd.f32 0.0, %v3093
        %3095 = vmatmul.bf16.gmra.mxu0 %v3016
        %v3096 = vpop.f32.mrf.mxu0
        %v3097 = vadd.f32 0.0, %v3096
        %v3098 = vpop.f32.mrf.mxu0
        %v3099 = vadd.f32 0.0, %v3098
        %3100 = vmatmul.bf16.gmra.mxu0 %v3019
        %v3101 = vpop.f32.mrf.mxu0
        %v3102 = vadd.f32 0.0, %v3101
        %v3103 = vpop.f32.mrf.mxu0
        %v3104 = vadd.f32 0.0, %v3103
        %3105 = vmatmul.bf16.gmra.mxu0 %v3022
        %v3106 = vpop.f32.mrf.mxu0
        %v3107 = vadd.f32 0.0, %v3106
        %v3108 = vpop.f32.mrf.mxu0
        %v3109 = vadd.f32 0.0, %v3108
        %3110 = vmatmul.bf16.gmra.mxu0 %v3025
        %v3111 = vpop.f32.mrf.mxu0
        %v3112 = vadd.f32 0.0, %v3111
        %v3113 = vpop.f32.mrf.mxu0
        %v3114 = vadd.f32 0.0, %v3113
        %3115 = vdwg.mxu0
        %s3116 = scalar_lea.vmem %s205, 256
        %3117 = vst.msk [vmem:[%s3116] sm:$0xff] %vm1082, %v3037
        %3118 = vst.msk [vmem:[%s3116 + $0x8] sm:$0xff] %vm1082, %v3039
        %3119 = vst.msk [vmem:[%s3116 + $0x10] sm:$0xff] %vm1082, %v3042
        %3120 = vst.msk [vmem:[%s3116 + $0x18] sm:$0xff] %vm1082, %v3044
        %3121 = vst.msk [vmem:[%s3116 + $0x20] sm:$0xff] %vm1082, %v3047
        %3122 = vst.msk [vmem:[%s3116 + $0x28] sm:$0xff] %vm1082, %v3049
        %3123 = vst.msk [vmem:[%s3116 + $0x30] sm:$0xff] %vm1082, %v3052
        %3124 = vst.msk [vmem:[%s3116 + $0x38] sm:$0xff] %vm1082, %v3054
        %3125 = vst.msk [vmem:[%s3116 + $0x40] sm:$0xff] %vm1082, %v3057
        %3126 = vst.msk [vmem:[%s3116 + $0x48] sm:$0xff] %vm1082, %v3059
        %3127 = vst.msk [vmem:[%s3116 + $0x50] sm:$0xff] %vm1082, %v3062
        %3128 = vst.msk [vmem:[%s3116 + $0x58] sm:$0xff] %vm1082, %v3064
        %3129 = vst.msk [vmem:[%s3116 + $0x60] sm:$0xff] %vm1082, %v3067
        %3130 = vst.msk [vmem:[%s3116 + $0x68] sm:$0xff] %vm1082, %v3069
        %3131 = vst.msk [vmem:[%s3116 + $0x70] sm:$0xff] %vm1082, %v3072
        %3132 = vst.msk [vmem:[%s3116 + $0x78] sm:$0xff] %vm1082, %v3074
        %3133 = vst.msk [vmem:[%s3116 + $0x80] sm:$0xff] %vm1082, %v3077
        %3134 = vst.msk [vmem:[%s3116 + $0x88] sm:$0xff] %vm1082, %v3079
        %3135 = vst.msk [vmem:[%s3116 + $0x90] sm:$0xff] %vm1082, %v3082
        %3136 = vst.msk [vmem:[%s3116 + $0x98] sm:$0xff] %vm1082, %v3084
        %3137 = vst.msk [vmem:[%s3116 + $0xa0] sm:$0xff] %vm1082, %v3087
        %3138 = vst.msk [vmem:[%s3116 + $0xa8] sm:$0xff] %vm1082, %v3089
        %3139 = vst.msk [vmem:[%s3116 + $0xb0] sm:$0xff] %vm1082, %v3092
        %3140 = vst.msk [vmem:[%s3116 + $0xb8] sm:$0xff] %vm1082, %v3094
        %3141 = vst.msk [vmem:[%s3116 + $0xc0] sm:$0xff] %vm1082, %v3097
        %3142 = vst.msk [vmem:[%s3116 + $0xc8] sm:$0xff] %vm1082, %v3099
        %3143 = vst.msk [vmem:[%s3116 + $0xd0] sm:$0xff] %vm1082, %v3102
        %3144 = vst.msk [vmem:[%s3116 + $0xd8] sm:$0xff] %vm1082, %v3104
        %3145 = vst.msk [vmem:[%s3116 + $0xe0] sm:$0xff] %vm1082, %v3107
        %3146 = vst.msk [vmem:[%s3116 + $0xe8] sm:$0xff] %vm1082, %v3109
        %3147 = vst.msk [vmem:[%s3116 + $0xf0] sm:$0xff] %vm1082, %v3112
        %3148 = vst.msk [vmem:[%s3116 + $0xf8] sm:$0xff] %vm1082, %v3114
        %v3149 = vsel %vm1082, %v3037, 0.0
        %v3150 = vsel %vm1082, %v3039, 0.0
        %v3151 = vadd.f32 %v3149, %v3150
        %v3152 = vsel %vm1082, %v3042, 0.0
        %v3153 = vadd.f32 %v3151, %v3152
        %v3154 = vsel %vm1082, %v3044, 0.0
        %v3155 = vadd.f32 %v3153, %v3154
        %v3156 = vsel %vm1082, %v3047, 0.0
        %v3157 = vadd.f32 %v3155, %v3156
        %v3158 = vsel %vm1082, %v3049, 0.0
        %v3159 = vadd.f32 %v3157, %v3158
        %v3160 = vsel %vm1082, %v3052, 0.0
        %v3161 = vadd.f32 %v3159, %v3160
        %v3162 = vsel %vm1082, %v3054, 0.0
        %v3163 = vadd.f32 %v3161, %v3162
        %v3164 = vsel %vm1082, %v3057, 0.0
        %v3165 = vadd.f32 %v3163, %v3164
        %v3166 = vsel %vm1082, %v3059, 0.0
        %v3167 = vadd.f32 %v3165, %v3166
        %v3168 = vsel %vm1082, %v3062, 0.0
        %v3169 = vadd.f32 %v3167, %v3168
        %v3170 = vsel %vm1082, %v3064, 0.0
        %v3171 = vadd.f32 %v3169, %v3170
        %v3172 = vsel %vm1082, %v3067, 0.0
        %v3173 = vadd.f32 %v3171, %v3172
        %v3174 = vsel %vm1082, %v3069, 0.0
        %v3175 = vadd.f32 %v3173, %v3174
        %v3176 = vsel %vm1082, %v3072, 0.0
        %v3177 = vadd.f32 %v3175, %v3176
        %v3178 = vsel %vm1082, %v3074, 0.0
        %v3179 = vadd.f32 %v3177, %v3178
        %v3180 = vsel %vm1082, %v3077, 0.0
        %v3181 = vadd.f32 %v3179, %v3180
        %v3182 = vsel %vm1082, %v3079, 0.0
        %v3183 = vadd.f32 %v3181, %v3182
        %v3184 = vsel %vm1082, %v3082, 0.0
        %v3185 = vadd.f32 %v3183, %v3184
        %v3186 = vsel %vm1082, %v3084, 0.0
        %v3187 = vadd.f32 %v3185, %v3186
        %v3188 = vsel %vm1082, %v3087, 0.0
        %v3189 = vadd.f32 %v3187, %v3188
        %v3190 = vsel %vm1082, %v3089, 0.0
        %v3191 = vadd.f32 %v3189, %v3190
        %v3192 = vsel %vm1082, %v3092, 0.0
        %v3193 = vadd.f32 %v3191, %v3192
        %v3194 = vsel %vm1082, %v3094, 0.0
        %v3195 = vadd.f32 %v3193, %v3194
        %v3196 = vsel %vm1082, %v3097, 0.0
        %v3197 = vadd.f32 %v3195, %v3196
        %v3198 = vsel %vm1082, %v3099, 0.0
        %v3199 = vadd.f32 %v3197, %v3198
        %v3200 = vsel %vm1082, %v3102, 0.0
        %v3201 = vadd.f32 %v3199, %v3200
        %v3202 = vsel %vm1082, %v3104, 0.0
        %v3203 = vadd.f32 %v3201, %v3202
        %v3204 = vsel %vm1082, %v3107, 0.0
        %v3205 = vadd.f32 %v3203, %v3204
        %v3206 = vsel %vm1082, %v3109, 0.0
        %v3207 = vadd.f32 %v3205, %v3206
        %v3208 = vsel %vm1082, %v3112, 0.0
        %v3209 = vadd.f32 %v3207, %v3208
        %v3210 = vsel %vm1082, %v3114, 0.0
        %v3211 = vadd.f32 %v3209, %v3210
        %v3212 = vrot.slane %v3211, 4
        %v3213 = vadd.f32 %v3211, %v3212
        %v3214 = vrot.slane %v3213, 2
        %v3215 = vadd.f32 %v3213, %v3214
        %v3216 = vrot.slane %v3215, 1
        %v3217 = vadd.f32 %v3215, %v3216
        %v3218 = vadd.f32 %v1379, %v3217
        %v3219 = vmul.f32 %v3037, %v3037
        %v3220 = vmul.f32 %v3039, %v3039
        %v3221 = vmul.f32 %v3042, %v3042
        %v3222 = vmul.f32 %v3044, %v3044
        %v3223 = vmul.f32 %v3047, %v3047
        %v3224 = vmul.f32 %v3049, %v3049
        %v3225 = vmul.f32 %v3052, %v3052
        %v3226 = vmul.f32 %v3054, %v3054
        %v3227 = vmul.f32 %v3057, %v3057
        %v3228 = vmul.f32 %v3059, %v3059
        %v3229 = vmul.f32 %v3062, %v3062
        %v3230 = vmul.f32 %v3064, %v3064
        %v3231 = vmul.f32 %v3067, %v3067
        %v3232 = vmul.f32 %v3069, %v3069
        %v3233 = vmul.f32 %v3072, %v3072
        %v3234 = vmul.f32 %v3074, %v3074
        %v3235 = vmul.f32 %v3077, %v3077
        %v3236 = vmul.f32 %v3079, %v3079
        %v3237 = vmul.f32 %v3082, %v3082
        %v3238 = vmul.f32 %v3084, %v3084
        %v3239 = vmul.f32 %v3087, %v3087
        %v3240 = vmul.f32 %v3089, %v3089
        %v3241 = vmul.f32 %v3092, %v3092
        %v3242 = vmul.f32 %v3094, %v3094
        %v3243 = vmul.f32 %v3097, %v3097
        %v3244 = vmul.f32 %v3099, %v3099
        %v3245 = vmul.f32 %v3102, %v3102
        %v3246 = vmul.f32 %v3104, %v3104
        %v3247 = vmul.f32 %v3107, %v3107
        %v3248 = vmul.f32 %v3109, %v3109
        %v3249 = vmul.f32 %v3112, %v3112
        %v3250 = vmul.f32 %v3114, %v3114
        %v3251 = vsel %vm1082, %v3219, 0.0
        %v3252 = vsel %vm1082, %v3220, 0.0
        %v3253 = vadd.f32 %v3251, %v3252
        %v3254 = vsel %vm1082, %v3221, 0.0
        %v3255 = vadd.f32 %v3253, %v3254
        %v3256 = vsel %vm1082, %v3222, 0.0
        %v3257 = vadd.f32 %v3255, %v3256
        %v3258 = vsel %vm1082, %v3223, 0.0
        %v3259 = vadd.f32 %v3257, %v3258
        %v3260 = vsel %vm1082, %v3224, 0.0
        %v3261 = vadd.f32 %v3259, %v3260
        %v3262 = vsel %vm1082, %v3225, 0.0
        %v3263 = vadd.f32 %v3261, %v3262
        %v3264 = vsel %vm1082, %v3226, 0.0
        %v3265 = vadd.f32 %v3263, %v3264
        %v3266 = vsel %vm1082, %v3227, 0.0
        %v3267 = vadd.f32 %v3265, %v3266
        %v3268 = vsel %vm1082, %v3228, 0.0
        %v3269 = vadd.f32 %v3267, %v3268
        %v3270 = vsel %vm1082, %v3229, 0.0
        %v3271 = vadd.f32 %v3269, %v3270
        %v3272 = vsel %vm1082, %v3230, 0.0
        %v3273 = vadd.f32 %v3271, %v3272
        %v3274 = vsel %vm1082, %v3231, 0.0
        %v3275 = vadd.f32 %v3273, %v3274
        %v3276 = vsel %vm1082, %v3232, 0.0
        %v3277 = vadd.f32 %v3275, %v3276
        %v3278 = vsel %vm1082, %v3233, 0.0
        %v3279 = vadd.f32 %v3277, %v3278
        %v3280 = vsel %vm1082, %v3234, 0.0
        %v3281 = vadd.f32 %v3279, %v3280
        %v3282 = vsel %vm1082, %v3235, 0.0
        %v3283 = vadd.f32 %v3281, %v3282
        %v3284 = vsel %vm1082, %v3236, 0.0
        %v3285 = vadd.f32 %v3283, %v3284
        %v3286 = vsel %vm1082, %v3237, 0.0
        %v3287 = vadd.f32 %v3285, %v3286
        %v3288 = vsel %vm1082, %v3238, 0.0
        %v3289 = vadd.f32 %v3287, %v3288
        %v3290 = vsel %vm1082, %v3239, 0.0
        %v3291 = vadd.f32 %v3289, %v3290
        %v3292 = vsel %vm1082, %v3240, 0.0
        %v3293 = vadd.f32 %v3291, %v3292
        %v3294 = vsel %vm1082, %v3241, 0.0
        %v3295 = vadd.f32 %v3293, %v3294
        %v3296 = vsel %vm1082, %v3242, 0.0
        %v3297 = vadd.f32 %v3295, %v3296
        %v3298 = vsel %vm1082, %v3243, 0.0
        %v3299 = vadd.f32 %v3297, %v3298
        %v3300 = vsel %vm1082, %v3244, 0.0
        %v3301 = vadd.f32 %v3299, %v3300
        %v3302 = vsel %vm1082, %v3245, 0.0
        %v3303 = vadd.f32 %v3301, %v3302
        %v3304 = vsel %vm1082, %v3246, 0.0
        %v3305 = vadd.f32 %v3303, %v3304
        %v3306 = vsel %vm1082, %v3247, 0.0
        %v3307 = vadd.f32 %v3305, %v3306
        %v3308 = vsel %vm1082, %v3248, 0.0
        %v3309 = vadd.f32 %v3307, %v3308
        %v3310 = vsel %vm1082, %v3249, 0.0
        %v3311 = vadd.f32 %v3309, %v3310
        %v3312 = vsel %vm1082, %v3250, 0.0
        %v3313 = vadd.f32 %v3311, %v3312
        %v3314 = vrot.slane %v3313, 4
        %v3315 = vadd.f32 %v3313, %v3314
        %v3316 = vrot.slane %v3315, 2
        %v3317 = vadd.f32 %v3315, %v3316
        %v3318 = vrot.slane %v3317, 1
        %v3319 = vadd.f32 %v3317, %v3318
        %v3320 = vadd.f32 %v1481, %v3319
        %v3321 = vld [vmem:[%s263] sm:$0xf]
        %v3322 = vld [vmem:[%s263 + $0x4] sm:$0xf]
        %v3323 = vld [vmem:[%s263 + $0xc] sm:$0xf]
        %v3324 = vld [vmem:[%s263 + $0x10] sm:$0xf]
        %v3325 = vld [vmem:[%s263 + $0x18] sm:$0xf]
        %v3326 = vld [vmem:[%s263 + $0x1c] sm:$0xf]
        %v3327 = vld [vmem:[%s263 + $0x24] sm:$0xf]
        %v3328 = vld [vmem:[%s263 + $0x28] sm:$0xf]
        %v3329 = vld [vmem:[%s263 + $0x30] sm:$0xf]
        %v3330 = vld [vmem:[%s263 + $0x34] sm:$0xf]
        %v3331 = vld [vmem:[%s263 + $0x3c] sm:$0xf]
        %v3332 = vld [vmem:[%s263 + $0x40] sm:$0xf]
        %v3333 = vld [vmem:[%s263 + $0x48] sm:$0xf]
        %v3334 = vld [vmem:[%s263 + $0x4c] sm:$0xf]
        %v3335 = vld [vmem:[%s263 + $0x54] sm:$0xf]
        %v3336 = vld [vmem:[%s263 + $0x58] sm:$0xf]
        %v3337 = vld [vmem:[%s263 + $0x60] sm:$0xf]
        %v3338 = vld [vmem:[%s263 + $0x64] sm:$0xf]
        %v3339 = vld [vmem:[%s263 + $0x6c] sm:$0xf]
        %v3340 = vld [vmem:[%s263 + $0x70] sm:$0xf]
        %v3341 = vld [vmem:[%s263 + $0x78] sm:$0xf]
        %v3342 = vld [vmem:[%s263 + $0x7c] sm:$0xf]
        %v3343 = vld [vmem:[%s263 + $0x84] sm:$0xf]
        %v3344 = vld [vmem:[%s263 + $0x88] sm:$0xf]
        %v3345 = vld [vmem:[%s263 + $0x90] sm:$0xf]
        %v3346 = vld [vmem:[%s263 + $0x94] sm:$0xf]
        %v3347 = vld [vmem:[%s263 + $0x9c] sm:$0xf]
        %v3348 = vld [vmem:[%s263 + $0xa0] sm:$0xf]
        %v3349 = vld [vmem:[%s263 + $0xa8] sm:$0xf]
        %v3350 = vld [vmem:[%s263 + $0xac] sm:$0xf]
        %v3351 = vld [vmem:[%s263 + $0xb4] sm:$0xf]
        %v3352 = vld [vmem:[%s263 + $0xb8] sm:$0xf]
        %v3353 = vld [vmem:[%s263 + $0x8] sm:$0x1]
        %v3354 = vld [vmem:[%s263 + $0x14] sm:$0x1]
        %v3355 = vld [vmem:[%s263 + $0x20] sm:$0x1]
        %v3356 = vld [vmem:[%s263 + $0x2c] sm:$0x1]
        %v3357 = vld [vmem:[%s263 + $0x38] sm:$0x1]
        %v3358 = vld [vmem:[%s263 + $0x44] sm:$0x1]
        %v3359 = vld [vmem:[%s263 + $0x50] sm:$0x1]
        %v3360 = vld [vmem:[%s263 + $0x5c] sm:$0x1]
        %v3361 = vld [vmem:[%s263 + $0x68] sm:$0x1]
        %v3362 = vld [vmem:[%s263 + $0x74] sm:$0x1]
        %v3363 = vld [vmem:[%s263 + $0x80] sm:$0x1]
        %v3364 = vld [vmem:[%s263 + $0x8c] sm:$0x1]
        %v3365 = vld [vmem:[%s263 + $0x98] sm:$0x1]
        %v3366 = vld [vmem:[%s263 + $0xa4] sm:$0x1]
        %v3367 = vld [vmem:[%s263 + $0xb0] sm:$0x1]
        %v3368 = vld [vmem:[%s263 + $0xbc] sm:$0x1]
        %s3369 = sadd.s32 %s208, 2
        %s3370 = smul.u32 %s3369, 3
        %s3371 = smul.addr %s3370, 4
        %s3372 = scalar_lea.vmem %s196, %s3371
        %v3373 = vld [vmem:[%s3372] sm:$0xf]
        %v3374 = vld [vmem:[%s3372 + $0x4] sm:$0xf]
        %v3375 = vld [vmem:[%s3372 + $0xc] sm:$0xf]
        %v3376 = vld [vmem:[%s3372 + $0x10] sm:$0xf]
        %v3377 = vld [vmem:[%s3372 + $0x18] sm:$0xf]
        %v3378 = vld [vmem:[%s3372 + $0x1c] sm:$0xf]
        %v3379 = vld [vmem:[%s3372 + $0x24] sm:$0xf]
        %v3380 = vld [vmem:[%s3372 + $0x28] sm:$0xf]
        %v3381 = vld [vmem:[%s3372 + $0x30] sm:$0xf]
        %v3382 = vld [vmem:[%s3372 + $0x34] sm:$0xf]
        %v3383 = vld [vmem:[%s3372 + $0x3c] sm:$0xf]
        %v3384 = vld [vmem:[%s3372 + $0x40] sm:$0xf]
        %v3385 = vld [vmem:[%s3372 + $0x48] sm:$0xf]
        %v3386 = vld [vmem:[%s3372 + $0x4c] sm:$0xf]
        %v3387 = vld [vmem:[%s3372 + $0x54] sm:$0xf]
        %v3388 = vld [vmem:[%s3372 + $0x58] sm:$0xf]
        %v3389 = vld [vmem:[%s3372 + $0x60] sm:$0xf]
        %v3390 = vld [vmem:[%s3372 + $0x64] sm:$0xf]
        %v3391 = vld [vmem:[%s3372 + $0x6c] sm:$0xf]
        %v3392 = vld [vmem:[%s3372 + $0x70] sm:$0xf]
        %v3393 = vld [vmem:[%s3372 + $0x78] sm:$0xf]
        %v3394 = vld [vmem:[%s3372 + $0x7c] sm:$0xf]
        %v3395 = vld [vmem:[%s3372 + $0x84] sm:$0xf]
        %v3396 = vld [vmem:[%s3372 + $0x88] sm:$0xf]
        %v3397 = vld [vmem:[%s3372 + $0x90] sm:$0xf]
        %v3398 = vld [vmem:[%s3372 + $0x94] sm:$0xf]
        %v3399 = vld [vmem:[%s3372 + $0x9c] sm:$0xf]
        %v3400 = vld [vmem:[%s3372 + $0xa0] sm:$0xf]
        %v3401 = vld [vmem:[%s3372 + $0xa8] sm:$0xf]
        %v3402 = vld [vmem:[%s3372 + $0xac] sm:$0xf]
        %v3403 = vld [vmem:[%s3372 + $0xb4] sm:$0xf]
        %v3404 = vld [vmem:[%s3372 + $0xb8] sm:$0xf]
        %v3405 = vld [vmem:[%s3372 + $0x8] sm:$0x1]
        %v3406 = vld [vmem:[%s3372 + $0x14] sm:$0x1]
        %v3407 = vld [vmem:[%s3372 + $0x20] sm:$0x1]
        %v3408 = vld [vmem:[%s3372 + $0x2c] sm:$0x1]
        %v3409 = vld [vmem:[%s3372 + $0x38] sm:$0x1]
        %v3410 = vld [vmem:[%s3372 + $0x44] sm:$0x1]
        %v3411 = vld [vmem:[%s3372 + $0x50] sm:$0x1]
        %v3412 = vld [vmem:[%s3372 + $0x5c] sm:$0x1]
        %v3413 = vld [vmem:[%s3372 + $0x68] sm:$0x1]
        %v3414 = vld [vmem:[%s3372 + $0x74] sm:$0x1]
        %v3415 = vld [vmem:[%s3372 + $0x80] sm:$0x1]
        %v3416 = vld [vmem:[%s3372 + $0x8c] sm:$0x1]
        %v3417 = vld [vmem:[%s3372 + $0x98] sm:$0x1]
        %v3418 = vld [vmem:[%s3372 + $0xa4] sm:$0x1]
        %v3419 = vld [vmem:[%s3372 + $0xb0] sm:$0x1]
        %v3420 = vld [vmem:[%s3372 + $0xbc] sm:$0x1]
        %v3453 = vunpack.c.l.b16 %v3321
        %v3454 = vunpack.c.l.b16 %v3322
        %v3455 = vunpack.c.l.b16 %v3323
        %v3456 = vunpack.c.l.b16 %v3324
        %v3457 = vunpack.c.l.b16 %v3325
        %v3458 = vunpack.c.l.b16 %v3326
        %v3459 = vunpack.c.l.b16 %v3327
        %v3460 = vunpack.c.l.b16 %v3328
        %v3461 = vunpack.c.l.b16 %v3329
        %v3462 = vunpack.c.l.b16 %v3330
        %v3463 = vunpack.c.l.b16 %v3331
        %v3464 = vunpack.c.l.b16 %v3332
        %v3465 = vunpack.c.l.b16 %v3333
        %v3466 = vunpack.c.l.b16 %v3334
        %v3467 = vunpack.c.l.b16 %v3335
        %v3468 = vunpack.c.l.b16 %v3336
        %v3469 = vunpack.c.l.b16 %v3337
        %v3470 = vunpack.c.l.b16 %v3338
        %v3471 = vunpack.c.l.b16 %v3339
        %v3472 = vunpack.c.l.b16 %v3340
        %v3473 = vunpack.c.l.b16 %v3341
        %v3474 = vunpack.c.l.b16 %v3342
        %v3475 = vunpack.c.l.b16 %v3343
        %v3476 = vunpack.c.l.b16 %v3344
        %v3477 = vunpack.c.l.b16 %v3345
        %v3478 = vunpack.c.l.b16 %v3346
        %v3479 = vunpack.c.l.b16 %v3347
        %v3480 = vunpack.c.l.b16 %v3348
        %v3481 = vunpack.c.l.b16 %v3349
        %v3482 = vunpack.c.l.b16 %v3350
        %v3483 = vunpack.c.l.b16 %v3351
        %v3484 = vunpack.c.l.b16 %v3352
        %v3485 = vpack.c.b16 %v3454, %v3453
        %v3486 = vpack.c.b16 %v3456, %v3455
        %v3487 = vpack.c.b16 %v3458, %v3457
        %v3488 = vpack.c.b16 %v3460, %v3459
        %v3489 = vpack.c.b16 %v3462, %v3461
        %v3490 = vpack.c.b16 %v3464, %v3463
        %v3491 = vpack.c.b16 %v3466, %v3465
        %v3492 = vpack.c.b16 %v3468, %v3467
        %v3493 = vpack.c.b16 %v3470, %v3469
        %v3494 = vpack.c.b16 %v3472, %v3471
        %v3495 = vpack.c.b16 %v3474, %v3473
        %v3496 = vpack.c.b16 %v3476, %v3475
        %v3497 = vpack.c.b16 %v3478, %v3477
        %v3498 = vpack.c.b16 %v3480, %v3479
        %v3499 = vpack.c.b16 %v3482, %v3481
        %v3500 = vpack.c.b16 %v3484, %v3483
        %v3517 = vunpack.c.l.b16 %v3353
        %v3518 = vunpack.c.l.b16 %v3354
        %v3519 = vunpack.c.l.b16 %v3355
        %v3520 = vunpack.c.l.b16 %v3356
        %v3521 = vunpack.c.l.b16 %v3357
        %v3522 = vunpack.c.l.b16 %v3358
        %v3523 = vunpack.c.l.b16 %v3359
        %v3524 = vunpack.c.l.b16 %v3360
        %v3525 = vunpack.c.l.b16 %v3361
        %v3526 = vunpack.c.l.b16 %v3362
        %v3527 = vunpack.c.l.b16 %v3363
        %v3528 = vunpack.c.l.b16 %v3364
        %v3529 = vunpack.c.l.b16 %v3365
        %v3530 = vunpack.c.l.b16 %v3366
        %v3531 = vunpack.c.l.b16 %v3367
        %v3532 = vunpack.c.l.b16 %v3368
        %v3533 = vpack.c.b16 %v3517, %v3517
        %v3534 = vpack.c.b16 %v3518, %v3518
        %v3535 = vpack.c.b16 %v3519, %v3519
        %v3536 = vpack.c.b16 %v3520, %v3520
        %v3537 = vpack.c.b16 %v3521, %v3521
        %v3538 = vpack.c.b16 %v3522, %v3522
        %v3539 = vpack.c.b16 %v3523, %v3523
        %v3540 = vpack.c.b16 %v3524, %v3524
        %v3541 = vpack.c.b16 %v3525, %v3525
        %v3542 = vpack.c.b16 %v3526, %v3526
        %v3543 = vpack.c.b16 %v3527, %v3527
        %v3544 = vpack.c.b16 %v3528, %v3528
        %v3545 = vpack.c.b16 %v3529, %v3529
        %v3546 = vpack.c.b16 %v3530, %v3530
        %v3547 = vpack.c.b16 %v3531, %v3531
        %v3548 = vpack.c.b16 %v3532, %v3532
        %v3550 = vshrl.u32 %v3485, 16
        %v3552 = vshll.u32 %v3485, 16
        %v3554 = vrot.slane %v3552, 1
        %v3555 = vor.u32 %v3550, %v3554
        %v3557 = vshll.u32 %v3533, 16
        %v3559 = vrot.slane %v3557, 1
        %v3560 = vsel %vm440, %v3555, %v3559
        %v3562 = vshrl.u32 %v3486, 16
        %v3564 = vshll.u32 %v3486, 16
        %v3566 = vrot.slane %v3564, 1
        %v3567 = vor.u32 %v3562, %v3566
        %v3569 = vshll.u32 %v3534, 16
        %v3571 = vrot.slane %v3569, 1
        %v3572 = vsel %vm440, %v3567, %v3571
        %v3574 = vshrl.u32 %v3487, 16
        %v3576 = vshll.u32 %v3487, 16
        %v3578 = vrot.slane %v3576, 1
        %v3579 = vor.u32 %v3574, %v3578
        %v3581 = vshll.u32 %v3535, 16
        %v3583 = vrot.slane %v3581, 1
        %v3584 = vsel %vm440, %v3579, %v3583
        %v3586 = vshrl.u32 %v3488, 16
        %v3588 = vshll.u32 %v3488, 16
        %v3590 = vrot.slane %v3588, 1
        %v3591 = vor.u32 %v3586, %v3590
        %v3593 = vshll.u32 %v3536, 16
        %v3595 = vrot.slane %v3593, 1
        %v3596 = vsel %vm440, %v3591, %v3595
        %v3598 = vshrl.u32 %v3489, 16
        %v3600 = vshll.u32 %v3489, 16
        %v3602 = vrot.slane %v3600, 1
        %v3603 = vor.u32 %v3598, %v3602
        %v3605 = vshll.u32 %v3537, 16
        %v3607 = vrot.slane %v3605, 1
        %v3608 = vsel %vm440, %v3603, %v3607
        %v3610 = vshrl.u32 %v3490, 16
        %v3612 = vshll.u32 %v3490, 16
        %v3614 = vrot.slane %v3612, 1
        %v3615 = vor.u32 %v3610, %v3614
        %v3617 = vshll.u32 %v3538, 16
        %v3619 = vrot.slane %v3617, 1
        %v3620 = vsel %vm440, %v3615, %v3619
        %v3622 = vshrl.u32 %v3491, 16
        %v3624 = vshll.u32 %v3491, 16
        %v3626 = vrot.slane %v3624, 1
        %v3627 = vor.u32 %v3622, %v3626
        %v3629 = vshll.u32 %v3539, 16
        %v3631 = vrot.slane %v3629, 1
        %v3632 = vsel %vm440, %v3627, %v3631
        %v3634 = vshrl.u32 %v3492, 16
        %v3636 = vshll.u32 %v3492, 16
        %v3638 = vrot.slane %v3636, 1
        %v3639 = vor.u32 %v3634, %v3638
        %v3641 = vshll.u32 %v3540, 16
        %v3643 = vrot.slane %v3641, 1
        %v3644 = vsel %vm440, %v3639, %v3643
        %v3646 = vshrl.u32 %v3493, 16
        %v3648 = vshll.u32 %v3493, 16
        %v3650 = vrot.slane %v3648, 1
        %v3651 = vor.u32 %v3646, %v3650
        %v3653 = vshll.u32 %v3541, 16
        %v3655 = vrot.slane %v3653, 1
        %v3656 = vsel %vm440, %v3651, %v3655
        %v3658 = vshrl.u32 %v3494, 16
        %v3660 = vshll.u32 %v3494, 16
        %v3662 = vrot.slane %v3660, 1
        %v3663 = vor.u32 %v3658, %v3662
        %v3665 = vshll.u32 %v3542, 16
        %v3667 = vrot.slane %v3665, 1
        %v3668 = vsel %vm440, %v3663, %v3667
        %v3670 = vshrl.u32 %v3495, 16
        %v3672 = vshll.u32 %v3495, 16
        %v3674 = vrot.slane %v3672, 1
        %v3675 = vor.u32 %v3670, %v3674
        %v3677 = vshll.u32 %v3543, 16
        %v3679 = vrot.slane %v3677, 1
        %v3680 = vsel %vm440, %v3675, %v3679
        %v3682 = vshrl.u32 %v3496, 16
        %v3684 = vshll.u32 %v3496, 16
        %v3686 = vrot.slane %v3684, 1
        %v3687 = vor.u32 %v3682, %v3686
        %v3689 = vshll.u32 %v3544, 16
        %v3691 = vrot.slane %v3689, 1
        %v3692 = vsel %vm440, %v3687, %v3691
        %v3694 = vshrl.u32 %v3497, 16
        %v3696 = vshll.u32 %v3497, 16
        %v3698 = vrot.slane %v3696, 1
        %v3699 = vor.u32 %v3694, %v3698
        %v3701 = vshll.u32 %v3545, 16
        %v3703 = vrot.slane %v3701, 1
        %v3704 = vsel %vm440, %v3699, %v3703
        %v3706 = vshrl.u32 %v3498, 16
        %v3708 = vshll.u32 %v3498, 16
        %v3710 = vrot.slane %v3708, 1
        %v3711 = vor.u32 %v3706, %v3710
        %v3713 = vshll.u32 %v3546, 16
        %v3715 = vrot.slane %v3713, 1
        %v3716 = vsel %vm440, %v3711, %v3715
        %v3718 = vshrl.u32 %v3499, 16
        %v3720 = vshll.u32 %v3499, 16
        %v3722 = vrot.slane %v3720, 1
        %v3723 = vor.u32 %v3718, %v3722
        %v3725 = vshll.u32 %v3547, 16
        %v3727 = vrot.slane %v3725, 1
        %v3728 = vsel %vm440, %v3723, %v3727
        %v3730 = vshrl.u32 %v3500, 16
        %v3732 = vshll.u32 %v3500, 16
        %v3734 = vrot.slane %v3732, 1
        %v3735 = vor.u32 %v3730, %v3734
        %v3737 = vshll.u32 %v3548, 16
        %v3739 = vrot.slane %v3737, 1
        %v3740 = vsel %vm440, %v3735, %v3739
        %3741 = vrot.lane.b32.xlu0 %v3560, 4
        %v3742 = vpop.permute.xlu0 %3741
        %3743 = vrot.lane.b32.xlu0 %v3572, 4
        %v3744 = vpop.permute.xlu0 %3743
        %3745 = vrot.lane.b32.xlu0 %v3584, 4
        %v3746 = vpop.permute.xlu0 %3745
        %3747 = vrot.lane.b32.xlu0 %v3596, 4
        %v3748 = vpop.permute.xlu0 %3747
        %3749 = vrot.lane.b32.xlu0 %v3608, 4
        %v3750 = vpop.permute.xlu0 %3749
        %3751 = vrot.lane.b32.xlu0 %v3620, 4
        %v3752 = vpop.permute.xlu0 %3751
        %3753 = vrot.lane.b32.xlu0 %v3632, 4
        %v3754 = vpop.permute.xlu0 %3753
        %3755 = vrot.lane.b32.xlu0 %v3644, 4
        %v3756 = vpop.permute.xlu0 %3755
        %3757 = vrot.lane.b32.xlu0 %v3656, 4
        %v3758 = vpop.permute.xlu0 %3757
        %3759 = vrot.lane.b32.xlu0 %v3668, 4
        %v3760 = vpop.permute.xlu0 %3759
        %3761 = vrot.lane.b32.xlu0 %v3680, 4
        %v3762 = vpop.permute.xlu0 %3761
        %3763 = vrot.lane.b32.xlu0 %v3692, 4
        %v3764 = vpop.permute.xlu0 %3763
        %3765 = vrot.lane.b32.xlu0 %v3704, 4
        %v3766 = vpop.permute.xlu0 %3765
        %3767 = vrot.lane.b32.xlu0 %v3716, 4
        %v3768 = vpop.permute.xlu0 %3767
        %3769 = vrot.lane.b32.xlu0 %v3728, 4
        %v3770 = vpop.permute.xlu0 %3769
        %3771 = vrot.lane.b32.xlu0 %v3740, 4
        %v3772 = vpop.permute.xlu0 %3771
        %v3805 = vunpack.c.l.b16 %v3373
        %v3806 = vunpack.c.l.b16 %v3374
        %v3807 = vunpack.c.l.b16 %v3375
        %v3808 = vunpack.c.l.b16 %v3376
        %v3809 = vunpack.c.l.b16 %v3377
        %v3810 = vunpack.c.l.b16 %v3378
        %v3811 = vunpack.c.l.b16 %v3379
        %v3812 = vunpack.c.l.b16 %v3380
        %v3813 = vunpack.c.l.b16 %v3381
        %v3814 = vunpack.c.l.b16 %v3382
        %v3815 = vunpack.c.l.b16 %v3383
        %v3816 = vunpack.c.l.b16 %v3384
        %v3817 = vunpack.c.l.b16 %v3385
        %v3818 = vunpack.c.l.b16 %v3386
        %v3819 = vunpack.c.l.b16 %v3387
        %v3820 = vunpack.c.l.b16 %v3388
        %v3821 = vunpack.c.l.b16 %v3389
        %v3822 = vunpack.c.l.b16 %v3390
        %v3823 = vunpack.c.l.b16 %v3391
        %v3824 = vunpack.c.l.b16 %v3392
        %v3825 = vunpack.c.l.b16 %v3393
        %v3826 = vunpack.c.l.b16 %v3394
        %v3827 = vunpack.c.l.b16 %v3395
        %v3828 = vunpack.c.l.b16 %v3396
        %v3829 = vunpack.c.l.b16 %v3397
        %v3830 = vunpack.c.l.b16 %v3398
        %v3831 = vunpack.c.l.b16 %v3399
        %v3832 = vunpack.c.l.b16 %v3400
        %v3833 = vunpack.c.l.b16 %v3401
        %v3834 = vunpack.c.l.b16 %v3402
        %v3835 = vunpack.c.l.b16 %v3403
        %v3836 = vunpack.c.l.b16 %v3404
        %v3837 = vpack.c.b16 %v3806, %v3805
        %v3838 = vpack.c.b16 %v3808, %v3807
        %v3839 = vpack.c.b16 %v3810, %v3809
        %v3840 = vpack.c.b16 %v3812, %v3811
        %v3841 = vpack.c.b16 %v3814, %v3813
        %v3842 = vpack.c.b16 %v3816, %v3815
        %v3843 = vpack.c.b16 %v3818, %v3817
        %v3844 = vpack.c.b16 %v3820, %v3819
        %v3845 = vpack.c.b16 %v3822, %v3821
        %v3846 = vpack.c.b16 %v3824, %v3823
        %v3847 = vpack.c.b16 %v3826, %v3825
        %v3848 = vpack.c.b16 %v3828, %v3827
        %v3849 = vpack.c.b16 %v3830, %v3829
        %v3850 = vpack.c.b16 %v3832, %v3831
        %v3851 = vpack.c.b16 %v3834, %v3833
        %v3852 = vpack.c.b16 %v3836, %v3835
        %3853 = vrot.lane.b32.xlu0 %v3837, 8
        %v3854 = vpop.permute.xlu0 %3853
        %3855 = vrot.lane.b32.xlu0 %v3838, 8
        %v3856 = vpop.permute.xlu0 %3855
        %3857 = vrot.lane.b32.xlu0 %v3839, 8
        %v3858 = vpop.permute.xlu0 %3857
        %3859 = vrot.lane.b32.xlu0 %v3840, 8
        %v3860 = vpop.permute.xlu0 %3859
        %3861 = vrot.lane.b32.xlu0 %v3841, 8
        %v3862 = vpop.permute.xlu0 %3861
        %3863 = vrot.lane.b32.xlu0 %v3842, 8
        %v3864 = vpop.permute.xlu0 %3863
        %3865 = vrot.lane.b32.xlu0 %v3843, 8
        %v3866 = vpop.permute.xlu0 %3865
        %3867 = vrot.lane.b32.xlu0 %v3844, 8
        %v3868 = vpop.permute.xlu0 %3867
        %3869 = vrot.lane.b32.xlu0 %v3845, 8
        %v3870 = vpop.permute.xlu0 %3869
        %3871 = vrot.lane.b32.xlu0 %v3846, 8
        %v3872 = vpop.permute.xlu0 %3871
        %3873 = vrot.lane.b32.xlu0 %v3847, 8
        %v3874 = vpop.permute.xlu0 %3873
        %3875 = vrot.lane.b32.xlu0 %v3848, 8
        %v3876 = vpop.permute.xlu0 %3875
        %3877 = vrot.lane.b32.xlu0 %v3849, 8
        %v3878 = vpop.permute.xlu0 %3877
        %3879 = vrot.lane.b32.xlu0 %v3850, 8
        %v3880 = vpop.permute.xlu0 %3879
        %3881 = vrot.lane.b32.xlu0 %v3851, 8
        %v3882 = vpop.permute.xlu0 %3881
        %3883 = vrot.lane.b32.xlu0 %v3852, 8
        %v3884 = vpop.permute.xlu0 %3883
        %v3901 = vunpack.c.l.b16 %v3405
        %v3902 = vunpack.c.l.b16 %v3406
        %v3903 = vunpack.c.l.b16 %v3407
        %v3904 = vunpack.c.l.b16 %v3408
        %v3905 = vunpack.c.l.b16 %v3409
        %v3906 = vunpack.c.l.b16 %v3410
        %v3907 = vunpack.c.l.b16 %v3411
        %v3908 = vunpack.c.l.b16 %v3412
        %v3909 = vunpack.c.l.b16 %v3413
        %v3910 = vunpack.c.l.b16 %v3414
        %v3911 = vunpack.c.l.b16 %v3415
        %v3912 = vunpack.c.l.b16 %v3416
        %v3913 = vunpack.c.l.b16 %v3417
        %v3914 = vunpack.c.l.b16 %v3418
        %v3915 = vunpack.c.l.b16 %v3419
        %v3916 = vunpack.c.l.b16 %v3420
        %v3917 = vpack.c.b16 %v3901, %v3901
        %v3918 = vpack.c.b16 %v3902, %v3902
        %v3919 = vpack.c.b16 %v3903, %v3903
        %v3920 = vpack.c.b16 %v3904, %v3904
        %v3921 = vpack.c.b16 %v3905, %v3905
        %v3922 = vpack.c.b16 %v3906, %v3906
        %v3923 = vpack.c.b16 %v3907, %v3907
        %v3924 = vpack.c.b16 %v3908, %v3908
        %v3925 = vpack.c.b16 %v3909, %v3909
        %v3926 = vpack.c.b16 %v3910, %v3910
        %v3927 = vpack.c.b16 %v3911, %v3911
        %v3928 = vpack.c.b16 %v3912, %v3912
        %v3929 = vpack.c.b16 %v3913, %v3913
        %v3930 = vpack.c.b16 %v3914, %v3914
        %v3931 = vpack.c.b16 %v3915, %v3915
        %v3932 = vpack.c.b16 %v3916, %v3916
        %v3934 = vshrl.u32 %v3837, 16
        %v3936 = vshll.u32 %v3837, 16
        %v3938 = vrot.slane %v3936, 1
        %v3939 = vor.u32 %v3934, %v3938
        %v3941 = vshll.u32 %v3917, 16
        %v3943 = vrot.slane %v3941, 1
        %v3944 = vsel %vm440, %v3939, %v3943
        %v3946 = vshrl.u32 %v3838, 16
        %v3948 = vshll.u32 %v3838, 16
        %v3950 = vrot.slane %v3948, 1
        %v3951 = vor.u32 %v3946, %v3950
        %v3953 = vshll.u32 %v3918, 16
        %v3955 = vrot.slane %v3953, 1
        %v3956 = vsel %vm440, %v3951, %v3955
        %v3958 = vshrl.u32 %v3839, 16
        %v3960 = vshll.u32 %v3839, 16
        %v3962 = vrot.slane %v3960, 1
        %v3963 = vor.u32 %v3958, %v3962
        %v3965 = vshll.u32 %v3919, 16
        %v3967 = vrot.slane %v3965, 1
        %v3968 = vsel %vm440, %v3963, %v3967
        %v3970 = vshrl.u32 %v3840, 16
        %v3972 = vshll.u32 %v3840, 16
        %v3974 = vrot.slane %v3972, 1
        %v3975 = vor.u32 %v3970, %v3974
        %v3977 = vshll.u32 %v3920, 16
        %v3979 = vrot.slane %v3977, 1
        %v3980 = vsel %vm440, %v3975, %v3979
        %v3982 = vshrl.u32 %v3841, 16
        %v3984 = vshll.u32 %v3841, 16
        %v3986 = vrot.slane %v3984, 1
        %v3987 = vor.u32 %v3982, %v3986
        %v3989 = vshll.u32 %v3921, 16
        %v3991 = vrot.slane %v3989, 1
        %v3992 = vsel %vm440, %v3987, %v3991
        %v3994 = vshrl.u32 %v3842, 16
        %v3996 = vshll.u32 %v3842, 16
        %v3998 = vrot.slane %v3996, 1
        %v3999 = vor.u32 %v3994, %v3998
        %v4001 = vshll.u32 %v3922, 16
        %v4003 = vrot.slane %v4001, 1
        %v4004 = vsel %vm440, %v3999, %v4003
        %v4006 = vshrl.u32 %v3843, 16
        %v4008 = vshll.u32 %v3843, 16
        %v4010 = vrot.slane %v4008, 1
        %v4011 = vor.u32 %v4006, %v4010
        %v4013 = vshll.u32 %v3923, 16
        %v4015 = vrot.slane %v4013, 1
        %v4016 = vsel %vm440, %v4011, %v4015
        %v4018 = vshrl.u32 %v3844, 16
        %v4020 = vshll.u32 %v3844, 16
        %v4022 = vrot.slane %v4020, 1
        %v4023 = vor.u32 %v4018, %v4022
        %v4025 = vshll.u32 %v3924, 16
        %v4027 = vrot.slane %v4025, 1
        %v4028 = vsel %vm440, %v4023, %v4027
        %v4030 = vshrl.u32 %v3845, 16
        %v4032 = vshll.u32 %v3845, 16
        %v4034 = vrot.slane %v4032, 1
        %v4035 = vor.u32 %v4030, %v4034
        %v4037 = vshll.u32 %v3925, 16
        %v4039 = vrot.slane %v4037, 1
        %v4040 = vsel %vm440, %v4035, %v4039
        %v4042 = vshrl.u32 %v3846, 16
        %v4044 = vshll.u32 %v3846, 16
        %v4046 = vrot.slane %v4044, 1
        %v4047 = vor.u32 %v4042, %v4046
        %v4049 = vshll.u32 %v3926, 16
        %v4051 = vrot.slane %v4049, 1
        %v4052 = vsel %vm440, %v4047, %v4051
        %v4054 = vshrl.u32 %v3847, 16
        %v4056 = vshll.u32 %v3847, 16
        %v4058 = vrot.slane %v4056, 1
        %v4059 = vor.u32 %v4054, %v4058
        %v4061 = vshll.u32 %v3927, 16
        %v4063 = vrot.slane %v4061, 1
        %v4064 = vsel %vm440, %v4059, %v4063
        %v4066 = vshrl.u32 %v3848, 16
        %v4068 = vshll.u32 %v3848, 16
        %v4070 = vrot.slane %v4068, 1
        %v4071 = vor.u32 %v4066, %v4070
        %v4073 = vshll.u32 %v3928, 16
        %v4075 = vrot.slane %v4073, 1
        %v4076 = vsel %vm440, %v4071, %v4075
        %v4078 = vshrl.u32 %v3849, 16
        %v4080 = vshll.u32 %v3849, 16
        %v4082 = vrot.slane %v4080, 1
        %v4083 = vor.u32 %v4078, %v4082
        %v4085 = vshll.u32 %v3929, 16
        %v4087 = vrot.slane %v4085, 1
        %v4088 = vsel %vm440, %v4083, %v4087
        %v4090 = vshrl.u32 %v3850, 16
        %v4092 = vshll.u32 %v3850, 16
        %v4094 = vrot.slane %v4092, 1
        %v4095 = vor.u32 %v4090, %v4094
        %v4097 = vshll.u32 %v3930, 16
        %v4099 = vrot.slane %v4097, 1
        %v4100 = vsel %vm440, %v4095, %v4099
        %v4102 = vshrl.u32 %v3851, 16
        %v4104 = vshll.u32 %v3851, 16
        %v4106 = vrot.slane %v4104, 1
        %v4107 = vor.u32 %v4102, %v4106
        %v4109 = vshll.u32 %v3931, 16
        %v4111 = vrot.slane %v4109, 1
        %v4112 = vsel %vm440, %v4107, %v4111
        %v4114 = vshrl.u32 %v3852, 16
        %v4116 = vshll.u32 %v3852, 16
        %v4118 = vrot.slane %v4116, 1
        %v4119 = vor.u32 %v4114, %v4118
        %v4121 = vshll.u32 %v3932, 16
        %v4123 = vrot.slane %v4121, 1
        %v4124 = vsel %vm440, %v4119, %v4123
        %4125 = vrot.lane.b32.xlu0 %v3944, 12
        %v4126 = vpop.permute.xlu0 %4125
        %4127 = vrot.lane.b32.xlu0 %v3956, 12
        %v4128 = vpop.permute.xlu0 %4127
        %4129 = vrot.lane.b32.xlu0 %v3968, 12
        %v4130 = vpop.permute.xlu0 %4129
        %4131 = vrot.lane.b32.xlu0 %v3980, 12
        %v4132 = vpop.permute.xlu0 %4131
        %4133 = vrot.lane.b32.xlu0 %v3992, 12
        %v4134 = vpop.permute.xlu0 %4133
        %4135 = vrot.lane.b32.xlu0 %v4004, 12
        %v4136 = vpop.permute.xlu0 %4135
        %4137 = vrot.lane.b32.xlu0 %v4016, 12
        %v4138 = vpop.permute.xlu0 %4137
        %4139 = vrot.lane.b32.xlu0 %v4028, 12
        %v4140 = vpop.permute.xlu0 %4139
        %4141 = vrot.lane.b32.xlu0 %v4040, 12
        %v4142 = vpop.permute.xlu0 %4141
        %4143 = vrot.lane.b32.xlu0 %v4052, 12
        %v4144 = vpop.permute.xlu0 %4143
        %4145 = vrot.lane.b32.xlu0 %v4064, 12
        %v4146 = vpop.permute.xlu0 %4145
        %4147 = vrot.lane.b32.xlu0 %v4076, 12
        %v4148 = vpop.permute.xlu0 %4147
        %4149 = vrot.lane.b32.xlu0 %v4088, 12
        %v4150 = vpop.permute.xlu0 %4149
        %4151 = vrot.lane.b32.xlu0 %v4100, 12
        %v4152 = vpop.permute.xlu0 %4151
        %4153 = vrot.lane.b32.xlu0 %v4112, 12
        %v4154 = vpop.permute.xlu0 %4153
        %4155 = vrot.lane.b32.xlu0 %v4124, 12
        %v4156 = vpop.permute.xlu0 %4155
        %v4158 = vsel %vm1049, %v3485, %v3742
        %v4160 = vsel %vm1049, %v3486, %v3744
        %v4162 = vsel %vm1049, %v3487, %v3746
        %v4164 = vsel %vm1049, %v3488, %v3748
        %v4166 = vsel %vm1049, %v3489, %v3750
        %v4168 = vsel %vm1049, %v3490, %v3752
        %v4170 = vsel %vm1049, %v3491, %v3754
        %v4172 = vsel %vm1049, %v3492, %v3756
        %v4174 = vsel %vm1049, %v3493, %v3758
        %v4176 = vsel %vm1049, %v3494, %v3760
        %v4178 = vsel %vm1049, %v3495, %v3762
        %v4180 = vsel %vm1049, %v3496, %v3764
        %v4182 = vsel %vm1049, %v3497, %v3766
        %v4184 = vsel %vm1049, %v3498, %v3768
        %v4186 = vsel %vm1049, %v3499, %v3770
        %v4188 = vsel %vm1049, %v3500, %v3772
        %v4190 = vsel %vm1082, %v4158, %v3854
        %v4192 = vsel %vm1082, %v4160, %v3856
        %v4194 = vsel %vm1082, %v4162, %v3858
        %v4196 = vsel %vm1082, %v4164, %v3860
        %v4198 = vsel %vm1082, %v4166, %v3862
        %v4200 = vsel %vm1082, %v4168, %v3864
        %v4202 = vsel %vm1082, %v4170, %v3866
        %v4204 = vsel %vm1082, %v4172, %v3868
        %v4206 = vsel %vm1082, %v4174, %v3870
        %v4208 = vsel %vm1082, %v4176, %v3872
        %v4210 = vsel %vm1082, %v4178, %v3874
        %v4212 = vsel %vm1082, %v4180, %v3876
        %v4214 = vsel %vm1082, %v4182, %v3878
        %v4216 = vsel %vm1082, %v4184, %v3880
        %v4218 = vsel %vm1082, %v4186, %v3882
        %v4220 = vsel %vm1082, %v4188, %v3884
        %v4222 = vsel %vm1115, %v4190, %v4126
        %v4224 = vsel %vm1115, %v4192, %v4128
        %v4226 = vsel %vm1115, %v4194, %v4130
        %v4228 = vsel %vm1115, %v4196, %v4132
        %v4230 = vsel %vm1115, %v4198, %v4134
        %v4232 = vsel %vm1115, %v4200, %v4136
        %v4234 = vsel %vm1115, %v4202, %v4138
        %v4236 = vsel %vm1115, %v4204, %v4140
        %v4238 = vsel %vm1115, %v4206, %v4142
        %v4240 = vsel %vm1115, %v4208, %v4144
        %v4242 = vsel %vm1115, %v4210, %v4146
        %v4244 = vsel %vm1115, %v4212, %v4148
        %v4246 = vsel %vm1115, %v4214, %v4150
        %v4248 = vsel %vm1115, %v4216, %v4152
        %v4250 = vsel %vm1115, %v4218, %v4154
        %v4252 = vsel %vm1115, %v4220, %v4156
        %s4253 = scalar_lea.vmem %s1, 16
        %v4254 = vld [vmem:[%s4253] sm:$0xf]
        %v4255 = vld [vmem:[%s4253 + $0x4] sm:$0xf]
        %v4258 = vunpack.c.l.b16 %v4254
        %v4259 = vunpack.c.l.b16 %v4255
        %v4260 = vpack.c.b16 %v4259, %v4258
        %v4262 = vsel %vm1156, %v4222, 0
        %v4264 = vsel %vm1156, %v4224, 0
        %v4266 = vsel %vm1156, %v4226, 0
        %v4268 = vsel %vm1156, %v4228, 0
        %v4270 = vsel %vm1156, %v4230, 0
        %v4272 = vsel %vm1156, %v4232, 0
        %v4274 = vsel %vm1156, %v4234, 0
        %v4276 = vsel %vm1156, %v4236, 0
        %v4278 = vsel %vm1156, %v4238, 0
        %v4280 = vsel %vm1156, %v4240, 0
        %v4282 = vsel %vm1156, %v4242, 0
        %v4284 = vsel %vm1156, %v4244, 0
        %v4286 = vsel %vm1156, %v4246, 0
        %v4288 = vsel %vm1156, %v4248, 0
        %v4290 = vsel %vm1156, %v4250, 0
        %v4292 = vsel %vm1156, %v4252, 0
        %4294 = vmatpush.bf16.msra.mxu0 0
        %4295 = vmatpush.bf16.msra.mxu0 0
        %4296 = vmatpush.bf16.msra.mxu0 0
        %4297 = vmatpush.bf16.msra.mxu0 0
        %4298 = vmatpush.bf16.msra.mxu0 0
        %4299 = vmatpush.bf16.msra.mxu0 0
        %4300 = vmatpush.bf16.msra.mxu0 0
        %4301 = vmatpush.bf16.msra.mxu0 %v4260
        %4302 = vmatmul.bf16.gmra.mxu0 %v4262
        %v4303 = vpop.f32.mrf.mxu0
        %v4304 = vadd.f32 0.0, %v4303
        %v4305 = vpop.f32.mrf.mxu0
        %v4306 = vadd.f32 0.0, %v4305
        %4307 = vmatmul.bf16.gmra.mxu0 %v4264
        %v4308 = vpop.f32.mrf.mxu0
        %v4309 = vadd.f32 0.0, %v4308
        %v4310 = vpop.f32.mrf.mxu0
        %v4311 = vadd.f32 0.0, %v4310
        %4312 = vmatmul.bf16.gmra.mxu0 %v4266
        %v4313 = vpop.f32.mrf.mxu0
        %v4314 = vadd.f32 0.0, %v4313
        %v4315 = vpop.f32.mrf.mxu0
        %v4316 = vadd.f32 0.0, %v4315
        %4317 = vmatmul.bf16.gmra.mxu0 %v4268
        %v4318 = vpop.f32.mrf.mxu0
        %v4319 = vadd.f32 0.0, %v4318
        %v4320 = vpop.f32.mrf.mxu0
        %v4321 = vadd.f32 0.0, %v4320
        %4322 = vmatmul.bf16.gmra.mxu0 %v4270
        %v4323 = vpop.f32.mrf.mxu0
        %v4324 = vadd.f32 0.0, %v4323
        %v4325 = vpop.f32.mrf.mxu0
        %v4326 = vadd.f32 0.0, %v4325
        %4327 = vmatmul.bf16.gmra.mxu0 %v4272
        %v4328 = vpop.f32.mrf.mxu0
        %v4329 = vadd.f32 0.0, %v4328
        %v4330 = vpop.f32.mrf.mxu0
        %v4331 = vadd.f32 0.0, %v4330
        %4332 = vmatmul.bf16.gmra.mxu0 %v4274
        %v4333 = vpop.f32.mrf.mxu0
        %v4334 = vadd.f32 0.0, %v4333
        %v4335 = vpop.f32.mrf.mxu0
        %v4336 = vadd.f32 0.0, %v4335
        %4337 = vmatmul.bf16.gmra.mxu0 %v4276
        %v4338 = vpop.f32.mrf.mxu0
        %v4339 = vadd.f32 0.0, %v4338
        %v4340 = vpop.f32.mrf.mxu0
        %v4341 = vadd.f32 0.0, %v4340
        %4342 = vmatmul.bf16.gmra.mxu0 %v4278
        %v4343 = vpop.f32.mrf.mxu0
        %v4344 = vadd.f32 0.0, %v4343
        %v4345 = vpop.f32.mrf.mxu0
        %v4346 = vadd.f32 0.0, %v4345
        %4347 = vmatmul.bf16.gmra.mxu0 %v4280
        %v4348 = vpop.f32.mrf.mxu0
        %v4349 = vadd.f32 0.0, %v4348
        %v4350 = vpop.f32.mrf.mxu0
        %v4351 = vadd.f32 0.0, %v4350
        %4352 = vmatmul.bf16.gmra.mxu0 %v4282
        %v4353 = vpop.f32.mrf.mxu0
        %v4354 = vadd.f32 0.0, %v4353
        %v4355 = vpop.f32.mrf.mxu0
        %v4356 = vadd.f32 0.0, %v4355
        %4357 = vmatmul.bf16.gmra.mxu0 %v4284
        %v4358 = vpop.f32.mrf.mxu0
        %v4359 = vadd.f32 0.0, %v4358
        %v4360 = vpop.f32.mrf.mxu0
        %v4361 = vadd.f32 0.0, %v4360
        %4362 = vmatmul.bf16.gmra.mxu0 %v4286
        %v4363 = vpop.f32.mrf.mxu0
        %v4364 = vadd.f32 0.0, %v4363
        %v4365 = vpop.f32.mrf.mxu0
        %v4366 = vadd.f32 0.0, %v4365
        %4367 = vmatmul.bf16.gmra.mxu0 %v4288
        %v4368 = vpop.f32.mrf.mxu0
        %v4369 = vadd.f32 0.0, %v4368
        %v4370 = vpop.f32.mrf.mxu0
        %v4371 = vadd.f32 0.0, %v4370
        %4372 = vmatmul.bf16.gmra.mxu0 %v4290
        %v4373 = vpop.f32.mrf.mxu0
        %v4374 = vadd.f32 0.0, %v4373
        %v4375 = vpop.f32.mrf.mxu0
        %v4376 = vadd.f32 0.0, %v4375
        %4377 = vmatmul.bf16.gmra.mxu0 %v4292
        %v4378 = vpop.f32.mrf.mxu0
        %v4379 = vadd.f32 0.0, %v4378
        %v4380 = vpop.f32.mrf.mxu0
        %v4381 = vadd.f32 0.0, %v4380
        %4382 = vdwg.mxu0
        %s4383 = scalar_lea.vmem %s205, 512
        %4384 = vst.msk [vmem:[%s4383] sm:$0xff] %vm1082, %v4304
        %4385 = vst.msk [vmem:[%s4383 + $0x8] sm:$0xff] %vm1082, %v4306
        %4386 = vst.msk [vmem:[%s4383 + $0x10] sm:$0xff] %vm1082, %v4309
        %4387 = vst.msk [vmem:[%s4383 + $0x18] sm:$0xff] %vm1082, %v4311
        %4388 = vst.msk [vmem:[%s4383 + $0x20] sm:$0xff] %vm1082, %v4314
        %4389 = vst.msk [vmem:[%s4383 + $0x28] sm:$0xff] %vm1082, %v4316
        %4390 = vst.msk [vmem:[%s4383 + $0x30] sm:$0xff] %vm1082, %v4319
        %4391 = vst.msk [vmem:[%s4383 + $0x38] sm:$0xff] %vm1082, %v4321
        %4392 = vst.msk [vmem:[%s4383 + $0x40] sm:$0xff] %vm1082, %v4324
        %4393 = vst.msk [vmem:[%s4383 + $0x48] sm:$0xff] %vm1082, %v4326
        %4394 = vst.msk [vmem:[%s4383 + $0x50] sm:$0xff] %vm1082, %v4329
        %4395 = vst.msk [vmem:[%s4383 + $0x58] sm:$0xff] %vm1082, %v4331
        %4396 = vst.msk [vmem:[%s4383 + $0x60] sm:$0xff] %vm1082, %v4334
        %4397 = vst.msk [vmem:[%s4383 + $0x68] sm:$0xff] %vm1082, %v4336
        %4398 = vst.msk [vmem:[%s4383 + $0x70] sm:$0xff] %vm1082, %v4339
        %4399 = vst.msk [vmem:[%s4383 + $0x78] sm:$0xff] %vm1082, %v4341
        %4400 = vst.msk [vmem:[%s4383 + $0x80] sm:$0xff] %vm1082, %v4344
        %4401 = vst.msk [vmem:[%s4383 + $0x88] sm:$0xff] %vm1082, %v4346
        %4402 = vst.msk [vmem:[%s4383 + $0x90] sm:$0xff] %vm1082, %v4349
        %4403 = vst.msk [vmem:[%s4383 + $0x98] sm:$0xff] %vm1082, %v4351
        %4404 = vst.msk [vmem:[%s4383 + $0xa0] sm:$0xff] %vm1082, %v4354
        %4405 = vst.msk [vmem:[%s4383 + $0xa8] sm:$0xff] %vm1082, %v4356
        %4406 = vst.msk [vmem:[%s4383 + $0xb0] sm:$0xff] %vm1082, %v4359
        %4407 = vst.msk [vmem:[%s4383 + $0xb8] sm:$0xff] %vm1082, %v4361
        %4408 = vst.msk [vmem:[%s4383 + $0xc0] sm:$0xff] %vm1082, %v4364
        %4409 = vst.msk [vmem:[%s4383 + $0xc8] sm:$0xff] %vm1082, %v4366
        %4410 = vst.msk [vmem:[%s4383 + $0xd0] sm:$0xff] %vm1082, %v4369
        %4411 = vst.msk [vmem:[%s4383 + $0xd8] sm:$0xff] %vm1082, %v4371
        %4412 = vst.msk [vmem:[%s4383 + $0xe0] sm:$0xff] %vm1082, %v4374
        %4413 = vst.msk [vmem:[%s4383 + $0xe8] sm:$0xff] %vm1082, %v4376
        %4414 = vst.msk [vmem:[%s4383 + $0xf0] sm:$0xff] %vm1082, %v4379
        %4415 = vst.msk [vmem:[%s4383 + $0xf8] sm:$0xff] %vm1082, %v4381
        %v4416 = vsel %vm1082, %v4304, 0.0
        %v4417 = vsel %vm1082, %v4306, 0.0
        %v4418 = vadd.f32 %v4416, %v4417
        %v4419 = vsel %vm1082, %v4309, 0.0
        %v4420 = vadd.f32 %v4418, %v4419
        %v4421 = vsel %vm1082, %v4311, 0.0
        %v4422 = vadd.f32 %v4420, %v4421
        %v4423 = vsel %vm1082, %v4314, 0.0
        %v4424 = vadd.f32 %v4422, %v4423
        %v4425 = vsel %vm1082, %v4316, 0.0
        %v4426 = vadd.f32 %v4424, %v4425
        %v4427 = vsel %vm1082, %v4319, 0.0
        %v4428 = vadd.f32 %v4426, %v4427
        %v4429 = vsel %vm1082, %v4321, 0.0
        %v4430 = vadd.f32 %v4428, %v4429
        %v4431 = vsel %vm1082, %v4324, 0.0
        %v4432 = vadd.f32 %v4430, %v4431
        %v4433 = vsel %vm1082, %v4326, 0.0
        %v4434 = vadd.f32 %v4432, %v4433
        %v4435 = vsel %vm1082, %v4329, 0.0
        %v4436 = vadd.f32 %v4434, %v4435
        %v4437 = vsel %vm1082, %v4331, 0.0
        %v4438 = vadd.f32 %v4436, %v4437
        %v4439 = vsel %vm1082, %v4334, 0.0
        %v4440 = vadd.f32 %v4438, %v4439
        %v4441 = vsel %vm1082, %v4336, 0.0
        %v4442 = vadd.f32 %v4440, %v4441
        %v4443 = vsel %vm1082, %v4339, 0.0
        %v4444 = vadd.f32 %v4442, %v4443
        %v4445 = vsel %vm1082, %v4341, 0.0
        %v4446 = vadd.f32 %v4444, %v4445
        %v4447 = vsel %vm1082, %v4344, 0.0
        %v4448 = vadd.f32 %v4446, %v4447
        %v4449 = vsel %vm1082, %v4346, 0.0
        %v4450 = vadd.f32 %v4448, %v4449
        %v4451 = vsel %vm1082, %v4349, 0.0
        %v4452 = vadd.f32 %v4450, %v4451
        %v4453 = vsel %vm1082, %v4351, 0.0
        %v4454 = vadd.f32 %v4452, %v4453
        %v4455 = vsel %vm1082, %v4354, 0.0
        %v4456 = vadd.f32 %v4454, %v4455
        %v4457 = vsel %vm1082, %v4356, 0.0
        %v4458 = vadd.f32 %v4456, %v4457
        %v4459 = vsel %vm1082, %v4359, 0.0
        %v4460 = vadd.f32 %v4458, %v4459
        %v4461 = vsel %vm1082, %v4361, 0.0
        %v4462 = vadd.f32 %v4460, %v4461
        %v4463 = vsel %vm1082, %v4364, 0.0
        %v4464 = vadd.f32 %v4462, %v4463
        %v4465 = vsel %vm1082, %v4366, 0.0
        %v4466 = vadd.f32 %v4464, %v4465
        %v4467 = vsel %vm1082, %v4369, 0.0
        %v4468 = vadd.f32 %v4466, %v4467
        %v4469 = vsel %vm1082, %v4371, 0.0
        %v4470 = vadd.f32 %v4468, %v4469
        %v4471 = vsel %vm1082, %v4374, 0.0
        %v4472 = vadd.f32 %v4470, %v4471
        %v4473 = vsel %vm1082, %v4376, 0.0
        %v4474 = vadd.f32 %v4472, %v4473
        %v4475 = vsel %vm1082, %v4379, 0.0
        %v4476 = vadd.f32 %v4474, %v4475
        %v4477 = vsel %vm1082, %v4381, 0.0
        %v4478 = vadd.f32 %v4476, %v4477
        %v4479 = vrot.slane %v4478, 4
        %v4480 = vadd.f32 %v4478, %v4479
        %v4481 = vrot.slane %v4480, 2
        %v4482 = vadd.f32 %v4480, %v4481
        %v4483 = vrot.slane %v4482, 1
        %v4484 = vadd.f32 %v4482, %v4483
        %v4485 = vadd.f32 %v3218, %v4484
        %v4486 = vmul.f32 %v4304, %v4304
        %v4487 = vmul.f32 %v4306, %v4306
        %v4488 = vmul.f32 %v4309, %v4309
        %v4489 = vmul.f32 %v4311, %v4311
        %v4490 = vmul.f32 %v4314, %v4314
        %v4491 = vmul.f32 %v4316, %v4316
        %v4492 = vmul.f32 %v4319, %v4319
        %v4493 = vmul.f32 %v4321, %v4321
        %v4494 = vmul.f32 %v4324, %v4324
        %v4495 = vmul.f32 %v4326, %v4326
        %v4496 = vmul.f32 %v4329, %v4329
        %v4497 = vmul.f32 %v4331, %v4331
        %v4498 = vmul.f32 %v4334, %v4334
        %v4499 = vmul.f32 %v4336, %v4336
        %v4500 = vmul.f32 %v4339, %v4339
        %v4501 = vmul.f32 %v4341, %v4341
        %v4502 = vmul.f32 %v4344, %v4344
        %v4503 = vmul.f32 %v4346, %v4346
        %v4504 = vmul.f32 %v4349, %v4349
        %v4505 = vmul.f32 %v4351, %v4351
        %v4506 = vmul.f32 %v4354, %v4354
        %v4507 = vmul.f32 %v4356, %v4356
        %v4508 = vmul.f32 %v4359, %v4359
        %v4509 = vmul.f32 %v4361, %v4361
        %v4510 = vmul.f32 %v4364, %v4364
        %v4511 = vmul.f32 %v4366, %v4366
        %v4512 = vmul.f32 %v4369, %v4369
        %v4513 = vmul.f32 %v4371, %v4371
        %v4514 = vmul.f32 %v4374, %v4374
        %v4515 = vmul.f32 %v4376, %v4376
        %v4516 = vmul.f32 %v4379, %v4379
        %v4517 = vmul.f32 %v4381, %v4381
        %v4518 = vsel %vm1082, %v4486, 0.0
        %v4519 = vsel %vm1082, %v4487, 0.0
        %v4520 = vadd.f32 %v4518, %v4519
        %v4521 = vsel %vm1082, %v4488, 0.0
        %v4522 = vadd.f32 %v4520, %v4521
        %v4523 = vsel %vm1082, %v4489, 0.0
        %v4524 = vadd.f32 %v4522, %v4523
        %v4525 = vsel %vm1082, %v4490, 0.0
        %v4526 = vadd.f32 %v4524, %v4525
        %v4527 = vsel %vm1082, %v4491, 0.0
        %v4528 = vadd.f32 %v4526, %v4527
        %v4529 = vsel %vm1082, %v4492, 0.0
        %v4530 = vadd.f32 %v4528, %v4529
        %v4531 = vsel %vm1082, %v4493, 0.0
        %v4532 = vadd.f32 %v4530, %v4531
        %v4533 = vsel %vm1082, %v4494, 0.0
        %v4534 = vadd.f32 %v4532, %v4533
        %v4535 = vsel %vm1082, %v4495, 0.0
        %v4536 = vadd.f32 %v4534, %v4535
        %v4537 = vsel %vm1082, %v4496, 0.0
        %v4538 = vadd.f32 %v4536, %v4537
        %v4539 = vsel %vm1082, %v4497, 0.0
        %v4540 = vadd.f32 %v4538, %v4539
        %v4541 = vsel %vm1082, %v4498, 0.0
        %v4542 = vadd.f32 %v4540, %v4541
        %v4543 = vsel %vm1082, %v4499, 0.0
        %v4544 = vadd.f32 %v4542, %v4543
        %v4545 = vsel %vm1082, %v4500, 0.0
        %v4546 = vadd.f32 %v4544, %v4545
        %v4547 = vsel %vm1082, %v4501, 0.0
        %v4548 = vadd.f32 %v4546, %v4547
        %v4549 = vsel %vm1082, %v4502, 0.0
        %v4550 = vadd.f32 %v4548, %v4549
        %v4551 = vsel %vm1082, %v4503, 0.0
        %v4552 = vadd.f32 %v4550, %v4551
        %v4553 = vsel %vm1082, %v4504, 0.0
        %v4554 = vadd.f32 %v4552, %v4553
        %v4555 = vsel %vm1082, %v4505, 0.0
        %v4556 = vadd.f32 %v4554, %v4555
        %v4557 = vsel %vm1082, %v4506, 0.0
        %v4558 = vadd.f32 %v4556, %v4557
        %v4559 = vsel %vm1082, %v4507, 0.0
        %v4560 = vadd.f32 %v4558, %v4559
        %v4561 = vsel %vm1082, %v4508, 0.0
        %v4562 = vadd.f32 %v4560, %v4561
        %v4563 = vsel %vm1082, %v4509, 0.0
        %v4564 = vadd.f32 %v4562, %v4563
        %v4565 = vsel %vm1082, %v4510, 0.0
        %v4566 = vadd.f32 %v4564, %v4565
        %v4567 = vsel %vm1082, %v4511, 0.0
        %v4568 = vadd.f32 %v4566, %v4567
        %v4569 = vsel %vm1082, %v4512, 0.0
        %v4570 = vadd.f32 %v4568, %v4569
        %v4571 = vsel %vm1082, %v4513, 0.0
        %v4572 = vadd.f32 %v4570, %v4571
        %v4573 = vsel %vm1082, %v4514, 0.0
        %v4574 = vadd.f32 %v4572, %v4573
        %v4575 = vsel %vm1082, %v4515, 0.0
        %v4576 = vadd.f32 %v4574, %v4575
        %v4577 = vsel %vm1082, %v4516, 0.0
        %v4578 = vadd.f32 %v4576, %v4577
        %v4579 = vsel %vm1082, %v4517, 0.0
        %v4580 = vadd.f32 %v4578, %v4579
        %v4581 = vrot.slane %v4580, 4
        %v4582 = vadd.f32 %v4580, %v4581
        %v4583 = vrot.slane %v4582, 2
        %v4584 = vadd.f32 %v4582, %v4583
        %v4585 = vrot.slane %v4584, 1
        %v4586 = vadd.f32 %v4584, %v4585
        %v4587 = vadd.f32 %v3320, %v4586
        %v4588 = vld [vmem:[%s263] sm:$0xf]
        %v4589 = vld [vmem:[%s263 + $0x4] sm:$0xf]
        %v4590 = vld [vmem:[%s263 + $0x8] sm:$0x1]
        %v4591 = vld [vmem:[%s263 + $0xc] sm:$0xf]
        %v4592 = vld [vmem:[%s263 + $0x10] sm:$0xf]
        %v4593 = vld [vmem:[%s263 + $0x14] sm:$0x1]
        %v4594 = vld [vmem:[%s263 + $0x18] sm:$0xf]
        %v4595 = vld [vmem:[%s263 + $0x1c] sm:$0xf]
        %v4596 = vld [vmem:[%s263 + $0x20] sm:$0x1]
        %v4597 = vld [vmem:[%s263 + $0x24] sm:$0xf]
        %v4598 = vld [vmem:[%s263 + $0x28] sm:$0xf]
        %v4599 = vld [vmem:[%s263 + $0x2c] sm:$0x1]
        %v4600 = vld [vmem:[%s263 + $0x30] sm:$0xf]
        %v4601 = vld [vmem:[%s263 + $0x34] sm:$0xf]
        %v4602 = vld [vmem:[%s263 + $0x38] sm:$0x1]
        %v4603 = vld [vmem:[%s263 + $0x3c] sm:$0xf]
        %v4604 = vld [vmem:[%s263 + $0x40] sm:$0xf]
        %v4605 = vld [vmem:[%s263 + $0x44] sm:$0x1]
        %v4606 = vld [vmem:[%s263 + $0x48] sm:$0xf]
        %v4607 = vld [vmem:[%s263 + $0x4c] sm:$0xf]
        %v4608 = vld [vmem:[%s263 + $0x50] sm:$0x1]
        %v4609 = vld [vmem:[%s263 + $0x54] sm:$0xf]
        %v4610 = vld [vmem:[%s263 + $0x58] sm:$0xf]
        %v4611 = vld [vmem:[%s263 + $0x5c] sm:$0x1]
        %v4612 = vld [vmem:[%s263 + $0x60] sm:$0xf]
        %v4613 = vld [vmem:[%s263 + $0x64] sm:$0xf]
        %v4614 = vld [vmem:[%s263 + $0x68] sm:$0x1]
        %v4615 = vld [vmem:[%s263 + $0x6c] sm:$0xf]
        %v4616 = vld [vmem:[%s263 + $0x70] sm:$0xf]
        %v4617 = vld [vmem:[%s263 + $0x74] sm:$0x1]
        %v4618 = vld [vmem:[%s263 + $0x78] sm:$0xf]
        %v4619 = vld [vmem:[%s263 + $0x7c] sm:$0xf]
        %v4620 = vld [vmem:[%s263 + $0x80] sm:$0x1]
        %v4621 = vld [vmem:[%s263 + $0x84] sm:$0xf]
        %v4622 = vld [vmem:[%s263 + $0x88] sm:$0xf]
        %v4623 = vld [vmem:[%s263 + $0x8c] sm:$0x1]
        %v4624 = vld [vmem:[%s263 + $0x90] sm:$0xf]
        %v4625 = vld [vmem:[%s263 + $0x94] sm:$0xf]
        %v4626 = vld [vmem:[%s263 + $0x98] sm:$0x1]
        %v4627 = vld [vmem:[%s263 + $0x9c] sm:$0xf]
        %v4628 = vld [vmem:[%s263 + $0xa0] sm:$0xf]
        %v4629 = vld [vmem:[%s263 + $0xa4] sm:$0x1]
        %v4630 = vld [vmem:[%s263 + $0xa8] sm:$0xf]
        %v4631 = vld [vmem:[%s263 + $0xac] sm:$0xf]
        %v4632 = vld [vmem:[%s263 + $0xb0] sm:$0x1]
        %v4633 = vld [vmem:[%s263 + $0xb4] sm:$0xf]
        %v4634 = vld [vmem:[%s263 + $0xb8] sm:$0xf]
        %v4635 = vld [vmem:[%s263 + $0xbc] sm:$0x1]
        %v4636 = vld [vmem:[%s263] sm:$0xe]
        %v4637 = vld [vmem:[%s263 + $0xc] sm:$0xe]
        %v4638 = vld [vmem:[%s263 + $0x18] sm:$0xe]
        %v4639 = vld [vmem:[%s263 + $0x24] sm:$0xe]
        %v4640 = vld [vmem:[%s263 + $0x30] sm:$0xe]
        %v4641 = vld [vmem:[%s263 + $0x3c] sm:$0xe]
        %v4642 = vld [vmem:[%s263 + $0x48] sm:$0xe]
        %v4643 = vld [vmem:[%s263 + $0x54] sm:$0xe]
        %v4644 = vld [vmem:[%s263 + $0x60] sm:$0xe]
        %v4645 = vld [vmem:[%s263 + $0x6c] sm:$0xe]
        %v4646 = vld [vmem:[%s263 + $0x78] sm:$0xe]
        %v4647 = vld [vmem:[%s263 + $0x84] sm:$0xe]
        %v4648 = vld [vmem:[%s263 + $0x90] sm:$0xe]
        %v4649 = vld [vmem:[%s263 + $0x9c] sm:$0xe]
        %v4650 = vld [vmem:[%s263 + $0xa8] sm:$0xe]
        %v4651 = vld [vmem:[%s263 + $0xb4] sm:$0xe]
        %v4652 = vld [vmem:[%s3372] sm:$0xf]
        %v4653 = vld [vmem:[%s3372 + $0x4] sm:$0xf]
        %v4654 = vld [vmem:[%s3372 + $0x8] sm:$0x1]
        %v4655 = vld [vmem:[%s3372 + $0xc] sm:$0xf]
        %v4656 = vld [vmem:[%s3372 + $0x10] sm:$0xf]
        %v4657 = vld [vmem:[%s3372 + $0x14] sm:$0x1]
        %v4658 = vld [vmem:[%s3372 + $0x18] sm:$0xf]
        %v4659 = vld [vmem:[%s3372 + $0x1c] sm:$0xf]
        %v4660 = vld [vmem:[%s3372 + $0x20] sm:$0x1]
        %v4661 = vld [vmem:[%s3372 + $0x24] sm:$0xf]
        %v4662 = vld [vmem:[%s3372 + $0x28] sm:$0xf]
        %v4663 = vld [vmem:[%s3372 + $0x2c] sm:$0x1]
        %v4664 = vld [vmem:[%s3372 + $0x30] sm:$0xf]
        %v4665 = vld [vmem:[%s3372 + $0x34] sm:$0xf]
        %v4666 = vld [vmem:[%s3372 + $0x38] sm:$0x1]
        %v4667 = vld [vmem:[%s3372 + $0x3c] sm:$0xf]
        %v4668 = vld [vmem:[%s3372 + $0x40] sm:$0xf]
        %v4669 = vld [vmem:[%s3372 + $0x44] sm:$0x1]
        %v4670 = vld [vmem:[%s3372 + $0x48] sm:$0xf]
        %v4671 = vld [vmem:[%s3372 + $0x4c] sm:$0xf]
        %v4672 = vld [vmem:[%s3372 + $0x50] sm:$0x1]
        %v4673 = vld [vmem:[%s3372 + $0x54] sm:$0xf]
        %v4674 = vld [vmem:[%s3372 + $0x58] sm:$0xf]
        %v4675 = vld [vmem:[%s3372 + $0x5c] sm:$0x1]
        %v4676 = vld [vmem:[%s3372 + $0x60] sm:$0xf]
        %v4677 = vld [vmem:[%s3372 + $0x64] sm:$0xf]
        %v4678 = vld [vmem:[%s3372 + $0x68] sm:$0x1]
        %v4679 = vld [vmem:[%s3372 + $0x6c] sm:$0xf]
        %v4680 = vld [vmem:[%s3372 + $0x70] sm:$0xf]
        %v4681 = vld [vmem:[%s3372 + $0x74] sm:$0x1]
        %v4682 = vld [vmem:[%s3372 + $0x78] sm:$0xf]
        %v4683 = vld [vmem:[%s3372 + $0x7c] sm:$0xf]
        %v4684 = vld [vmem:[%s3372 + $0x80] sm:$0x1]
        %v4685 = vld [vmem:[%s3372 + $0x84] sm:$0xf]
        %v4686 = vld [vmem:[%s3372 + $0x88] sm:$0xf]
        %v4687 = vld [vmem:[%s3372 + $0x8c] sm:$0x1]
        %v4688 = vld [vmem:[%s3372 + $0x90] sm:$0xf]
        %v4689 = vld [vmem:[%s3372 + $0x94] sm:$0xf]
        %v4690 = vld [vmem:[%s3372 + $0x98] sm:$0x1]
        %v4691 = vld [vmem:[%s3372 + $0x9c] sm:$0xf]
        %v4692 = vld [vmem:[%s3372 + $0xa0] sm:$0xf]
        %v4693 = vld [vmem:[%s3372 + $0xa4] sm:$0x1]
        %v4694 = vld [vmem:[%s3372 + $0xa8] sm:$0xf]
        %v4695 = vld [vmem:[%s3372 + $0xac] sm:$0xf]
        %v4696 = vld [vmem:[%s3372 + $0xb0] sm:$0x1]
        %v4697 = vld [vmem:[%s3372 + $0xb4] sm:$0xf]
        %v4698 = vld [vmem:[%s3372 + $0xb8] sm:$0xf]
        %v4699 = vld [vmem:[%s3372 + $0xbc] sm:$0x1]
        %v4700 = vld [vmem:[%s3372] sm:$0xe]
        %v4701 = vld [vmem:[%s3372 + $0xc] sm:$0xe]
        %v4702 = vld [vmem:[%s3372 + $0x18] sm:$0xe]
        %v4703 = vld [vmem:[%s3372 + $0x24] sm:$0xe]
        %v4704 = vld [vmem:[%s3372 + $0x30] sm:$0xe]
        %v4705 = vld [vmem:[%s3372 + $0x3c] sm:$0xe]
        %v4706 = vld [vmem:[%s3372 + $0x48] sm:$0xe]
        %v4707 = vld [vmem:[%s3372 + $0x54] sm:$0xe]
        %v4708 = vld [vmem:[%s3372 + $0x60] sm:$0xe]
        %v4709 = vld [vmem:[%s3372 + $0x6c] sm:$0xe]
        %v4710 = vld [vmem:[%s3372 + $0x78] sm:$0xe]
        %v4711 = vld [vmem:[%s3372 + $0x84] sm:$0xe]
        %v4712 = vld [vmem:[%s3372 + $0x90] sm:$0xe]
        %v4713 = vld [vmem:[%s3372 + $0x9c] sm:$0xe]
        %v4714 = vld [vmem:[%s3372 + $0xa8] sm:$0xe]
        %v4715 = vld [vmem:[%s3372 + $0xb4] sm:$0xe]
        %v4764 = vunpack.c.l.b16 %v4588
        %v4765 = vunpack.c.l.b16 %v4589
        %v4766 = vunpack.c.l.b16 %v4590
        %v4767 = vunpack.c.l.b16 %v4591
        %v4768 = vunpack.c.l.b16 %v4592
        %v4769 = vunpack.c.l.b16 %v4593
        %v4770 = vunpack.c.l.b16 %v4594
        %v4771 = vunpack.c.l.b16 %v4595
        %v4772 = vunpack.c.l.b16 %v4596
        %v4773 = vunpack.c.l.b16 %v4597
        %v4774 = vunpack.c.l.b16 %v4598
        %v4775 = vunpack.c.l.b16 %v4599
        %v4776 = vunpack.c.l.b16 %v4600
        %v4777 = vunpack.c.l.b16 %v4601
        %v4778 = vunpack.c.l.b16 %v4602
        %v4779 = vunpack.c.l.b16 %v4603
        %v4780 = vunpack.c.l.b16 %v4604
        %v4781 = vunpack.c.l.b16 %v4605
        %v4782 = vunpack.c.l.b16 %v4606
        %v4783 = vunpack.c.l.b16 %v4607
        %v4784 = vunpack.c.l.b16 %v4608
        %v4785 = vunpack.c.l.b16 %v4609
        %v4786 = vunpack.c.l.b16 %v4610
        %v4787 = vunpack.c.l.b16 %v4611
        %v4788 = vunpack.c.l.b16 %v4612
        %v4789 = vunpack.c.l.b16 %v4613
        %v4790 = vunpack.c.l.b16 %v4614
        %v4791 = vunpack.c.l.b16 %v4615
        %v4792 = vunpack.c.l.b16 %v4616
        %v4793 = vunpack.c.l.b16 %v4617
        %v4794 = vunpack.c.l.b16 %v4618
        %v4795 = vunpack.c.l.b16 %v4619
        %v4796 = vunpack.c.l.b16 %v4620
        %v4797 = vunpack.c.l.b16 %v4621
        %v4798 = vunpack.c.l.b16 %v4622
        %v4799 = vunpack.c.l.b16 %v4623
        %v4800 = vunpack.c.l.b16 %v4624
        %v4801 = vunpack.c.l.b16 %v4625
        %v4802 = vunpack.c.l.b16 %v4626
        %v4803 = vunpack.c.l.b16 %v4627
        %v4804 = vunpack.c.l.b16 %v4628
        %v4805 = vunpack.c.l.b16 %v4629
        %v4806 = vunpack.c.l.b16 %v4630
        %v4807 = vunpack.c.l.b16 %v4631
        %v4808 = vunpack.c.l.b16 %v4632
        %v4809 = vunpack.c.l.b16 %v4633
        %v4810 = vunpack.c.l.b16 %v4634
        %v4811 = vunpack.c.l.b16 %v4635
        %v4812 = vpack.c.b16 %v4765, %v4764
        %v4813 = vpack.c.b16 %v4766, %v4766
        %v4814 = vpack.c.b16 %v4768, %v4767
        %v4815 = vpack.c.b16 %v4769, %v4769
        %v4816 = vpack.c.b16 %v4771, %v4770
        %v4817 = vpack.c.b16 %v4772, %v4772
        %v4818 = vpack.c.b16 %v4774, %v4773
        %v4819 = vpack.c.b16 %v4775, %v4775
        %v4820 = vpack.c.b16 %v4777, %v4776
        %v4821 = vpack.c.b16 %v4778, %v4778
        %v4822 = vpack.c.b16 %v4780, %v4779
        %v4823 = vpack.c.b16 %v4781, %v4781
        %v4824 = vpack.c.b16 %v4783, %v4782
        %v4825 = vpack.c.b16 %v4784, %v4784
        %v4826 = vpack.c.b16 %v4786, %v4785
        %v4827 = vpack.c.b16 %v4787, %v4787
        %v4828 = vpack.c.b16 %v4789, %v4788
        %v4829 = vpack.c.b16 %v4790, %v4790
        %v4830 = vpack.c.b16 %v4792, %v4791
        %v4831 = vpack.c.b16 %v4793, %v4793
        %v4832 = vpack.c.b16 %v4795, %v4794
        %v4833 = vpack.c.b16 %v4796, %v4796
        %v4834 = vpack.c.b16 %v4798, %v4797
        %v4835 = vpack.c.b16 %v4799, %v4799
        %v4836 = vpack.c.b16 %v4801, %v4800
        %v4837 = vpack.c.b16 %v4802, %v4802
        %v4838 = vpack.c.b16 %v4804, %v4803
        %v4839 = vpack.c.b16 %v4805, %v4805
        %v4840 = vpack.c.b16 %v4807, %v4806
        %v4841 = vpack.c.b16 %v4808, %v4808
        %v4842 = vpack.c.b16 %v4810, %v4809
        %v4843 = vpack.c.b16 %v4811, %v4811
        %v4860 = vunpack.c.l.b16 %v4636
        %v4861 = vunpack.c.l.b16 %v4637
        %v4862 = vunpack.c.l.b16 %v4638
        %v4863 = vunpack.c.l.b16 %v4639
        %v4864 = vunpack.c.l.b16 %v4640
        %v4865 = vunpack.c.l.b16 %v4641
        %v4866 = vunpack.c.l.b16 %v4642
        %v4867 = vunpack.c.l.b16 %v4643
        %v4868 = vunpack.c.l.b16 %v4644
        %v4869 = vunpack.c.l.b16 %v4645
        %v4870 = vunpack.c.l.b16 %v4646
        %v4871 = vunpack.c.l.b16 %v4647
        %v4872 = vunpack.c.l.b16 %v4648
        %v4873 = vunpack.c.l.b16 %v4649
        %v4874 = vunpack.c.l.b16 %v4650
        %v4875 = vunpack.c.l.b16 %v4651
        %v4876 = vpack.c.b16 %v4765, %v4860
        %v4877 = vpack.c.b16 %v4768, %v4861
        %v4878 = vpack.c.b16 %v4771, %v4862
        %v4879 = vpack.c.b16 %v4774, %v4863
        %v4880 = vpack.c.b16 %v4777, %v4864
        %v4881 = vpack.c.b16 %v4780, %v4865
        %v4882 = vpack.c.b16 %v4783, %v4866
        %v4883 = vpack.c.b16 %v4786, %v4867
        %v4884 = vpack.c.b16 %v4789, %v4868
        %v4885 = vpack.c.b16 %v4792, %v4869
        %v4886 = vpack.c.b16 %v4795, %v4870
        %v4887 = vpack.c.b16 %v4798, %v4871
        %v4888 = vpack.c.b16 %v4801, %v4872
        %v4889 = vpack.c.b16 %v4804, %v4873
        %v4890 = vpack.c.b16 %v4807, %v4874
        %v4891 = vpack.c.b16 %v4810, %v4875
        %v4893 = vshrl.u32 %v4876, 16
        %v4895 = vshll.u32 %v4876, 16
        %v4897 = vrot.slane %v4895, 1
        %v4898 = vor.u32 %v4893, %v4897
        %v4900 = vshll.u32 %v4813, 16
        %v4902 = vrot.slane %v4900, 1
        %v4903 = vsel %vm440, %v4898, %v4902
        %v4904 = vshrl.u32 %v4813, 16
        %v4907 = vshrl.u32 %v4877, 16
        %v4909 = vshll.u32 %v4877, 16
        %v4911 = vrot.slane %v4909, 1
        %v4912 = vor.u32 %v4907, %v4911
        %v4914 = vshll.u32 %v4815, 16
        %v4916 = vrot.slane %v4914, 1
        %v4917 = vsel %vm440, %v4912, %v4916
        %v4918 = vshrl.u32 %v4815, 16
        %v4921 = vshrl.u32 %v4878, 16
        %v4923 = vshll.u32 %v4878, 16
        %v4925 = vrot.slane %v4923, 1
        %v4926 = vor.u32 %v4921, %v4925
        %v4928 = vshll.u32 %v4817, 16
        %v4930 = vrot.slane %v4928, 1
        %v4931 = vsel %vm440, %v4926, %v4930
        %v4932 = vshrl.u32 %v4817, 16
        %v4935 = vshrl.u32 %v4879, 16
        %v4937 = vshll.u32 %v4879, 16
        %v4939 = vrot.slane %v4937, 1
        %v4940 = vor.u32 %v4935, %v4939
        %v4942 = vshll.u32 %v4819, 16
        %v4944 = vrot.slane %v4942, 1
        %v4945 = vsel %vm440, %v4940, %v4944
        %v4946 = vshrl.u32 %v4819, 16
        %v4949 = vshrl.u32 %v4880, 16
        %v4951 = vshll.u32 %v4880, 16
        %v4953 = vrot.slane %v4951, 1
        %v4954 = vor.u32 %v4949, %v4953
        %v4956 = vshll.u32 %v4821, 16
        %v4958 = vrot.slane %v4956, 1
        %v4959 = vsel %vm440, %v4954, %v4958
        %v4960 = vshrl.u32 %v4821, 16
        %v4963 = vshrl.u32 %v4881, 16
        %v4965 = vshll.u32 %v4881, 16
        %v4967 = vrot.slane %v4965, 1
        %v4968 = vor.u32 %v4963, %v4967
        %v4970 = vshll.u32 %v4823, 16
        %v4972 = vrot.slane %v4970, 1
        %v4973 = vsel %vm440, %v4968, %v4972
        %v4974 = vshrl.u32 %v4823, 16
        %v4977 = vshrl.u32 %v4882, 16
        %v4979 = vshll.u32 %v4882, 16
        %v4981 = vrot.slane %v4979, 1
        %v4982 = vor.u32 %v4977, %v4981
        %v4984 = vshll.u32 %v4825, 16
        %v4986 = vrot.slane %v4984, 1
        %v4987 = vsel %vm440, %v4982, %v4986
        %v4988 = vshrl.u32 %v4825, 16
        %v4991 = vshrl.u32 %v4883, 16
        %v4993 = vshll.u32 %v4883, 16
        %v4995 = vrot.slane %v4993, 1
        %v4996 = vor.u32 %v4991, %v4995
        %v4998 = vshll.u32 %v4827, 16
        %v5000 = vrot.slane %v4998, 1
        %v5001 = vsel %vm440, %v4996, %v5000
        %v5002 = vshrl.u32 %v4827, 16
        %v5005 = vshrl.u32 %v4884, 16
        %v5007 = vshll.u32 %v4884, 16
        %v5009 = vrot.slane %v5007, 1
        %v5010 = vor.u32 %v5005, %v5009
        %v5012 = vshll.u32 %v4829, 16
        %v5014 = vrot.slane %v5012, 1
        %v5015 = vsel %vm440, %v5010, %v5014
        %v5016 = vshrl.u32 %v4829, 16
        %v5019 = vshrl.u32 %v4885, 16
        %v5021 = vshll.u32 %v4885, 16
        %v5023 = vrot.slane %v5021, 1
        %v5024 = vor.u32 %v5019, %v5023
        %v5026 = vshll.u32 %v4831, 16
        %v5028 = vrot.slane %v5026, 1
        %v5029 = vsel %vm440, %v5024, %v5028
        %v5030 = vshrl.u32 %v4831, 16
        %v5033 = vshrl.u32 %v4886, 16
        %v5035 = vshll.u32 %v4886, 16
        %v5037 = vrot.slane %v5035, 1
        %v5038 = vor.u32 %v5033, %v5037
        %v5040 = vshll.u32 %v4833, 16
        %v5042 = vrot.slane %v5040, 1
        %v5043 = vsel %vm440, %v5038, %v5042
        %v5044 = vshrl.u32 %v4833, 16
        %v5047 = vshrl.u32 %v4887, 16
        %v5049 = vshll.u32 %v4887, 16
        %v5051 = vrot.slane %v5049, 1
        %v5052 = vor.u32 %v5047, %v5051
        %v5054 = vshll.u32 %v4835, 16
        %v5056 = vrot.slane %v5054, 1
        %v5057 = vsel %vm440, %v5052, %v5056
        %v5058 = vshrl.u32 %v4835, 16
        %v5061 = vshrl.u32 %v4888, 16
        %v5063 = vshll.u32 %v4888, 16
        %v5065 = vrot.slane %v5063, 1
        %v5066 = vor.u32 %v5061, %v5065
        %v5068 = vshll.u32 %v4837, 16
        %v5070 = vrot.slane %v5068, 1
        %v5071 = vsel %vm440, %v5066, %v5070
        %v5072 = vshrl.u32 %v4837, 16
        %v5075 = vshrl.u32 %v4889, 16
        %v5077 = vshll.u32 %v4889, 16
        %v5079 = vrot.slane %v5077, 1
        %v5080 = vor.u32 %v5075, %v5079
        %v5082 = vshll.u32 %v4839, 16
        %v5084 = vrot.slane %v5082, 1
        %v5085 = vsel %vm440, %v5080, %v5084
        %v5086 = vshrl.u32 %v4839, 16
        %v5089 = vshrl.u32 %v4890, 16
        %v5091 = vshll.u32 %v4890, 16
        %v5093 = vrot.slane %v5091, 1
        %v5094 = vor.u32 %v5089, %v5093
        %v5096 = vshll.u32 %v4841, 16
        %v5098 = vrot.slane %v5096, 1
        %v5099 = vsel %vm440, %v5094, %v5098
        %v5100 = vshrl.u32 %v4841, 16
        %v5103 = vshrl.u32 %v4891, 16
        %v5105 = vshll.u32 %v4891, 16
        %v5107 = vrot.slane %v5105, 1
        %v5108 = vor.u32 %v5103, %v5107
        %v5110 = vshll.u32 %v4843, 16
        %v5112 = vrot.slane %v5110, 1
        %v5113 = vsel %vm440, %v5108, %v5112
        %v5114 = vshrl.u32 %v4843, 16
        %5116 = vrot.lane.b32.xlu0 %v4903, 4
        %v5117 = vpop.permute.xlu0 %5116
        %5118 = vrot.lane.b32.xlu0 %v4904, 4
        %v5119 = vpop.permute.xlu0 %5118
        %5120 = vrot.lane.b32.xlu0 %v4917, 4
        %v5121 = vpop.permute.xlu0 %5120
        %5122 = vrot.lane.b32.xlu0 %v4918, 4
        %v5123 = vpop.permute.xlu0 %5122
        %5124 = vrot.lane.b32.xlu0 %v4931, 4
        %v5125 = vpop.permute.xlu0 %5124
        %5126 = vrot.lane.b32.xlu0 %v4932, 4
        %v5127 = vpop.permute.xlu0 %5126
        %5128 = vrot.lane.b32.xlu0 %v4945, 4
        %v5129 = vpop.permute.xlu0 %5128
        %5130 = vrot.lane.b32.xlu0 %v4946, 4
        %v5131 = vpop.permute.xlu0 %5130
        %5132 = vrot.lane.b32.xlu0 %v4959, 4
        %v5133 = vpop.permute.xlu0 %5132
        %5134 = vrot.lane.b32.xlu0 %v4960, 4
        %v5135 = vpop.permute.xlu0 %5134
        %5136 = vrot.lane.b32.xlu0 %v4973, 4
        %v5137 = vpop.permute.xlu0 %5136
        %5138 = vrot.lane.b32.xlu0 %v4974, 4
        %v5139 = vpop.permute.xlu0 %5138
        %5140 = vrot.lane.b32.xlu0 %v4987, 4
        %v5141 = vpop.permute.xlu0 %5140
        %5142 = vrot.lane.b32.xlu0 %v4988, 4
        %v5143 = vpop.permute.xlu0 %5142
        %5144 = vrot.lane.b32.xlu0 %v5001, 4
        %v5145 = vpop.permute.xlu0 %5144
        %5146 = vrot.lane.b32.xlu0 %v5002, 4
        %v5147 = vpop.permute.xlu0 %5146
        %5148 = vrot.lane.b32.xlu0 %v5015, 4
        %v5149 = vpop.permute.xlu0 %5148
        %5150 = vrot.lane.b32.xlu0 %v5016, 4
        %v5151 = vpop.permute.xlu0 %5150
        %5152 = vrot.lane.b32.xlu0 %v5029, 4
        %v5153 = vpop.permute.xlu0 %5152
        %5154 = vrot.lane.b32.xlu0 %v5030, 4
        %v5155 = vpop.permute.xlu0 %5154
        %5156 = vrot.lane.b32.xlu0 %v5043, 4
        %v5157 = vpop.permute.xlu0 %5156
        %5158 = vrot.lane.b32.xlu0 %v5044, 4
        %v5159 = vpop.permute.xlu0 %5158
        %5160 = vrot.lane.b32.xlu0 %v5057, 4
        %v5161 = vpop.permute.xlu0 %5160
        %5162 = vrot.lane.b32.xlu0 %v5058, 4
        %v5163 = vpop.permute.xlu0 %5162
        %5164 = vrot.lane.b32.xlu0 %v5071, 4
        %v5165 = vpop.permute.xlu0 %5164
        %5166 = vrot.lane.b32.xlu0 %v5072, 4
        %v5167 = vpop.permute.xlu0 %5166
        %5168 = vrot.lane.b32.xlu0 %v5085, 4
        %v5169 = vpop.permute.xlu0 %5168
        %5170 = vrot.lane.b32.xlu0 %v5086, 4
        %v5171 = vpop.permute.xlu0 %5170
        %5172 = vrot.lane.b32.xlu0 %v5099, 4
        %v5173 = vpop.permute.xlu0 %5172
        %5174 = vrot.lane.b32.xlu0 %v5100, 4
        %v5175 = vpop.permute.xlu0 %5174
        %5176 = vrot.lane.b32.xlu0 %v5113, 4
        %v5177 = vpop.permute.xlu0 %5176
        %5178 = vrot.lane.b32.xlu0 %v5114, 4
        %v5179 = vpop.permute.xlu0 %5178
        %v5228 = vunpack.c.l.b16 %v4652
        %v5229 = vunpack.c.l.b16 %v4653
        %v5230 = vunpack.c.l.b16 %v4654
        %v5231 = vunpack.c.l.b16 %v4655
        %v5232 = vunpack.c.l.b16 %v4656
        %v5233 = vunpack.c.l.b16 %v4657
        %v5234 = vunpack.c.l.b16 %v4658
        %v5235 = vunpack.c.l.b16 %v4659
        %v5236 = vunpack.c.l.b16 %v4660
        %v5237 = vunpack.c.l.b16 %v4661
        %v5238 = vunpack.c.l.b16 %v4662
        %v5239 = vunpack.c.l.b16 %v4663
        %v5240 = vunpack.c.l.b16 %v4664
        %v5241 = vunpack.c.l.b16 %v4665
        %v5242 = vunpack.c.l.b16 %v4666
        %v5243 = vunpack.c.l.b16 %v4667
        %v5244 = vunpack.c.l.b16 %v4668
        %v5245 = vunpack.c.l.b16 %v4669
        %v5246 = vunpack.c.l.b16 %v4670
        %v5247 = vunpack.c.l.b16 %v4671
        %v5248 = vunpack.c.l.b16 %v4672
        %v5249 = vunpack.c.l.b16 %v4673
        %v5250 = vunpack.c.l.b16 %v4674
        %v5251 = vunpack.c.l.b16 %v4675
        %v5252 = vunpack.c.l.b16 %v4676
        %v5253 = vunpack.c.l.b16 %v4677
        %v5254 = vunpack.c.l.b16 %v4678
        %v5255 = vunpack.c.l.b16 %v4679
        %v5256 = vunpack.c.l.b16 %v4680
        %v5257 = vunpack.c.l.b16 %v4681
        %v5258 = vunpack.c.l.b16 %v4682
        %v5259 = vunpack.c.l.b16 %v4683
        %v5260 = vunpack.c.l.b16 %v4684
        %v5261 = vunpack.c.l.b16 %v4685
        %v5262 = vunpack.c.l.b16 %v4686
        %v5263 = vunpack.c.l.b16 %v4687
        %v5264 = vunpack.c.l.b16 %v4688
        %v5265 = vunpack.c.l.b16 %v4689
        %v5266 = vunpack.c.l.b16 %v4690
        %v5267 = vunpack.c.l.b16 %v4691
        %v5268 = vunpack.c.l.b16 %v4692
        %v5269 = vunpack.c.l.b16 %v4693
        %v5270 = vunpack.c.l.b16 %v4694
        %v5271 = vunpack.c.l.b16 %v4695
        %v5272 = vunpack.c.l.b16 %v4696
        %v5273 = vunpack.c.l.b16 %v4697
        %v5274 = vunpack.c.l.b16 %v4698
        %v5275 = vunpack.c.l.b16 %v4699
        %v5276 = vpack.c.b16 %v5229, %v5228
        %v5277 = vpack.c.b16 %v5230, %v5230
        %v5278 = vpack.c.b16 %v5232, %v5231
        %v5279 = vpack.c.b16 %v5233, %v5233
        %v5280 = vpack.c.b16 %v5235, %v5234
        %v5281 = vpack.c.b16 %v5236, %v5236
        %v5282 = vpack.c.b16 %v5238, %v5237
        %v5283 = vpack.c.b16 %v5239, %v5239
        %v5284 = vpack.c.b16 %v5241, %v5240
        %v5285 = vpack.c.b16 %v5242, %v5242
        %v5286 = vpack.c.b16 %v5244, %v5243
        %v5287 = vpack.c.b16 %v5245, %v5245
        %v5288 = vpack.c.b16 %v5247, %v5246
        %v5289 = vpack.c.b16 %v5248, %v5248
        %v5290 = vpack.c.b16 %v5250, %v5249
        %v5291 = vpack.c.b16 %v5251, %v5251
        %v5292 = vpack.c.b16 %v5253, %v5252
        %v5293 = vpack.c.b16 %v5254, %v5254
        %v5294 = vpack.c.b16 %v5256, %v5255
        %v5295 = vpack.c.b16 %v5257, %v5257
        %v5296 = vpack.c.b16 %v5259, %v5258
        %v5297 = vpack.c.b16 %v5260, %v5260
        %v5298 = vpack.c.b16 %v5262, %v5261
        %v5299 = vpack.c.b16 %v5263, %v5263
        %v5300 = vpack.c.b16 %v5265, %v5264
        %v5301 = vpack.c.b16 %v5266, %v5266
        %v5302 = vpack.c.b16 %v5268, %v5267
        %v5303 = vpack.c.b16 %v5269, %v5269
        %v5304 = vpack.c.b16 %v5271, %v5270
        %v5305 = vpack.c.b16 %v5272, %v5272
        %v5306 = vpack.c.b16 %v5274, %v5273
        %v5307 = vpack.c.b16 %v5275, %v5275
        %5308 = vrot.lane.b32.xlu0 %v5276, 8
        %v5309 = vpop.permute.xlu0 %5308
        %5310 = vrot.lane.b32.xlu0 %v5277, 8
        %v5311 = vpop.permute.xlu0 %5310
        %5312 = vrot.lane.b32.xlu0 %v5278, 8
        %v5313 = vpop.permute.xlu0 %5312
        %5314 = vrot.lane.b32.xlu0 %v5279, 8
        %v5315 = vpop.permute.xlu0 %5314
        %5316 = vrot.lane.b32.xlu0 %v5280, 8
        %v5317 = vpop.permute.xlu0 %5316
        %5318 = vrot.lane.b32.xlu0 %v5281, 8
        %v5319 = vpop.permute.xlu0 %5318
        %5320 = vrot.lane.b32.xlu0 %v5282, 8
        %v5321 = vpop.permute.xlu0 %5320
        %5322 = vrot.lane.b32.xlu0 %v5283, 8
        %v5323 = vpop.permute.xlu0 %5322
        %5324 = vrot.lane.b32.xlu0 %v5284, 8
        %v5325 = vpop.permute.xlu0 %5324
        %5326 = vrot.lane.b32.xlu0 %v5285, 8
        %v5327 = vpop.permute.xlu0 %5326
        %5328 = vrot.lane.b32.xlu0 %v5286, 8
        %v5329 = vpop.permute.xlu0 %5328
        %5330 = vrot.lane.b32.xlu0 %v5287, 8
        %v5331 = vpop.permute.xlu0 %5330
        %5332 = vrot.lane.b32.xlu0 %v5288, 8
        %v5333 = vpop.permute.xlu0 %5332
        %5334 = vrot.lane.b32.xlu0 %v5289, 8
        %v5335 = vpop.permute.xlu0 %5334
        %5336 = vrot.lane.b32.xlu0 %v5290, 8
        %v5337 = vpop.permute.xlu0 %5336
        %5338 = vrot.lane.b32.xlu0 %v5291, 8
        %v5339 = vpop.permute.xlu0 %5338
        %5340 = vrot.lane.b32.xlu0 %v5292, 8
        %v5341 = vpop.permute.xlu0 %5340
        %5342 = vrot.lane.b32.xlu0 %v5293, 8
        %v5343 = vpop.permute.xlu0 %5342
        %5344 = vrot.lane.b32.xlu0 %v5294, 8
        %v5345 = vpop.permute.xlu0 %5344
        %5346 = vrot.lane.b32.xlu0 %v5295, 8
        %v5347 = vpop.permute.xlu0 %5346
        %5348 = vrot.lane.b32.xlu0 %v5296, 8
        %v5349 = vpop.permute.xlu0 %5348
        %5350 = vrot.lane.b32.xlu0 %v5297, 8
        %v5351 = vpop.permute.xlu0 %5350
        %5352 = vrot.lane.b32.xlu0 %v5298, 8
        %v5353 = vpop.permute.xlu0 %5352
        %5354 = vrot.lane.b32.xlu0 %v5299, 8
        %v5355 = vpop.permute.xlu0 %5354
        %5356 = vrot.lane.b32.xlu0 %v5300, 8
        %v5357 = vpop.permute.xlu0 %5356
        %5358 = vrot.lane.b32.xlu0 %v5301, 8
        %v5359 = vpop.permute.xlu0 %5358
        %5360 = vrot.lane.b32.xlu0 %v5302, 8
        %v5361 = vpop.permute.xlu0 %5360
        %5362 = vrot.lane.b32.xlu0 %v5303, 8
        %v5363 = vpop.permute.xlu0 %5362
        %5364 = vrot.lane.b32.xlu0 %v5304, 8
        %v5365 = vpop.permute.xlu0 %5364
        %5366 = vrot.lane.b32.xlu0 %v5305, 8
        %v5367 = vpop.permute.xlu0 %5366
        %5368 = vrot.lane.b32.xlu0 %v5306, 8
        %v5369 = vpop.permute.xlu0 %5368
        %5370 = vrot.lane.b32.xlu0 %v5307, 8
        %v5371 = vpop.permute.xlu0 %5370
        %v5388 = vunpack.c.l.b16 %v4700
        %v5389 = vunpack.c.l.b16 %v4701
        %v5390 = vunpack.c.l.b16 %v4702
        %v5391 = vunpack.c.l.b16 %v4703
        %v5392 = vunpack.c.l.b16 %v4704
        %v5393 = vunpack.c.l.b16 %v4705
        %v5394 = vunpack.c.l.b16 %v4706
        %v5395 = vunpack.c.l.b16 %v4707
        %v5396 = vunpack.c.l.b16 %v4708
        %v5397 = vunpack.c.l.b16 %v4709
        %v5398 = vunpack.c.l.b16 %v4710
        %v5399 = vunpack.c.l.b16 %v4711
        %v5400 = vunpack.c.l.b16 %v4712
        %v5401 = vunpack.c.l.b16 %v4713
        %v5402 = vunpack.c.l.b16 %v4714
        %v5403 = vunpack.c.l.b16 %v4715
        %v5404 = vpack.c.b16 %v5229, %v5388
        %v5405 = vpack.c.b16 %v5232, %v5389
        %v5406 = vpack.c.b16 %v5235, %v5390
        %v5407 = vpack.c.b16 %v5238, %v5391
        %v5408 = vpack.c.b16 %v5241, %v5392
        %v5409 = vpack.c.b16 %v5244, %v5393
        %v5410 = vpack.c.b16 %v5247, %v5394
        %v5411 = vpack.c.b16 %v5250, %v5395
        %v5412 = vpack.c.b16 %v5253, %v5396
        %v5413 = vpack.c.b16 %v5256, %v5397
        %v5414 = vpack.c.b16 %v5259, %v5398
        %v5415 = vpack.c.b16 %v5262, %v5399
        %v5416 = vpack.c.b16 %v5265, %v5400
        %v5417 = vpack.c.b16 %v5268, %v5401
        %v5418 = vpack.c.b16 %v5271, %v5402
        %v5419 = vpack.c.b16 %v5274, %v5403
        %v5421 = vshrl.u32 %v5404, 16
        %v5423 = vshll.u32 %v5404, 16
        %v5425 = vrot.slane %v5423, 1
        %v5426 = vor.u32 %v5421, %v5425
        %v5428 = vshll.u32 %v5277, 16
        %v5430 = vrot.slane %v5428, 1
        %v5431 = vsel %vm440, %v5426, %v5430
        %v5432 = vshrl.u32 %v5277, 16
        %v5435 = vshrl.u32 %v5405, 16
        %v5437 = vshll.u32 %v5405, 16
        %v5439 = vrot.slane %v5437, 1
        %v5440 = vor.u32 %v5435, %v5439
        %v5442 = vshll.u32 %v5279, 16
        %v5444 = vrot.slane %v5442, 1
        %v5445 = vsel %vm440, %v5440, %v5444
        %v5446 = vshrl.u32 %v5279, 16
        %v5449 = vshrl.u32 %v5406, 16
        %v5451 = vshll.u32 %v5406, 16
        %v5453 = vrot.slane %v5451, 1
        %v5454 = vor.u32 %v5449, %v5453
        %v5456 = vshll.u32 %v5281, 16
        %v5458 = vrot.slane %v5456, 1
        %v5459 = vsel %vm440, %v5454, %v5458
        %v5460 = vshrl.u32 %v5281, 16
        %v5463 = vshrl.u32 %v5407, 16
        %v5465 = vshll.u32 %v5407, 16
        %v5467 = vrot.slane %v5465, 1
        %v5468 = vor.u32 %v5463, %v5467
        %v5470 = vshll.u32 %v5283, 16
        %v5472 = vrot.slane %v5470, 1
        %v5473 = vsel %vm440, %v5468, %v5472
        %v5474 = vshrl.u32 %v5283, 16
        %v5477 = vshrl.u32 %v5408, 16
        %v5479 = vshll.u32 %v5408, 16
        %v5481 = vrot.slane %v5479, 1
        %v5482 = vor.u32 %v5477, %v5481
        %v5484 = vshll.u32 %v5285, 16
        %v5486 = vrot.slane %v5484, 1
        %v5487 = vsel %vm440, %v5482, %v5486
        %v5488 = vshrl.u32 %v5285, 16
        %v5491 = vshrl.u32 %v5409, 16
        %v5493 = vshll.u32 %v5409, 16
        %v5495 = vrot.slane %v5493, 1
        %v5496 = vor.u32 %v5491, %v5495
        %v5498 = vshll.u32 %v5287, 16
        %v5500 = vrot.slane %v5498, 1
        %v5501 = vsel %vm440, %v5496, %v5500
        %v5502 = vshrl.u32 %v5287, 16
        %v5505 = vshrl.u32 %v5410, 16
        %v5507 = vshll.u32 %v5410, 16
        %v5509 = vrot.slane %v5507, 1
        %v5510 = vor.u32 %v5505, %v5509
        %v5512 = vshll.u32 %v5289, 16
        %v5514 = vrot.slane %v5512, 1
        %v5515 = vsel %vm440, %v5510, %v5514
        %v5516 = vshrl.u32 %v5289, 16
        %v5519 = vshrl.u32 %v5411, 16
        %v5521 = vshll.u32 %v5411, 16
        %v5523 = vrot.slane %v5521, 1
        %v5524 = vor.u32 %v5519, %v5523
        %v5526 = vshll.u32 %v5291, 16
        %v5528 = vrot.slane %v5526, 1
        %v5529 = vsel %vm440, %v5524, %v5528
        %v5530 = vshrl.u32 %v5291, 16
        %v5533 = vshrl.u32 %v5412, 16
        %v5535 = vshll.u32 %v5412, 16
        %v5537 = vrot.slane %v5535, 1
        %v5538 = vor.u32 %v5533, %v5537
        %v5540 = vshll.u32 %v5293, 16
        %v5542 = vrot.slane %v5540, 1
        %v5543 = vsel %vm440, %v5538, %v5542
        %v5544 = vshrl.u32 %v5293, 16
        %v5547 = vshrl.u32 %v5413, 16
        %v5549 = vshll.u32 %v5413, 16
        %v5551 = vrot.slane %v5549, 1
        %v5552 = vor.u32 %v5547, %v5551
        %v5554 = vshll.u32 %v5295, 16
        %v5556 = vrot.slane %v5554, 1
        %v5557 = vsel %vm440, %v5552, %v5556
        %v5558 = vshrl.u32 %v5295, 16
        %v5561 = vshrl.u32 %v5414, 16
        %v5563 = vshll.u32 %v5414, 16
        %v5565 = vrot.slane %v5563, 1
        %v5566 = vor.u32 %v5561, %v5565
        %v5568 = vshll.u32 %v5297, 16
        %v5570 = vrot.slane %v5568, 1
        %v5571 = vsel %vm440, %v5566, %v5570
        %v5572 = vshrl.u32 %v5297, 16
        %v5575 = vshrl.u32 %v5415, 16
        %v5577 = vshll.u32 %v5415, 16
        %v5579 = vrot.slane %v5577, 1
        %v5580 = vor.u32 %v5575, %v5579
        %v5582 = vshll.u32 %v5299, 16
        %v5584 = vrot.slane %v5582, 1
        %v5585 = vsel %vm440, %v5580, %v5584
        %v5586 = vshrl.u32 %v5299, 16
        %v5589 = vshrl.u32 %v5416, 16
        %v5591 = vshll.u32 %v5416, 16
        %v5593 = vrot.slane %v5591, 1
        %v5594 = vor.u32 %v5589, %v5593
        %v5596 = vshll.u32 %v5301, 16
        %v5598 = vrot.slane %v5596, 1
        %v5599 = vsel %vm440, %v5594, %v5598
        %v5600 = vshrl.u32 %v5301, 16
        %v5603 = vshrl.u32 %v5417, 16
        %v5605 = vshll.u32 %v5417, 16
        %v5607 = vrot.slane %v5605, 1
        %v5608 = vor.u32 %v5603, %v5607
        %v5610 = vshll.u32 %v5303, 16
        %v5612 = vrot.slane %v5610, 1
        %v5613 = vsel %vm440, %v5608, %v5612
        %v5614 = vshrl.u32 %v5303, 16
        %v5617 = vshrl.u32 %v5418, 16
        %v5619 = vshll.u32 %v5418, 16
        %v5621 = vrot.slane %v5619, 1
        %v5622 = vor.u32 %v5617, %v5621
        %v5624 = vshll.u32 %v5305, 16
        %v5626 = vrot.slane %v5624, 1
        %v5627 = vsel %vm440, %v5622, %v5626
        %v5628 = vshrl.u32 %v5305, 16
        %v5631 = vshrl.u32 %v5419, 16
        %v5633 = vshll.u32 %v5419, 16
        %v5635 = vrot.slane %v5633, 1
        %v5636 = vor.u32 %v5631, %v5635
        %v5638 = vshll.u32 %v5307, 16
        %v5640 = vrot.slane %v5638, 1
        %v5641 = vsel %vm440, %v5636, %v5640
        %v5642 = vshrl.u32 %v5307, 16
        %5644 = vrot.lane.b32.xlu0 %v5431, 12
        %v5645 = vpop.permute.xlu0 %5644
        %5646 = vrot.lane.b32.xlu0 %v5432, 12
        %v5647 = vpop.permute.xlu0 %5646
        %5648 = vrot.lane.b32.xlu0 %v5445, 12
        %v5649 = vpop.permute.xlu0 %5648
        %5650 = vrot.lane.b32.xlu0 %v5446, 12
        %v5651 = vpop.permute.xlu0 %5650
        %5652 = vrot.lane.b32.xlu0 %v5459, 12
        %v5653 = vpop.permute.xlu0 %5652
        %5654 = vrot.lane.b32.xlu0 %v5460, 12
        %v5655 = vpop.permute.xlu0 %5654
        %5656 = vrot.lane.b32.xlu0 %v5473, 12
        %v5657 = vpop.permute.xlu0 %5656
        %5658 = vrot.lane.b32.xlu0 %v5474, 12
        %v5659 = vpop.permute.xlu0 %5658
        %5660 = vrot.lane.b32.xlu0 %v5487, 12
        %v5661 = vpop.permute.xlu0 %5660
        %5662 = vrot.lane.b32.xlu0 %v5488, 12
        %v5663 = vpop.permute.xlu0 %5662
        %5664 = vrot.lane.b32.xlu0 %v5501, 12
        %v5665 = vpop.permute.xlu0 %5664
        %5666 = vrot.lane.b32.xlu0 %v5502, 12
        %v5667 = vpop.permute.xlu0 %5666
        %5668 = vrot.lane.b32.xlu0 %v5515, 12
        %v5669 = vpop.permute.xlu0 %5668
        %5670 = vrot.lane.b32.xlu0 %v5516, 12
        %v5671 = vpop.permute.xlu0 %5670
        %5672 = vrot.lane.b32.xlu0 %v5529, 12
        %v5673 = vpop.permute.xlu0 %5672
        %5674 = vrot.lane.b32.xlu0 %v5530, 12
        %v5675 = vpop.permute.xlu0 %5674
        %5676 = vrot.lane.b32.xlu0 %v5543, 12
        %v5677 = vpop.permute.xlu0 %5676
        %5678 = vrot.lane.b32.xlu0 %v5544, 12
        %v5679 = vpop.permute.xlu0 %5678
        %5680 = vrot.lane.b32.xlu0 %v5557, 12
        %v5681 = vpop.permute.xlu0 %5680
        %5682 = vrot.lane.b32.xlu0 %v5558, 12
        %v5683 = vpop.permute.xlu0 %5682
        %5684 = vrot.lane.b32.xlu0 %v5571, 12
        %v5685 = vpop.permute.xlu0 %5684
        %5686 = vrot.lane.b32.xlu0 %v5572, 12
        %v5687 = vpop.permute.xlu0 %5686
        %5688 = vrot.lane.b32.xlu0 %v5585, 12
        %v5689 = vpop.permute.xlu0 %5688
        %5690 = vrot.lane.b32.xlu0 %v5586, 12
        %v5691 = vpop.permute.xlu0 %5690
        %5692 = vrot.lane.b32.xlu0 %v5599, 12
        %v5693 = vpop.permute.xlu0 %5692
        %5694 = vrot.lane.b32.xlu0 %v5600, 12
        %v5695 = vpop.permute.xlu0 %5694
        %5696 = vrot.lane.b32.xlu0 %v5613, 12
        %v5697 = vpop.permute.xlu0 %5696
        %5698 = vrot.lane.b32.xlu0 %v5614, 12
        %v5699 = vpop.permute.xlu0 %5698
        %5700 = vrot.lane.b32.xlu0 %v5627, 12
        %v5701 = vpop.permute.xlu0 %5700
        %5702 = vrot.lane.b32.xlu0 %v5628, 12
        %v5703 = vpop.permute.xlu0 %5702
        %5704 = vrot.lane.b32.xlu0 %v5641, 12
        %v5705 = vpop.permute.xlu0 %5704
        %5706 = vrot.lane.b32.xlu0 %v5642, 12
        %v5707 = vpop.permute.xlu0 %5706
        %v5710 = vsel %vm1049, %v4812, %v5117
        %v5712 = vsel %vm1049, %v4813, %v5119
        %v5715 = vsel %vm1049, %v4814, %v5121
        %v5717 = vsel %vm1049, %v4815, %v5123
        %v5720 = vsel %vm1049, %v4816, %v5125
        %v5722 = vsel %vm1049, %v4817, %v5127
        %v5725 = vsel %vm1049, %v4818, %v5129
        %v5727 = vsel %vm1049, %v4819, %v5131
        %v5730 = vsel %vm1049, %v4820, %v5133
        %v5732 = vsel %vm1049, %v4821, %v5135
        %v5735 = vsel %vm1049, %v4822, %v5137
        %v5737 = vsel %vm1049, %v4823, %v5139
        %v5740 = vsel %vm1049, %v4824, %v5141
        %v5742 = vsel %vm1049, %v4825, %v5143
        %v5745 = vsel %vm1049, %v4826, %v5145
        %v5747 = vsel %vm1049, %v4827, %v5147
        %v5750 = vsel %vm1049, %v4828, %v5149
        %v5752 = vsel %vm1049, %v4829, %v5151
        %v5755 = vsel %vm1049, %v4830, %v5153
        %v5757 = vsel %vm1049, %v4831, %v5155
        %v5760 = vsel %vm1049, %v4832, %v5157
        %v5762 = vsel %vm1049, %v4833, %v5159
        %v5765 = vsel %vm1049, %v4834, %v5161
        %v5767 = vsel %vm1049, %v4835, %v5163
        %v5770 = vsel %vm1049, %v4836, %v5165
        %v5772 = vsel %vm1049, %v4837, %v5167
        %v5775 = vsel %vm1049, %v4838, %v5169
        %v5777 = vsel %vm1049, %v4839, %v5171
        %v5780 = vsel %vm1049, %v4840, %v5173
        %v5782 = vsel %vm1049, %v4841, %v5175
        %v5785 = vsel %vm1049, %v4842, %v5177
        %v5787 = vsel %vm1049, %v4843, %v5179
        %v5789 = vsel %vm1082, %v5710, %v5309
        %v5791 = vsel %vm1082, %v5712, %v5311
        %v5793 = vsel %vm1082, %v5715, %v5313
        %v5795 = vsel %vm1082, %v5717, %v5315
        %v5797 = vsel %vm1082, %v5720, %v5317
        %v5799 = vsel %vm1082, %v5722, %v5319
        %v5801 = vsel %vm1082, %v5725, %v5321
        %v5803 = vsel %vm1082, %v5727, %v5323
        %v5805 = vsel %vm1082, %v5730, %v5325
        %v5807 = vsel %vm1082, %v5732, %v5327
        %v5809 = vsel %vm1082, %v5735, %v5329
        %v5811 = vsel %vm1082, %v5737, %v5331
        %v5813 = vsel %vm1082, %v5740, %v5333
        %v5815 = vsel %vm1082, %v5742, %v5335
        %v5817 = vsel %vm1082, %v5745, %v5337
        %v5819 = vsel %vm1082, %v5747, %v5339
        %v5821 = vsel %vm1082, %v5750, %v5341
        %v5823 = vsel %vm1082, %v5752, %v5343
        %v5825 = vsel %vm1082, %v5755, %v5345
        %v5827 = vsel %vm1082, %v5757, %v5347
        %v5829 = vsel %vm1082, %v5760, %v5349
        %v5831 = vsel %vm1082, %v5762, %v5351
        %v5833 = vsel %vm1082, %v5765, %v5353
        %v5835 = vsel %vm1082, %v5767, %v5355
        %v5837 = vsel %vm1082, %v5770, %v5357
        %v5839 = vsel %vm1082, %v5772, %v5359
        %v5841 = vsel %vm1082, %v5775, %v5361
        %v5843 = vsel %vm1082, %v5777, %v5363
        %v5845 = vsel %vm1082, %v5780, %v5365
        %v5847 = vsel %vm1082, %v5782, %v5367
        %v5849 = vsel %vm1082, %v5785, %v5369
        %v5851 = vsel %vm1082, %v5787, %v5371
        %v5853 = vsel %vm1115, %v5789, %v5645
        %v5855 = vsel %vm1115, %v5791, %v5647
        %v5857 = vsel %vm1115, %v5793, %v5649
        %v5859 = vsel %vm1115, %v5795, %v5651
        %v5861 = vsel %vm1115, %v5797, %v5653
        %v5863 = vsel %vm1115, %v5799, %v5655
        %v5865 = vsel %vm1115, %v5801, %v5657
        %v5867 = vsel %vm1115, %v5803, %v5659
        %v5869 = vsel %vm1115, %v5805, %v5661
        %v5871 = vsel %vm1115, %v5807, %v5663
        %v5873 = vsel %vm1115, %v5809, %v5665
        %v5875 = vsel %vm1115, %v5811, %v5667
        %v5877 = vsel %vm1115, %v5813, %v5669
        %v5879 = vsel %vm1115, %v5815, %v5671
        %v5881 = vsel %vm1115, %v5817, %v5673
        %v5883 = vsel %vm1115, %v5819, %v5675
        %v5885 = vsel %vm1115, %v5821, %v5677
        %v5887 = vsel %vm1115, %v5823, %v5679
        %v5889 = vsel %vm1115, %v5825, %v5681
        %v5891 = vsel %vm1115, %v5827, %v5683
        %v5893 = vsel %vm1115, %v5829, %v5685
        %v5895 = vsel %vm1115, %v5831, %v5687
        %v5897 = vsel %vm1115, %v5833, %v5689
        %v5899 = vsel %vm1115, %v5835, %v5691
        %v5901 = vsel %vm1115, %v5837, %v5693
        %v5903 = vsel %vm1115, %v5839, %v5695
        %v5905 = vsel %vm1115, %v5841, %v5697
        %v5907 = vsel %vm1115, %v5843, %v5699
        %v5909 = vsel %vm1115, %v5845, %v5701
        %v5911 = vsel %vm1115, %v5847, %v5703
        %v5913 = vsel %vm1115, %v5849, %v5705
        %v5915 = vsel %vm1115, %v5851, %v5707
        %v5916 = vshrl.u32 %v5853, 16
        %v5918 = vshll.u32 %v5853, 16
        %v5920 = vrot.slane %v5918, 1
        %v5921 = vor.u32 %v5916, %v5920
        %v5922 = vshll.u32 %v5855, 16
        %v5924 = vrot.slane %v5922, 1
        %v5925 = vsel %vm440, %v5921, %v5924
        %v5926 = vshrl.u32 %v5857, 16
        %v5928 = vshll.u32 %v5857, 16
        %v5930 = vrot.slane %v5928, 1
        %v5931 = vor.u32 %v5926, %v5930
        %v5932 = vshll.u32 %v5859, 16
        %v5934 = vrot.slane %v5932, 1
        %v5935 = vsel %vm440, %v5931, %v5934
        %v5936 = vshrl.u32 %v5861, 16
        %v5938 = vshll.u32 %v5861, 16
        %v5940 = vrot.slane %v5938, 1
        %v5941 = vor.u32 %v5936, %v5940
        %v5942 = vshll.u32 %v5863, 16
        %v5944 = vrot.slane %v5942, 1
        %v5945 = vsel %vm440, %v5941, %v5944
        %v5946 = vshrl.u32 %v5865, 16
        %v5948 = vshll.u32 %v5865, 16
        %v5950 = vrot.slane %v5948, 1
        %v5951 = vor.u32 %v5946, %v5950
        %v5952 = vshll.u32 %v5867, 16
        %v5954 = vrot.slane %v5952, 1
        %v5955 = vsel %vm440, %v5951, %v5954
        %v5956 = vshrl.u32 %v5869, 16
        %v5958 = vshll.u32 %v5869, 16
        %v5960 = vrot.slane %v5958, 1
        %v5961 = vor.u32 %v5956, %v5960
        %v5962 = vshll.u32 %v5871, 16
        %v5964 = vrot.slane %v5962, 1
        %v5965 = vsel %vm440, %v5961, %v5964
        %v5966 = vshrl.u32 %v5873, 16
        %v5968 = vshll.u32 %v5873, 16
        %v5970 = vrot.slane %v5968, 1
        %v5971 = vor.u32 %v5966, %v5970
        %v5972 = vshll.u32 %v5875, 16
        %v5974 = vrot.slane %v5972, 1
        %v5975 = vsel %vm440, %v5971, %v5974
        %v5976 = vshrl.u32 %v5877, 16
        %v5978 = vshll.u32 %v5877, 16
        %v5980 = vrot.slane %v5978, 1
        %v5981 = vor.u32 %v5976, %v5980
        %v5982 = vshll.u32 %v5879, 16
        %v5984 = vrot.slane %v5982, 1
        %v5985 = vsel %vm440, %v5981, %v5984
        %v5986 = vshrl.u32 %v5881, 16
        %v5988 = vshll.u32 %v5881, 16
        %v5990 = vrot.slane %v5988, 1
        %v5991 = vor.u32 %v5986, %v5990
        %v5992 = vshll.u32 %v5883, 16
        %v5994 = vrot.slane %v5992, 1
        %v5995 = vsel %vm440, %v5991, %v5994
        %v5996 = vshrl.u32 %v5885, 16
        %v5998 = vshll.u32 %v5885, 16
        %v6000 = vrot.slane %v5998, 1
        %v6001 = vor.u32 %v5996, %v6000
        %v6002 = vshll.u32 %v5887, 16
        %v6004 = vrot.slane %v6002, 1
        %v6005 = vsel %vm440, %v6001, %v6004
        %v6006 = vshrl.u32 %v5889, 16
        %v6008 = vshll.u32 %v5889, 16
        %v6010 = vrot.slane %v6008, 1
        %v6011 = vor.u32 %v6006, %v6010
        %v6012 = vshll.u32 %v5891, 16
        %v6014 = vrot.slane %v6012, 1
        %v6015 = vsel %vm440, %v6011, %v6014
        %v6016 = vshrl.u32 %v5893, 16
        %v6018 = vshll.u32 %v5893, 16
        %v6020 = vrot.slane %v6018, 1
        %v6021 = vor.u32 %v6016, %v6020
        %v6022 = vshll.u32 %v5895, 16
        %v6024 = vrot.slane %v6022, 1
        %v6025 = vsel %vm440, %v6021, %v6024
        %v6026 = vshrl.u32 %v5897, 16
        %v6028 = vshll.u32 %v5897, 16
        %v6030 = vrot.slane %v6028, 1
        %v6031 = vor.u32 %v6026, %v6030
        %v6032 = vshll.u32 %v5899, 16
        %v6034 = vrot.slane %v6032, 1
        %v6035 = vsel %vm440, %v6031, %v6034
        %v6036 = vshrl.u32 %v5901, 16
        %v6038 = vshll.u32 %v5901, 16
        %v6040 = vrot.slane %v6038, 1
        %v6041 = vor.u32 %v6036, %v6040
        %v6042 = vshll.u32 %v5903, 16
        %v6044 = vrot.slane %v6042, 1
        %v6045 = vsel %vm440, %v6041, %v6044
        %v6046 = vshrl.u32 %v5905, 16
        %v6048 = vshll.u32 %v5905, 16
        %v6050 = vrot.slane %v6048, 1
        %v6051 = vor.u32 %v6046, %v6050
        %v6052 = vshll.u32 %v5907, 16
        %v6054 = vrot.slane %v6052, 1
        %v6055 = vsel %vm440, %v6051, %v6054
        %v6056 = vshrl.u32 %v5909, 16
        %v6058 = vshll.u32 %v5909, 16
        %v6060 = vrot.slane %v6058, 1
        %v6061 = vor.u32 %v6056, %v6060
        %v6062 = vshll.u32 %v5911, 16
        %v6064 = vrot.slane %v6062, 1
        %v6065 = vsel %vm440, %v6061, %v6064
        %v6066 = vshrl.u32 %v5913, 16
        %v6068 = vshll.u32 %v5913, 16
        %v6070 = vrot.slane %v6068, 1
        %v6071 = vor.u32 %v6066, %v6070
        %v6072 = vshll.u32 %v5915, 16
        %v6074 = vrot.slane %v6072, 1
        %v6075 = vsel %vm440, %v6071, %v6074
        %s6076 = scalar_lea.vmem %s1, 24
        %v6077 = vld [vmem:[%s6076] sm:$0xf]
        %v6078 = vld [vmem:[%s6076 + $0x4] sm:$0xf]
        %v6081 = vunpack.c.l.b16 %v6077
        %v6082 = vunpack.c.l.b16 %v6078
        %v6083 = vpack.c.b16 %v6082, %v6081
        %v6086 = vsel %vm1156, %v5925, 0
        %v6089 = vsel %vm1156, %v5935, 0
        %v6092 = vsel %vm1156, %v5945, 0
        %v6095 = vsel %vm1156, %v5955, 0
        %v6098 = vsel %vm1156, %v5965, 0
        %v6101 = vsel %vm1156, %v5975, 0
        %v6104 = vsel %vm1156, %v5985, 0
        %v6107 = vsel %vm1156, %v5995, 0
        %v6110 = vsel %vm1156, %v6005, 0
        %v6113 = vsel %vm1156, %v6015, 0
        %v6116 = vsel %vm1156, %v6025, 0
        %v6119 = vsel %vm1156, %v6035, 0
        %v6122 = vsel %vm1156, %v6045, 0
        %v6125 = vsel %vm1156, %v6055, 0
        %v6128 = vsel %vm1156, %v6065, 0
        %v6131 = vsel %vm1156, %v6075, 0
        %6133 = vmatpush.bf16.msra.mxu0 0
        %6134 = vmatpush.bf16.msra.mxu0 0
        %6135 = vmatpush.bf16.msra.mxu0 0
        %6136 = vmatpush.bf16.msra.mxu0 0
        %6137 = vmatpush.bf16.msra.mxu0 0
        %6138 = vmatpush.bf16.msra.mxu0 0
        %6139 = vmatpush.bf16.msra.mxu0 0
        %6140 = vmatpush.bf16.msra.mxu0 %v6083
        %6141 = vmatmul.bf16.gmra.mxu0 %v6086
        %v6142 = vpop.f32.mrf.mxu0
        %v6143 = vadd.f32 0.0, %v6142
        %v6144 = vpop.f32.mrf.mxu0
        %v6145 = vadd.f32 0.0, %v6144
        %6146 = vmatmul.bf16.gmra.mxu0 %v6089
        %v6147 = vpop.f32.mrf.mxu0
        %v6148 = vadd.f32 0.0, %v6147
        %v6149 = vpop.f32.mrf.mxu0
        %v6150 = vadd.f32 0.0, %v6149
        %6151 = vmatmul.bf16.gmra.mxu0 %v6092
        %v6152 = vpop.f32.mrf.mxu0
        %v6153 = vadd.f32 0.0, %v6152
        %v6154 = vpop.f32.mrf.mxu0
        %v6155 = vadd.f32 0.0, %v6154
        %6156 = vmatmul.bf16.gmra.mxu0 %v6095
        %v6157 = vpop.f32.mrf.mxu0
        %v6158 = vadd.f32 0.0, %v6157
        %v6159 = vpop.f32.mrf.mxu0
        %v6160 = vadd.f32 0.0, %v6159
        %6161 = vmatmul.bf16.gmra.mxu0 %v6098
        %v6162 = vpop.f32.mrf.mxu0
        %v6163 = vadd.f32 0.0, %v6162
        %v6164 = vpop.f32.mrf.mxu0
        %v6165 = vadd.f32 0.0, %v6164
        %6166 = vmatmul.bf16.gmra.mxu0 %v6101
        %v6167 = vpop.f32.mrf.mxu0
        %v6168 = vadd.f32 0.0, %v6167
        %v6169 = vpop.f32.mrf.mxu0
        %v6170 = vadd.f32 0.0, %v6169
        %6171 = vmatmul.bf16.gmra.mxu0 %v6104
        %v6172 = vpop.f32.mrf.mxu0
        %v6173 = vadd.f32 0.0, %v6172
        %v6174 = vpop.f32.mrf.mxu0
        %v6175 = vadd.f32 0.0, %v6174
        %6176 = vmatmul.bf16.gmra.mxu0 %v6107
        %v6177 = vpop.f32.mrf.mxu0
        %v6178 = vadd.f32 0.0, %v6177
        %v6179 = vpop.f32.mrf.mxu0
        %v6180 = vadd.f32 0.0, %v6179
        %6181 = vmatmul.bf16.gmra.mxu0 %v6110
        %v6182 = vpop.f32.mrf.mxu0
        %v6183 = vadd.f32 0.0, %v6182
        %v6184 = vpop.f32.mrf.mxu0
        %v6185 = vadd.f32 0.0, %v6184
        %6186 = vmatmul.bf16.gmra.mxu0 %v6113
        %v6187 = vpop.f32.mrf.mxu0
        %v6188 = vadd.f32 0.0, %v6187
        %v6189 = vpop.f32.mrf.mxu0
        %v6190 = vadd.f32 0.0, %v6189
        %6191 = vmatmul.bf16.gmra.mxu0 %v6116
        %v6192 = vpop.f32.mrf.mxu0
        %v6193 = vadd.f32 0.0, %v6192
        %v6194 = vpop.f32.mrf.mxu0
        %v6195 = vadd.f32 0.0, %v6194
        %6196 = vmatmul.bf16.gmra.mxu0 %v6119
        %v6197 = vpop.f32.mrf.mxu0
        %v6198 = vadd.f32 0.0, %v6197
        %v6199 = vpop.f32.mrf.mxu0
        %v6200 = vadd.f32 0.0, %v6199
        %6201 = vmatmul.bf16.gmra.mxu0 %v6122
        %v6202 = vpop.f32.mrf.mxu0
        %v6203 = vadd.f32 0.0, %v6202
        %v6204 = vpop.f32.mrf.mxu0
        %v6205 = vadd.f32 0.0, %v6204
        %6206 = vmatmul.bf16.gmra.mxu0 %v6125
        %v6207 = vpop.f32.mrf.mxu0
        %v6208 = vadd.f32 0.0, %v6207
        %v6209 = vpop.f32.mrf.mxu0
        %v6210 = vadd.f32 0.0, %v6209
        %6211 = vmatmul.bf16.gmra.mxu0 %v6128
        %v6212 = vpop.f32.mrf.mxu0
        %v6213 = vadd.f32 0.0, %v6212
        %v6214 = vpop.f32.mrf.mxu0
        %v6215 = vadd.f32 0.0, %v6214
        %6216 = vmatmul.bf16.gmra.mxu0 %v6131
        %v6217 = vpop.f32.mrf.mxu0
        %v6218 = vadd.f32 0.0, %v6217
        %v6219 = vpop.f32.mrf.mxu0
        %v6220 = vadd.f32 0.0, %v6219
        %6221 = vdwg.mxu0
        %s6222 = scalar_lea.vmem %s205, 768
        %6223 = vst.msk [vmem:[%s6222] sm:$0xff] %vm1082, %v6143
        %6224 = vst.msk [vmem:[%s6222 + $0x8] sm:$0xff] %vm1082, %v6145
        %6225 = vst.msk [vmem:[%s6222 + $0x10] sm:$0xff] %vm1082, %v6148
        %6226 = vst.msk [vmem:[%s6222 + $0x18] sm:$0xff] %vm1082, %v6150
        %6227 = vst.msk [vmem:[%s6222 + $0x20] sm:$0xff] %vm1082, %v6153
        %6228 = vst.msk [vmem:[%s6222 + $0x28] sm:$0xff] %vm1082, %v6155
        %6229 = vst.msk [vmem:[%s6222 + $0x30] sm:$0xff] %vm1082, %v6158
        %6230 = vst.msk [vmem:[%s6222 + $0x38] sm:$0xff] %vm1082, %v6160
        %6231 = vst.msk [vmem:[%s6222 + $0x40] sm:$0xff] %vm1082, %v6163
        %6232 = vst.msk [vmem:[%s6222 + $0x48] sm:$0xff] %vm1082, %v6165
        %6233 = vst.msk [vmem:[%s6222 + $0x50] sm:$0xff] %vm1082, %v6168
        %6234 = vst.msk [vmem:[%s6222 + $0x58] sm:$0xff] %vm1082, %v6170
        %6235 = vst.msk [vmem:[%s6222 + $0x60] sm:$0xff] %vm1082, %v6173
        %6236 = vst.msk [vmem:[%s6222 + $0x68] sm:$0xff] %vm1082, %v6175
        %6237 = vst.msk [vmem:[%s6222 + $0x70] sm:$0xff] %vm1082, %v6178
        %6238 = vst.msk [vmem:[%s6222 + $0x78] sm:$0xff] %vm1082, %v6180
        %6239 = vst.msk [vmem:[%s6222 + $0x80] sm:$0xff] %vm1082, %v6183
        %6240 = vst.msk [vmem:[%s6222 + $0x88] sm:$0xff] %vm1082, %v6185
        %6241 = vst.msk [vmem:[%s6222 + $0x90] sm:$0xff] %vm1082, %v6188
        %6242 = vst.msk [vmem:[%s6222 + $0x98] sm:$0xff] %vm1082, %v6190
        %6243 = vst.msk [vmem:[%s6222 + $0xa0] sm:$0xff] %vm1082, %v6193
        %6244 = vst.msk [vmem:[%s6222 + $0xa8] sm:$0xff] %vm1082, %v6195
        %6245 = vst.msk [vmem:[%s6222 + $0xb0] sm:$0xff] %vm1082, %v6198
        %6246 = vst.msk [vmem:[%s6222 + $0xb8] sm:$0xff] %vm1082, %v6200
        %6247 = vst.msk [vmem:[%s6222 + $0xc0] sm:$0xff] %vm1082, %v6203
        %6248 = vst.msk [vmem:[%s6222 + $0xc8] sm:$0xff] %vm1082, %v6205
        %6249 = vst.msk [vmem:[%s6222 + $0xd0] sm:$0xff] %vm1082, %v6208
        %6250 = vst.msk [vmem:[%s6222 + $0xd8] sm:$0xff] %vm1082, %v6210
        %6251 = vst.msk [vmem:[%s6222 + $0xe0] sm:$0xff] %vm1082, %v6213
        %6252 = vst.msk [vmem:[%s6222 + $0xe8] sm:$0xff] %vm1082, %v6215
        %6253 = vst.msk [vmem:[%s6222 + $0xf0] sm:$0xff] %vm1082, %v6218
        %6254 = vst.msk [vmem:[%s6222 + $0xf8] sm:$0xff] %vm1082, %v6220
        %v6255 = vsel %vm1082, %v6143, 0.0
        %v6256 = vsel %vm1082, %v6145, 0.0
        %v6257 = vadd.f32 %v6255, %v6256
        %v6258 = vsel %vm1082, %v6148, 0.0
        %v6259 = vadd.f32 %v6257, %v6258
        %v6260 = vsel %vm1082, %v6150, 0.0
        %v6261 = vadd.f32 %v6259, %v6260
        %v6262 = vsel %vm1082, %v6153, 0.0
        %v6263 = vadd.f32 %v6261, %v6262
        %v6264 = vsel %vm1082, %v6155, 0.0
        %v6265 = vadd.f32 %v6263, %v6264
        %v6266 = vsel %vm1082, %v6158, 0.0
        %v6267 = vadd.f32 %v6265, %v6266
        %v6268 = vsel %vm1082, %v6160, 0.0
        %v6269 = vadd.f32 %v6267, %v6268
        %v6270 = vsel %vm1082, %v6163, 0.0
        %v6271 = vadd.f32 %v6269, %v6270
        %v6272 = vsel %vm1082, %v6165, 0.0
        %v6273 = vadd.f32 %v6271, %v6272
        %v6274 = vsel %vm1082, %v6168, 0.0
        %v6275 = vadd.f32 %v6273, %v6274
        %v6276 = vsel %vm1082, %v6170, 0.0
        %v6277 = vadd.f32 %v6275, %v6276
        %v6278 = vsel %vm1082, %v6173, 0.0
        %v6279 = vadd.f32 %v6277, %v6278
        %v6280 = vsel %vm1082, %v6175, 0.0
        %v6281 = vadd.f32 %v6279, %v6280
        %v6282 = vsel %vm1082, %v6178, 0.0
        %v6283 = vadd.f32 %v6281, %v6282
        %v6284 = vsel %vm1082, %v6180, 0.0
        %v6285 = vadd.f32 %v6283, %v6284
        %v6286 = vsel %vm1082, %v6183, 0.0
        %v6287 = vadd.f32 %v6285, %v6286
        %v6288 = vsel %vm1082, %v6185, 0.0
        %v6289 = vadd.f32 %v6287, %v6288
        %v6290 = vsel %vm1082, %v6188, 0.0
        %v6291 = vadd.f32 %v6289, %v6290
        %v6292 = vsel %vm1082, %v6190, 0.0
        %v6293 = vadd.f32 %v6291, %v6292
        %v6294 = vsel %vm1082, %v6193, 0.0
        %v6295 = vadd.f32 %v6293, %v6294
        %v6296 = vsel %vm1082, %v6195, 0.0
        %v6297 = vadd.f32 %v6295, %v6296
        %v6298 = vsel %vm1082, %v6198, 0.0
        %v6299 = vadd.f32 %v6297, %v6298
        %v6300 = vsel %vm1082, %v6200, 0.0
        %v6301 = vadd.f32 %v6299, %v6300
        %v6302 = vsel %vm1082, %v6203, 0.0
        %v6303 = vadd.f32 %v6301, %v6302
        %v6304 = vsel %vm1082, %v6205, 0.0
        %v6305 = vadd.f32 %v6303, %v6304
        %v6306 = vsel %vm1082, %v6208, 0.0
        %v6307 = vadd.f32 %v6305, %v6306
        %v6308 = vsel %vm1082, %v6210, 0.0
        %v6309 = vadd.f32 %v6307, %v6308
        %v6310 = vsel %vm1082, %v6213, 0.0
        %v6311 = vadd.f32 %v6309, %v6310
        %v6312 = vsel %vm1082, %v6215, 0.0
        %v6313 = vadd.f32 %v6311, %v6312
        %v6314 = vsel %vm1082, %v6218, 0.0
        %v6315 = vadd.f32 %v6313, %v6314
        %v6316 = vsel %vm1082, %v6220, 0.0
        %v6317 = vadd.f32 %v6315, %v6316
        %v6318 = vrot.slane %v6317, 4
        %v6319 = vadd.f32 %v6317, %v6318
        %v6320 = vrot.slane %v6319, 2
        %v6321 = vadd.f32 %v6319, %v6320
        %v6322 = vrot.slane %v6321, 1
        %v6323 = vadd.f32 %v6321, %v6322
        %v6324 = vadd.f32 %v4485, %v6323
        %v6325 = vmul.f32 %v6143, %v6143
        %v6326 = vmul.f32 %v6145, %v6145
        %v6327 = vmul.f32 %v6148, %v6148
        %v6328 = vmul.f32 %v6150, %v6150
        %v6329 = vmul.f32 %v6153, %v6153
        %v6330 = vmul.f32 %v6155, %v6155
        %v6331 = vmul.f32 %v6158, %v6158
        %v6332 = vmul.f32 %v6160, %v6160
        %v6333 = vmul.f32 %v6163, %v6163
        %v6334 = vmul.f32 %v6165, %v6165
        %v6335 = vmul.f32 %v6168, %v6168
        %v6336 = vmul.f32 %v6170, %v6170
        %v6337 = vmul.f32 %v6173, %v6173
        %v6338 = vmul.f32 %v6175, %v6175
        %v6339 = vmul.f32 %v6178, %v6178
        %v6340 = vmul.f32 %v6180, %v6180
        %v6341 = vmul.f32 %v6183, %v6183
        %v6342 = vmul.f32 %v6185, %v6185
        %v6343 = vmul.f32 %v6188, %v6188
        %v6344 = vmul.f32 %v6190, %v6190
        %v6345 = vmul.f32 %v6193, %v6193
        %v6346 = vmul.f32 %v6195, %v6195
        %v6347 = vmul.f32 %v6198, %v6198
        %v6348 = vmul.f32 %v6200, %v6200
        %v6349 = vmul.f32 %v6203, %v6203
        %v6350 = vmul.f32 %v6205, %v6205
        %v6351 = vmul.f32 %v6208, %v6208
        %v6352 = vmul.f32 %v6210, %v6210
        %v6353 = vmul.f32 %v6213, %v6213
        %v6354 = vmul.f32 %v6215, %v6215
        %v6355 = vmul.f32 %v6218, %v6218
        %v6356 = vmul.f32 %v6220, %v6220
        %v6357 = vsel %vm1082, %v6325, 0.0
        %v6358 = vsel %vm1082, %v6326, 0.0
        %v6359 = vadd.f32 %v6357, %v6358
        %v6360 = vsel %vm1082, %v6327, 0.0
        %v6361 = vadd.f32 %v6359, %v6360
        %v6362 = vsel %vm1082, %v6328, 0.0
        %v6363 = vadd.f32 %v6361, %v6362
        %v6364 = vsel %vm1082, %v6329, 0.0
        %v6365 = vadd.f32 %v6363, %v6364
        %v6366 = vsel %vm1082, %v6330, 0.0
        %v6367 = vadd.f32 %v6365, %v6366
        %v6368 = vsel %vm1082, %v6331, 0.0
        %v6369 = vadd.f32 %v6367, %v6368
        %v6370 = vsel %vm1082, %v6332, 0.0
        %v6371 = vadd.f32 %v6369, %v6370
        %v6372 = vsel %vm1082, %v6333, 0.0
        %v6373 = vadd.f32 %v6371, %v6372
        %v6374 = vsel %vm1082, %v6334, 0.0
        %v6375 = vadd.f32 %v6373, %v6374
        %v6376 = vsel %vm1082, %v6335, 0.0
        %v6377 = vadd.f32 %v6375, %v6376
        %v6378 = vsel %vm1082, %v6336, 0.0
        %v6379 = vadd.f32 %v6377, %v6378
        %v6380 = vsel %vm1082, %v6337, 0.0
        %v6381 = vadd.f32 %v6379, %v6380
        %v6382 = vsel %vm1082, %v6338, 0.0
        %v6383 = vadd.f32 %v6381, %v6382
        %v6384 = vsel %vm1082, %v6339, 0.0
        %v6385 = vadd.f32 %v6383, %v6384
        %v6386 = vsel %vm1082, %v6340, 0.0
        %v6387 = vadd.f32 %v6385, %v6386
        %v6388 = vsel %vm1082, %v6341, 0.0
        %v6389 = vadd.f32 %v6387, %v6388
        %v6390 = vsel %vm1082, %v6342, 0.0
        %v6391 = vadd.f32 %v6389, %v6390
        %v6392 = vsel %vm1082, %v6343, 0.0
        %v6393 = vadd.f32 %v6391, %v6392
        %v6394 = vsel %vm1082, %v6344, 0.0
        %v6395 = vadd.f32 %v6393, %v6394
        %v6396 = vsel %vm1082, %v6345, 0.0
        %v6397 = vadd.f32 %v6395, %v6396
        %v6398 = vsel %vm1082, %v6346, 0.0
        %v6399 = vadd.f32 %v6397, %v6398
        %v6400 = vsel %vm1082, %v6347, 0.0
        %v6401 = vadd.f32 %v6399, %v6400
        %v6402 = vsel %vm1082, %v6348, 0.0
        %v6403 = vadd.f32 %v6401, %v6402
        %v6404 = vsel %vm1082, %v6349, 0.0
        %v6405 = vadd.f32 %v6403, %v6404
        %v6406 = vsel %vm1082, %v6350, 0.0
        %v6407 = vadd.f32 %v6405, %v6406
        %v6408 = vsel %vm1082, %v6351, 0.0
        %v6409 = vadd.f32 %v6407, %v6408
        %v6410 = vsel %vm1082, %v6352, 0.0
        %v6411 = vadd.f32 %v6409, %v6410
        %v6412 = vsel %vm1082, %v6353, 0.0
        %v6413 = vadd.f32 %v6411, %v6412
        %v6414 = vsel %vm1082, %v6354, 0.0
        %v6415 = vadd.f32 %v6413, %v6414
        %v6416 = vsel %vm1082, %v6355, 0.0
        %v6417 = vadd.f32 %v6415, %v6416
        %v6418 = vsel %vm1082, %v6356, 0.0
        %v6419 = vadd.f32 %v6417, %v6418
        %v6420 = vrot.slane %v6419, 4
        %v6421 = vadd.f32 %v6419, %v6420
        %v6422 = vrot.slane %v6421, 2
        %v6423 = vadd.f32 %v6421, %v6422
        %v6424 = vrot.slane %v6423, 1
        %v6425 = vadd.f32 %v6423, %v6424
        %v6426 = vadd.f32 %v4587, %v6425
        %vm6427 = vcmask 1040384
        %v6428 = vsel %vm6427, %v6324, %v6426
        %vm6429 = vcmask 58368
        %6430 = vst.msk [vmem:[%s191] sm:$0x3] %vm6429, %v6428
        %s6431 = smul.u32 32, %s23
        %p6432 = scmp.lt.s32.totalorder %s22, 1
        %s6433 = scalar_select %p6432, %s22, 1
        %p6434 = scmp.lt.s32.totalorder %s6431, 31
        %s6435 = scalar_select %p6434, %s6431, 31
        %s6436 = smul.addr %s6433, 128
        %s6437 = sadd.s32 %s6435, %s6436
        %s6438 = smul.addr %s6437, 8
        %s6439 = scalar_lea.vmem %s2, %s6438
        %s6440 = sand.u32 %s115, 1
        %s6441 = scalar_lea.sflag [#allocation3], %s6440
        %s6442 = sand.u32 %s115, 1
        %s6443 = smul.addr %s6442, 2
        %s6444 = scalar_lea.vmem [#allocation2], %s6443
        // Predicated region
        $region29: #{tpu_custom_call.1} parent=27 // pred_check
          %p6445 = pneg %p97
        $region30: #{tpu_custom_call.1} parent=27 // pred_check_branch
          %6447 = sbr.rel (%p6445) target = $region32
        $region31: #{tpu_custom_call.1} parent=27 // pred_region
          %s6448 = smul.u32 32, %s23
        $region32: #{tpu_custom_call.1} parent=27 // pred_fallthru
          _
        // Predicated region
        $region33: #{tpu_custom_call.1} parent=27 // pred_check
          %p6449 = pneg %p125
        $region34: #{tpu_custom_call.1} parent=27 // pred_check_branch
          %6451 = sbr.rel (%p6449) target = $region36
        $region35: #{tpu_custom_call.1} parent=27 // pred_region
          %6453 = vsyncadd %s6441, 0
          %s6454 = sadd.s32 %s23, %s22
          %s6455 = smul.addr %s6454, 2
          %s6456 = scalar_lea.hbm %s3, %s6455
          %s6458 = sshll.u32 %s6444, 4
          %s6459 = int_to_ptr.vmem [resolvable:$true] %s6458
          %s6460 = sshll.u32 %s6456, 4
          %s6461 = int_to_ptr.hbm [resolvable:$true] %s6460
          %6463 = dma.vmem_to_hbm [thread:$0]  %s6459, 32, %s6461, %s6441
        $region36: #{tpu_custom_call.1} parent=27 // pred_fallthru
          _
      $region28: #{tpu_custom_call.1} parent=5 // pred_fallthru
        _
      %p6464 = scmp.le.s32.totalorder 2, %s13
      // Predicated region
      $region37: #{tpu_custom_call.1} parent=5 // pred_check
        %p6465 = pneg %p6464
      $region38: #{tpu_custom_call.1} parent=5 // pred_check_branch
        %6467 = sbr.rel (%p6465) target = $region40
      $region39: #{tpu_custom_call.1} parent=5 // pred_region
        %s6468 = ssub.s32 %s13, 2
        // Predicated region
        $region41: #{tpu_custom_call.1} parent=39 // pred_check
          %p6469 = pneg %p103
        $region42: #{tpu_custom_call.1} parent=39 // pred_check_branch
          %6471 = sbr.rel (%p6469) target = $region44
        $region43: #{tpu_custom_call.1} parent=39 // pred_region
          %s6472 = smul.u32 32, %s25
          %p6473 = scmp.lt.s32.totalorder %s24, 1
          %s6474 = scalar_select %p6473, %s24, 1
          %p6475 = scmp.lt.s32.totalorder %s6472, 31
          %s6476 = scalar_select %p6475, %s6472, 31
          %s6477 = smul.addr %s6474, 128
          %s6478 = sadd.s32 %s6476, %s6477
          %s6479 = smul.addr %s6478, 8
          %s6480 = scalar_lea.vmem %s2, %s6479
        $region44: #{tpu_custom_call.1} parent=39 // pred_fallthru
          _
        // Predicated region
        $region45: #{tpu_custom_call.1} parent=39 // pred_check
          %p6481 = pneg %p131
        $region46: #{tpu_custom_call.1} parent=39 // pred_check_branch
          %6483 = sbr.rel (%p6481) target = $region48
        $region47: #{tpu_custom_call.1} parent=39 // pred_region
          %s6484 = sand.u32 %s116, 1
          %s6485 = scalar_lea.sflag [#allocation3], %s6484
          %s6486 = sand.u32 %s116, 1
          %s6487 = smul.addr %s6486, 2
          %s6488 = scalar_lea.vmem [#allocation2], %s6487
          %6490 = dma.done %s6485, 32
        $region48: #{tpu_custom_call.1} parent=39 // pred_fallthru
          _
      $region40: #{tpu_custom_call.1} parent=5 // pred_fallthru
        _
    $region6: #{tpu_custom_call.1} parent=1 // loop_footer
      %s17 = sadd.s32 1, %s13
    $region7: #{tpu_custom_call.1} parent=1 // loop_footer_branch
      %12 = sbr.rel target = $region3
    $region8: #{tpu_custom_call.1} parent=1 // loop_exit
      _
    %6491 = vsyncpa [#allocation3], 1
    %s6492 = scalar_lea.sflag [#allocation3], 1
    %6493 = vsyncpa %s6492, 1

</llo_original>
